<compile_context>
chip_gen: v6e
topology: v6e:2x2x1
jax: 0.10.0
libtpu: 0.0.40
codegen_flags: <defaults>
</compile_context>

<pallas_src>
import jax
import jax.numpy as jnp
from jax import lax
from jax.experimental import pallas as pl
from jax.experimental.pallas import tpu as pltpu


# ----------------------------------------------------------------------------
# Kernel
# ----------------------------------------------------------------------------
def _e2egan_kernel(
    # sequence inputs, time-major blocks: (T, Bb, D)
    x_ref, mask_ref, noise_ref, delta_ref,
    # encoder params (pre-split / pre-fused in the wrapper)
    enc_td_w_ref, enc_td_b_ref,      # (D, H), (1, H)
    enc_wx3_ref, enc_bx3_ref,        # (D, 3H), (1, 3H)   x-side of [r | mu | hh]
    enc_whrm_ref, enc_whh_ref,       # (H, 2H), (H, H)    h-side of [r | mu], hh
    # bottleneck
    z_w_ref, z_b_ref,                # (H, H), (1, H)
    din_w_ref, din_b_ref,            # (H, D), (1, D)
    # decoder params
    dec_td_w_ref, dec_td_b_ref,
    dec_wx3_ref, dec_bx3_ref,
    dec_whrm_ref, dec_whh_ref,
    reg_w_ref, reg_b_ref,            # (H, D), (1, D)
    # output
    out_ref,                         # (T, Bb, D)
    # scratch (all 2D, time-major flattened rows: row = t*Bb + b)
    xbuf, dbuf,                      # (T*Bb, D)
    enc_xprm, enc_xphh,              # (T*Bb, 2H), (T*Bb, H)
    enc_beta, dec_beta,              # (T*Bb, H),  (T*Bb, H)
):
    T, Bb, D = x_ref.shape
    H = z_w_ref.shape[0]
    unroll = bool(T <= 64)

    # ---- hoist all weight / bias loads + broadcasts out of the loops --------
    enc_whrm = enc_whrm_ref[...]
    enc_whh = enc_whh_ref[...]
    dec_whrm = dec_whrm_ref[...]
    dec_whh = dec_whh_ref[...]
    dec_wx3 = dec_wx3_ref[...]
    reg_w = reg_w_ref[...]
    dec_bx3_b = jnp.broadcast_to(dec_bx3_ref[...], (Bb, 3 * H))
    reg_b_b = jnp.broadcast_to(reg_b_ref[...], (Bb, D))

    # ---- stage 1: gather inputs into dense 2D slabs (off the serial chain) --
    # x = x * mask + noise, once for the whole block.
    def stage_in(t, c):
        row = pl.multiple_of(t * Bb, Bb)
        xbuf[pl.ds(row, Bb), :] = x_ref[t] * mask_ref[t] + noise_ref[t]
        dbuf[pl.ds(row, Bb), :] = delta_ref[t]
        return c

    lax.fori_loop(0, T, stage_in, 0, unroll=unroll)

    # ---- stage 2: batched precompute over all T*Bb rows (one matmul each) ---
    xf = xbuf[...]                                    # (T*Bb, D)
    df = dbuf[...]                                    # (T*Bb, D)

    xproj = (jnp.dot(xf, enc_wx3_ref[...], preferred_element_type=jnp.float32)
             + enc_bx3_ref[...])                      # (T*Bb, 3H)
    enc_xprm[...] = xproj[:, : 2 * H]
    enc_xphh[...] = xproj[:, 2 * H:]

    enc_beta[...] = jnp.exp(-jax.nn.relu(
        jnp.dot(df, enc_td_w_ref[...], preferred_element_type=jnp.float32)
        + enc_td_b_ref[...]))
    dec_beta[...] = jnp.exp(-jax.nn.relu(
        jnp.dot(df, dec_td_w_ref[...], preferred_element_type=jnp.float32)
        + dec_td_b_ref[...]))

    # ---- GRUI cell: only h-dependent matmuls on the critical path -----------
    def gru_step(h, beta, xprm, xphh, whrm, whh):
        h = beta * h
        rm = jax.nn.sigmoid(
            jnp.dot(h, whrm, preferred_element_type=jnp.float32) + xprm)
        r = rm[:, :H]
        mu = rm[:, H:]
        h_hat = jnp.tanh(
            jnp.dot(r * h, whh, preferred_element_type=jnp.float32) + xphh)
        return (1.0 - mu) * h + mu * h_hat

    # ---- encoder recurrence --------------------------------------------------
    def enc_body(t, h):
        row = pl.multiple_of(t * Bb, Bb)
        return gru_step(h,
                        enc_beta[pl.ds(row, Bb), :],
                        enc_xprm[pl.ds(row, Bb), :],
                        enc_xphh[pl.ds(row, Bb), :],
                        enc_whrm, enc_whh)

    h_enc = lax.fori_loop(0, T, enc_body,
                          jnp.zeros((Bb, H), jnp.float32), unroll=unroll)

    z = (jnp.dot(h_enc, z_w_ref[...], preferred_element_type=jnp.float32)
         + z_b_ref[...])
    x0 = (jnp.dot(z, din_w_ref[...], preferred_element_type=jnp.float32)
          + din_b_ref[...])

    # ---- decoder recurrence --------------------------------------------------
    def dec_body(t, carry):
        h, x_t = carry
        row = pl.multiple_of(t * Bb, Bb)
        # x_t depends on the previous step, so its gate projection stays in-loop
        # (but fused: one (D, 3H) matmul for r|mu|hh).
        xproj_t = (jnp.dot(x_t, dec_wx3, preferred_element_type=jnp.float32)
                   + dec_bx3_b)
        h = gru_step(h,
                     dec_beta[pl.ds(row, Bb), :],
                     xproj_t[:, : 2 * H],
                     xproj_t[:, 2 * H:],
                     dec_whrm, dec_whh)
        x_new = jnp.tanh(
            jnp.dot(h, reg_w, preferred_element_type=jnp.float32) + reg_b_b)
        out_ref[t] = x_new.astype(out_ref.dtype)
        return h, x_new

    lax.fori_loop(0, T, dec_body,
                  (jnp.zeros((Bb, H), jnp.float32), x0), unroll=unroll)


# ----------------------------------------------------------------------------
# Parameter handling
# ----------------------------------------------------------------------------
def _lin_init(key, fan_in, fan_out):
    # nn.Linear default scale: U(-1/sqrt(fan_in), +1/sqrt(fan_in)).
    kw, kb = jax.random.split(key)
    bound = 1.0 / (fan_in ** 0.5)
    w = jax.random.uniform(kw, (fan_in, fan_out), jnp.float32, -bound, bound)
    b = jax.random.uniform(kb, (1, fan_out), jnp.float32, -bound, bound)
    return w, b


def init_params(key, input_dim, hidden_dim):
    # Weights stored (in_features, out_features); gate weights take cat([h, x])
    # i.e. first H rows are the h-part, last D rows the x-part (matches torch).
    D, H = input_dim, hidden_dim
    keys = jax.random.split(key, 11)
    p = {}
    p["enc_td_w"], p["enc_td_b"] = _lin_init(keys[0], D, H)
    p["enc_r_w"], p["enc_r_b"] = _lin_init(keys[1], H + D, H)
    p["enc_mu_w"], p["enc_mu_b"] = _lin_init(keys[2], H + D, H)
    p["enc_hh_w"], p["enc_hh_b"] = _lin_init(keys[3], H + D, H)
    p["z_w"], p["z_b"] = _lin_init(keys[4], H, H)
    p["din_w"], p["din_b"] = _lin_init(keys[5], H, D)
    p["dec_td_w"], p["dec_td_b"] = _lin_init(keys[6], D, H)
    p["dec_r_w"], p["dec_r_b"] = _lin_init(keys[7], H + D, H)
    p["dec_mu_w"], p["dec_mu_b"] = _lin_init(keys[8], H + D, H)
    p["dec_hh_w"], p["dec_hh_b"] = _lin_init(keys[9], H + D, H)
    p["reg_w"], p["reg_b"] = _lin_init(keys[10], H, D)
    return p


def _prepare_params(params):
    """Pre-split / pre-fuse weights so no slicing happens inside the kernel."""
    H = params["z_w"].shape[0]
    f32 = lambda a: jnp.asarray(a, jnp.float32)

    def fuse(prefix):
        r_w, mu_w, hh_w = (params[f"{prefix}_r_w"], params[f"{prefix}_mu_w"],
                           params[f"{prefix}_hh_w"])
        r_b, mu_b, hh_b = (params[f"{prefix}_r_b"], params[f"{prefix}_mu_b"],
                           params[f"{prefix}_hh_b"])
        wx3 = jnp.concatenate([r_w[H:], mu_w[H:], hh_w[H:]], axis=1)   # (D, 3H)
        bx3 = jnp.concatenate([r_b, mu_b, hh_b], axis=1)               # (1, 3H)
        whrm = jnp.concatenate([r_w[:H], mu_w[:H]], axis=1)            # (H, 2H)
        whh = hh_w[:H]                                                 # (H, H)
        return f32(wx3), f32(bx3), f32(whrm), f32(whh)

    enc_wx3, enc_bx3, enc_whrm, enc_whh = fuse("enc")
    dec_wx3, dec_bx3, dec_whrm, dec_whh = fuse("dec")
    return [
        f32(params["enc_td_w"]), f32(params["enc_td_b"]),
        enc_wx3, enc_bx3, enc_whrm, enc_whh,
        f32(params["z_w"]), f32(params["z_b"]),
        f32(params["din_w"]), f32(params["din_b"]),
        f32(params["dec_td_w"]), f32(params["dec_td_b"]),
        dec_wx3, dec_bx3, dec_whrm, dec_whh,
        f32(params["reg_w"]), f32(params["reg_b"]),
    ]


def _pick_b_block(B):
    # Block the batch for megacore sharding / VMEM blocking; block must be a
    # multiple of 8 (sublane tiling) or span the full batch.
    for cand in (256, 128, 64, 32, 16, 8):
        if B % cand == 0:
            return cand
    return B


# ----------------------------------------------------------------------------
# Wrapper
# ----------------------------------------------------------------------------
def e2egan_generator(x, mask, delta, noise, params):
    """x, mask, delta, noise: (B, T, D) float32 -> (B, T, D) imputed series."""
    B, T, D = x.shape
    H = params["z_w"].shape[0]

    # time-major so every per-step access in the kernel is a cheap leading-axis
    # index (the four sequence tensors are only read by the hoisted precompute).
    tm = lambda a: jnp.transpose(jnp.asarray(a, jnp.float32), (1, 0, 2))
    seq_args = [tm(x), tm(mask), tm(noise), tm(delta)]
    weight_args = _prepare_params(params)

    b_blk = _pick_b_block(B)
    nb = B // b_blk

    seq_spec = pl.BlockSpec((T, b_blk, D), lambda i: (0, i, 0))
    w_specs = [pl.BlockSpec(w.shape, lambda i: (0, 0)) for w in weight_args]

    out_tbd = pl.pallas_call(
        _e2egan_kernel,
        out_shape=jax.ShapeDtypeStruct((T, B, D), jnp.float32),
        grid=(nb,),
        in_specs=[seq_spec] * 4 + w_specs,
        out_specs=pl.BlockSpec((T, b_blk, D), lambda i: (0, i, 0)),
        scratch_shapes=[
            pltpu.VMEM((T * b_blk, D), jnp.float32),        # xbuf  (x*mask+noise)
            pltpu.VMEM((T * b_blk, D), jnp.float32),        # dbuf  (delta)
            pltpu.VMEM((T * b_blk, 2 * H), jnp.float32),    # enc x-proj [r|mu]
            pltpu.VMEM((T * b_blk, H), jnp.float32),        # enc x-proj  hh
            pltpu.VMEM((T * b_blk, H), jnp.float32),        # enc beta
            pltpu.VMEM((T * b_blk, H), jnp.float32),        # dec beta
        ],
        compiler_params=pltpu.CompilerParams(
            dimension_semantics=("parallel",)),
    )(*seq_args, *weight_args)

    return jnp.transpose(out_tbd, (1, 0, 2))


# ----------------------------------------------------------------------------
# Pure-JAX reference (same math, dropout = identity) for validation
# ----------------------------------------------------------------------------
def _reference_forward(x, mask, delta, noise, params):
    H = params["z_w"].shape[0]
    xn = x * mask + noise
    B, T, D = x.shape

    def cell(h, x_t, d_t, pre):
        beta = jnp.exp(-jax.nn.relu(d_t @ params[f"{pre}_td_w"]
                                    + params[f"{pre}_td_b"]))
        h = beta * h
        hx = jnp.concatenate([h, x_t], axis=1)
        r = jax.nn.sigmoid(hx @ params[f"{pre}_r_w"] + params[f"{pre}_r_b"])
        mu = jax.nn.sigmoid(hx @ params[f"{pre}_mu_w"] + params[f"{pre}_mu_b"])
        rhx = jnp.concatenate([r * h, x_t], axis=1)
        h_hat = jnp.tanh(rhx @ params[f"{pre}_hh_w"] + params[f"{pre}_hh_b"])
        return (1.0 - mu) * h + mu * h_hat

    h = jnp.zeros((B, H), jnp.float32)
    for t in range(T):
        h = cell(h, xn[:, t, :], delta[:, t, :], "enc")
    z = h @ params["z_w"] + params["z_b"]
    x_t = z @ params["din_w"] + params["din_b"]

    h = jnp.zeros((B, H), jnp.float32)
    outs = []
    for t in range(T):
        h = cell(h, x_t, delta[:, t, :], "dec")
        x_t = jnp.tanh(h @ params["reg_w"] + params["reg_b"])
        outs.append(x_t[:, None, :])
    return jnp.concatenate(outs, axis=1)


# ----------------------------------------------------------------------------
if __name__ == "__main__":
    B, T, D, H = 2, 8, 4, 32
    key = jax.random.PRNGKey(0)
    k_x, k_m, k_d, k_n, k_p = jax.random.split(key, 5)

    x = jax.random.normal(k_x, (B, T, D), jnp.float32)
    mask = (jax.random.uniform(k_m, (B, T, D)) > 0.3).astype(jnp.float32)
    delta = jax.random.uniform(k_d, (B, T, D), jnp.float32, minval=0.0, maxval=2.0)
    # noise = randn_like(x) * 0.01 (generated host-side, consumed in-kernel)
    noise = jax.random.normal(k_n, (B, T, D), jnp.float32) * 0.01

    params = init_params(k_p, D, H)

    out = e2egan_generator(x, mask, delta, noise, params)
    jax.block_until_ready(out)
    assert out.shape == (B, T, D), out.shape
    assert bool(jnp.all(jnp.isfinite(out)))

    ref = _reference_forward(x, mask, delta, noise, params)
    assert bool(jnp.allclose(out, ref, atol=1e-3, rtol=1e-3)), (
        float(jnp.max(jnp.abs(out - ref))))

    print("KERNEL_OK")
</pallas_src>

<mosaic_0001>
module attributes {stable_mosaic.version = 11 : i64} {
  func.func @_e2egan_kernel(%arg0: i32, %arg1: memref<8x2x4xf32, #tpu.memory_space<vmem>>, %arg2: memref<8x2x4xf32, #tpu.memory_space<vmem>>, %arg3: memref<8x2x4xf32, #tpu.memory_space<vmem>>, %arg4: memref<8x2x4xf32, #tpu.memory_space<vmem>>, %arg5: memref<4x32xf32, #tpu.memory_space<vmem>>, %arg6: memref<1x32xf32, #tpu.memory_space<vmem>>, %arg7: memref<4x96xf32, #tpu.memory_space<vmem>>, %arg8: memref<1x96xf32, #tpu.memory_space<vmem>>, %arg9: memref<32x64xf32, #tpu.memory_space<vmem>>, %arg10: memref<32x32xf32, #tpu.memory_space<vmem>>, %arg11: memref<32x32xf32, #tpu.memory_space<vmem>>, %arg12: memref<1x32xf32, #tpu.memory_space<vmem>>, %arg13: memref<32x4xf32, #tpu.memory_space<vmem>>, %arg14: memref<1x4xf32, #tpu.memory_space<vmem>>, %arg15: memref<4x32xf32, #tpu.memory_space<vmem>>, %arg16: memref<1x32xf32, #tpu.memory_space<vmem>>, %arg17: memref<4x96xf32, #tpu.memory_space<vmem>>, %arg18: memref<1x96xf32, #tpu.memory_space<vmem>>, %arg19: memref<32x64xf32, #tpu.memory_space<vmem>>, %arg20: memref<32x32xf32, #tpu.memory_space<vmem>>, %arg21: memref<32x4xf32, #tpu.memory_space<vmem>>, %arg22: memref<1x4xf32, #tpu.memory_space<vmem>>, %arg23: memref<8x2x4xf32, #tpu.memory_space<vmem>>, %arg24: memref<16x4xf32, #tpu.memory_space<vmem>>, %arg25: memref<16x4xf32, #tpu.memory_space<vmem>>, %arg26: memref<16x64xf32, #tpu.memory_space<vmem>>, %arg27: memref<16x32xf32, #tpu.memory_space<vmem>>, %arg28: memref<16x32xf32, #tpu.memory_space<vmem>>, %arg29: memref<16x32xf32, #tpu.memory_space<vmem>>) attributes {dimension_semantics = [#tpu.dimension_semantics<parallel>], iteration_bounds = array<i64: 1>, scalar_prefetch = 0 : i64, scratch_operands = 6 : i64, tpu.core_type = #tpu.core_type<tc>, window_params = [{transform_indices = @transform_0, window_bounds = array<i64: 8, 2, 4>}, {transform_indices = @transform_1, window_bounds = array<i64: 8, 2, 4>}, {transform_indices = @transform_2, window_bounds = array<i64: 8, 2, 4>}, {transform_indices = @transform_3, window_bounds = array<i64: 8, 2, 4>}, {pipeline_mode = #tpu.pipeline_mode<synchronous>, transform_indices = @transform_4, window_bounds = array<i64: 4, 32>}, {pipeline_mode = #tpu.pipeline_mode<synchronous>, transform_indices = @transform_5, window_bounds = array<i64: 1, 32>}, {pipeline_mode = #tpu.pipeline_mode<synchronous>, transform_indices = @transform_6, window_bounds = array<i64: 4, 96>}, {pipeline_mode = #tpu.pipeline_mode<synchronous>, transform_indices = @transform_7, window_bounds = array<i64: 1, 96>}, {pipeline_mode = #tpu.pipeline_mode<synchronous>, transform_indices = @transform_8, window_bounds = array<i64: 32, 64>}, {pipeline_mode = #tpu.pipeline_mode<synchronous>, transform_indices = @transform_9, window_bounds = array<i64: 32, 32>}, {pipeline_mode = #tpu.pipeline_mode<synchronous>, transform_indices = @transform_10, window_bounds = array<i64: 32, 32>}, {pipeline_mode = #tpu.pipeline_mode<synchronous>, transform_indices = @transform_11, window_bounds = array<i64: 1, 32>}, {pipeline_mode = #tpu.pipeline_mode<synchronous>, transform_indices = @transform_12, window_bounds = array<i64: 32, 4>}, {pipeline_mode = #tpu.pipeline_mode<synchronous>, transform_indices = @transform_13, window_bounds = array<i64: 1, 4>}, {pipeline_mode = #tpu.pipeline_mode<synchronous>, transform_indices = @transform_14, window_bounds = array<i64: 4, 32>}, {pipeline_mode = #tpu.pipeline_mode<synchronous>, transform_indices = @transform_15, window_bounds = array<i64: 1, 32>}, {pipeline_mode = #tpu.pipeline_mode<synchronous>, transform_indices = @transform_16, window_bounds = array<i64: 4, 96>}, {pipeline_mode = #tpu.pipeline_mode<synchronous>, transform_indices = @transform_17, window_bounds = array<i64: 1, 96>}, {pipeline_mode = #tpu.pipeline_mode<synchronous>, transform_indices = @transform_18, window_bounds = array<i64: 32, 64>}, {pipeline_mode = #tpu.pipeline_mode<synchronous>, transform_indices = @transform_19, window_bounds = array<i64: 32, 32>}, {pipeline_mode = #tpu.pipeline_mode<synchronous>, transform_indices = @transform_20, window_bounds = array<i64: 32, 4>}, {pipeline_mode = #tpu.pipeline_mode<synchronous>, transform_indices = @transform_21, window_bounds = array<i64: 1, 4>}, {transform_indices = @transform_22, window_bounds = array<i64: 8, 2, 4>}]} {
    %c0 = arith.constant 0 : index
    %c0_0 = arith.constant 0 : index
    %0 = vector.load %arg9[%c0, %c0_0] : memref<32x64xf32, #tpu.memory_space<vmem>>, vector<32x64xf32>
    %c0_1 = arith.constant 0 : index
    %c0_2 = arith.constant 0 : index
    %1 = vector.load %arg10[%c0_1, %c0_2] : memref<32x32xf32, #tpu.memory_space<vmem>>, vector<32x32xf32>
    %c0_3 = arith.constant 0 : index
    %c0_4 = arith.constant 0 : index
    %2 = vector.load %arg19[%c0_3, %c0_4] : memref<32x64xf32, #tpu.memory_space<vmem>>, vector<32x64xf32>
    %c0_5 = arith.constant 0 : index
    %c0_6 = arith.constant 0 : index
    %3 = vector.load %arg20[%c0_5, %c0_6] : memref<32x32xf32, #tpu.memory_space<vmem>>, vector<32x32xf32>
    %c0_7 = arith.constant 0 : index
    %c0_8 = arith.constant 0 : index
    %4 = vector.load %arg17[%c0_7, %c0_8] : memref<4x96xf32, #tpu.memory_space<vmem>>, vector<4x96xf32>
    %c0_9 = arith.constant 0 : index
    %c0_10 = arith.constant 0 : index
    %5 = vector.load %arg21[%c0_9, %c0_10] : memref<32x4xf32, #tpu.memory_space<vmem>>, vector<32x4xf32>
    %c0_11 = arith.constant 0 : index
    %c0_12 = arith.constant 0 : index
    %6 = vector.load %arg18[%c0_11, %c0_12] : memref<1x96xf32, #tpu.memory_space<vmem>>, vector<1x96xf32>
    %7 = vector.shape_cast %6 : vector<1x96xf32> to vector<1x96xf32>
    %8 = vector.broadcast %7 : vector<1x96xf32> to vector<2x96xf32>
    %c0_13 = arith.constant 0 : index
    %c0_14 = arith.constant 0 : index
    %9 = vector.load %arg22[%c0_13, %c0_14] : memref<1x4xf32, #tpu.memory_space<vmem>>, vector<1x4xf32>
    %10 = vector.shape_cast %9 : vector<1x4xf32> to vector<1x4xf32>
    %11 = vector.broadcast %10 : vector<1x4xf32> to vector<2x4xf32>
    %c0_i32 = arith.constant 0 : i32
    %c2_i32 = arith.constant 2 : i32
    %12 = arith.muli %c0_i32, %c2_i32 : i32
    %13 = tpu.assume_multiple %12, 2 : i32
    %14 = arith.index_cast %c0_i32 : i32 to index
    %c0_15 = arith.constant 0 : index
    %c0_16 = arith.constant 0 : index
    %15 = vector.load %arg1[%14, %c0_15, %c0_16] : memref<8x2x4xf32, #tpu.memory_space<vmem>>, vector<1x2x4xf32>
    %16 = vector.shape_cast %15 : vector<1x2x4xf32> to vector<2x4xf32>
    %17 = arith.index_cast %c0_i32 : i32 to index
    %c0_17 = arith.constant 0 : index
    %c0_18 = arith.constant 0 : index
    %18 = vector.load %arg2[%17, %c0_17, %c0_18] : memref<8x2x4xf32, #tpu.memory_space<vmem>>, vector<1x2x4xf32>
    %19 = vector.shape_cast %18 : vector<1x2x4xf32> to vector<2x4xf32>
    %20 = arith.mulf %16, %19 : vector<2x4xf32>
    %21 = arith.index_cast %c0_i32 : i32 to index
    %c0_19 = arith.constant 0 : index
    %c0_20 = arith.constant 0 : index
    %22 = vector.load %arg3[%21, %c0_19, %c0_20] : memref<8x2x4xf32, #tpu.memory_space<vmem>>, vector<1x2x4xf32>
    %23 = vector.shape_cast %22 : vector<1x2x4xf32> to vector<2x4xf32>
    %24 = arith.addf %20, %23 : vector<2x4xf32>
    %25 = arith.index_cast %13 : i32 to index
    %c0_21 = arith.constant 0 : index
    %26 = vector.load %arg24[%25, %c0_21] : memref<16x4xf32, #tpu.memory_space<vmem>>, vector<2x4xf32>
    tpu.vector_store %arg24[%25, %c0_21], %24 {strides = array<i32>} : memref<16x4xf32, #tpu.memory_space<vmem>>, vector<2x4xf32>,
    %27 = arith.index_cast %c0_i32 : i32 to index
    %c0_22 = arith.constant 0 : index
    %c0_23 = arith.constant 0 : index
    %28 = vector.load %arg4[%27, %c0_22, %c0_23] : memref<8x2x4xf32, #tpu.memory_space<vmem>>, vector<1x2x4xf32>
    %29 = vector.shape_cast %28 : vector<1x2x4xf32> to vector<2x4xf32>
    %30 = arith.index_cast %13 : i32 to index
    %c0_24 = arith.constant 0 : index
    %31 = vector.load %arg25[%30, %c0_24] : memref<16x4xf32, #tpu.memory_space<vmem>>, vector<2x4xf32>
    tpu.vector_store %arg25[%30, %c0_24], %29 {strides = array<i32>} : memref<16x4xf32, #tpu.memory_space<vmem>>, vector<2x4xf32>,
    %c1_i32 = arith.constant 1 : i32
    %c2_i32_25 = arith.constant 2 : i32
    %32 = arith.muli %c1_i32, %c2_i32_25 : i32
    %33 = tpu.assume_multiple %32, 2 : i32
    %34 = arith.index_cast %c1_i32 : i32 to index
    %c0_26 = arith.constant 0 : index
    %c0_27 = arith.constant 0 : index
    %35 = vector.load %arg1[%34, %c0_26, %c0_27] : memref<8x2x4xf32, #tpu.memory_space<vmem>>, vector<1x2x4xf32>
    %36 = vector.shape_cast %35 : vector<1x2x4xf32> to vector<2x4xf32>
    %37 = arith.index_cast %c1_i32 : i32 to index
    %c0_28 = arith.constant 0 : index
    %c0_29 = arith.constant 0 : index
    %38 = vector.load %arg2[%37, %c0_28, %c0_29] : memref<8x2x4xf32, #tpu.memory_space<vmem>>, vector<1x2x4xf32>
    %39 = vector.shape_cast %38 : vector<1x2x4xf32> to vector<2x4xf32>
    %40 = arith.mulf %36, %39 : vector<2x4xf32>
    %41 = arith.index_cast %c1_i32 : i32 to index
    %c0_30 = arith.constant 0 : index
    %c0_31 = arith.constant 0 : index
    %42 = vector.load %arg3[%41, %c0_30, %c0_31] : memref<8x2x4xf32, #tpu.memory_space<vmem>>, vector<1x2x4xf32>
    %43 = vector.shape_cast %42 : vector<1x2x4xf32> to vector<2x4xf32>
    %44 = arith.addf %40, %43 : vector<2x4xf32>
    %45 = arith.index_cast %33 : i32 to index
    %c0_32 = arith.constant 0 : index
    %46 = vector.load %arg24[%45, %c0_32] : memref<16x4xf32, #tpu.memory_space<vmem>>, vector<2x4xf32>
    tpu.vector_store %arg24[%45, %c0_32], %44 {strides = array<i32>} : memref<16x4xf32, #tpu.memory_space<vmem>>, vector<2x4xf32>,
    %47 = arith.index_cast %c1_i32 : i32 to index
    %c0_33 = arith.constant 0 : index
    %c0_34 = arith.constant 0 : index
    %48 = vector.load %arg4[%47, %c0_33, %c0_34] : memref<8x2x4xf32, #tpu.memory_space<vmem>>, vector<1x2x4xf32>
    %49 = vector.shape_cast %48 : vector<1x2x4xf32> to vector<2x4xf32>
    %50 = arith.index_cast %33 : i32 to index
    %c0_35 = arith.constant 0 : index
    %51 = vector.load %arg25[%50, %c0_35] : memref<16x4xf32, #tpu.memory_space<vmem>>, vector<2x4xf32>
    tpu.vector_store %arg25[%50, %c0_35], %49 {strides = array<i32>} : memref<16x4xf32, #tpu.memory_space<vmem>>, vector<2x4xf32>,
    %c2_i32_36 = arith.constant 2 : i32
    %c2_i32_37 = arith.constant 2 : i32
    %52 = arith.muli %c2_i32_36, %c2_i32_37 : i32
    %53 = tpu.assume_multiple %52, 2 : i32
    %54 = arith.index_cast %c2_i32_36 : i32 to index
    %c0_38 = arith.constant 0 : index
    %c0_39 = arith.constant 0 : index
    %55 = vector.load %arg1[%54, %c0_38, %c0_39] : memref<8x2x4xf32, #tpu.memory_space<vmem>>, vector<1x2x4xf32>
    %56 = vector.shape_cast %55 : vector<1x2x4xf32> to vector<2x4xf32>
    %57 = arith.index_cast %c2_i32_36 : i32 to index
    %c0_40 = arith.constant 0 : index
    %c0_41 = arith.constant 0 : index
    %58 = vector.load %arg2[%57, %c0_40, %c0_41] : memref<8x2x4xf32, #tpu.memory_space<vmem>>, vector<1x2x4xf32>
    %59 = vector.shape_cast %58 : vector<1x2x4xf32> to vector<2x4xf32>
    %60 = arith.mulf %56, %59 : vector<2x4xf32>
    %61 = arith.index_cast %c2_i32_36 : i32 to index
    %c0_42 = arith.constant 0 : index
    %c0_43 = arith.constant 0 : index
    %62 = vector.load %arg3[%61, %c0_42, %c0_43] : memref<8x2x4xf32, #tpu.memory_space<vmem>>, vector<1x2x4xf32>
    %63 = vector.shape_cast %62 : vector<1x2x4xf32> to vector<2x4xf32>
    %64 = arith.addf %60, %63 : vector<2x4xf32>
    %65 = arith.index_cast %53 : i32 to index
    %c0_44 = arith.constant 0 : index
    %66 = vector.load %arg24[%65, %c0_44] : memref<16x4xf32, #tpu.memory_space<vmem>>, vector<2x4xf32>
    tpu.vector_store %arg24[%65, %c0_44], %64 {strides = array<i32>} : memref<16x4xf32, #tpu.memory_space<vmem>>, vector<2x4xf32>,
    %67 = arith.index_cast %c2_i32_36 : i32 to index
    %c0_45 = arith.constant 0 : index
    %c0_46 = arith.constant 0 : index
    %68 = vector.load %arg4[%67, %c0_45, %c0_46] : memref<8x2x4xf32, #tpu.memory_space<vmem>>, vector<1x2x4xf32>
    %69 = vector.shape_cast %68 : vector<1x2x4xf32> to vector<2x4xf32>
    %70 = arith.index_cast %53 : i32 to index
    %c0_47 = arith.constant 0 : index
    %71 = vector.load %arg25[%70, %c0_47] : memref<16x4xf32, #tpu.memory_space<vmem>>, vector<2x4xf32>
    tpu.vector_store %arg25[%70, %c0_47], %69 {strides = array<i32>} : memref<16x4xf32, #tpu.memory_space<vmem>>, vector<2x4xf32>,
    %c3_i32 = arith.constant 3 : i32
    %c2_i32_48 = arith.constant 2 : i32
    %72 = arith.muli %c3_i32, %c2_i32_48 : i32
    %73 = tpu.assume_multiple %72, 2 : i32
    %74 = arith.index_cast %c3_i32 : i32 to index
    %c0_49 = arith.constant 0 : index
    %c0_50 = arith.constant 0 : index
    %75 = vector.load %arg1[%74, %c0_49, %c0_50] : memref<8x2x4xf32, #tpu.memory_space<vmem>>, vector<1x2x4xf32>
    %76 = vector.shape_cast %75 : vector<1x2x4xf32> to vector<2x4xf32>
    %77 = arith.index_cast %c3_i32 : i32 to index
    %c0_51 = arith.constant 0 : index
    %c0_52 = arith.constant 0 : index
    %78 = vector.load %arg2[%77, %c0_51, %c0_52] : memref<8x2x4xf32, #tpu.memory_space<vmem>>, vector<1x2x4xf32>
    %79 = vector.shape_cast %78 : vector<1x2x4xf32> to vector<2x4xf32>
    %80 = arith.mulf %76, %79 : vector<2x4xf32>
    %81 = arith.index_cast %c3_i32 : i32 to index
    %c0_53 = arith.constant 0 : index
    %c0_54 = arith.constant 0 : index
    %82 = vector.load %arg3[%81, %c0_53, %c0_54] : memref<8x2x4xf32, #tpu.memory_space<vmem>>, vector<1x2x4xf32>
    %83 = vector.shape_cast %82 : vector<1x2x4xf32> to vector<2x4xf32>
    %84 = arith.addf %80, %83 : vector<2x4xf32>
    %85 = arith.index_cast %73 : i32 to index
    %c0_55 = arith.constant 0 : index
    %86 = vector.load %arg24[%85, %c0_55] : memref<16x4xf32, #tpu.memory_space<vmem>>, vector<2x4xf32>
    tpu.vector_store %arg24[%85, %c0_55], %84 {strides = array<i32>} : memref<16x4xf32, #tpu.memory_space<vmem>>, vector<2x4xf32>,
    %87 = arith.index_cast %c3_i32 : i32 to index
    %c0_56 = arith.constant 0 : index
    %c0_57 = arith.constant 0 : index
    %88 = vector.load %arg4[%87, %c0_56, %c0_57] : memref<8x2x4xf32, #tpu.memory_space<vmem>>, vector<1x2x4xf32>
    %89 = vector.shape_cast %88 : vector<1x2x4xf32> to vector<2x4xf32>
    %90 = arith.index_cast %73 : i32 to index
    %c0_58 = arith.constant 0 : index
    %91 = vector.load %arg25[%90, %c0_58] : memref<16x4xf32, #tpu.memory_space<vmem>>, vector<2x4xf32>
    tpu.vector_store %arg25[%90, %c0_58], %89 {strides = array<i32>} : memref<16x4xf32, #tpu.memory_space<vmem>>, vector<2x4xf32>,
    %c4_i32 = arith.constant 4 : i32
    %c2_i32_59 = arith.constant 2 : i32
    %92 = arith.muli %c4_i32, %c2_i32_59 : i32
    %93 = tpu.assume_multiple %92, 2 : i32
    %94 = arith.index_cast %c4_i32 : i32 to index
    %c0_60 = arith.constant 0 : index
    %c0_61 = arith.constant 0 : index
    %95 = vector.load %arg1[%94, %c0_60, %c0_61] : memref<8x2x4xf32, #tpu.memory_space<vmem>>, vector<1x2x4xf32>
    %96 = vector.shape_cast %95 : vector<1x2x4xf32> to vector<2x4xf32>
    %97 = arith.index_cast %c4_i32 : i32 to index
    %c0_62 = arith.constant 0 : index
    %c0_63 = arith.constant 0 : index
    %98 = vector.load %arg2[%97, %c0_62, %c0_63] : memref<8x2x4xf32, #tpu.memory_space<vmem>>, vector<1x2x4xf32>
    %99 = vector.shape_cast %98 : vector<1x2x4xf32> to vector<2x4xf32>
    %100 = arith.mulf %96, %99 : vector<2x4xf32>
    %101 = arith.index_cast %c4_i32 : i32 to index
    %c0_64 = arith.constant 0 : index
    %c0_65 = arith.constant 0 : index
    %102 = vector.load %arg3[%101, %c0_64, %c0_65] : memref<8x2x4xf32, #tpu.memory_space<vmem>>, vector<1x2x4xf32>
    %103 = vector.shape_cast %102 : vector<1x2x4xf32> to vector<2x4xf32>
    %104 = arith.addf %100, %103 : vector<2x4xf32>
    %105 = arith.index_cast %93 : i32 to index
    %c0_66 = arith.constant 0 : index
    %106 = vector.load %arg24[%105, %c0_66] : memref<16x4xf32, #tpu.memory_space<vmem>>, vector<2x4xf32>
    tpu.vector_store %arg24[%105, %c0_66], %104 {strides = array<i32>} : memref<16x4xf32, #tpu.memory_space<vmem>>, vector<2x4xf32>,
    %107 = arith.index_cast %c4_i32 : i32 to index
    %c0_67 = arith.constant 0 : index
    %c0_68 = arith.constant 0 : index
    %108 = vector.load %arg4[%107, %c0_67, %c0_68] : memref<8x2x4xf32, #tpu.memory_space<vmem>>, vector<1x2x4xf32>
    %109 = vector.shape_cast %108 : vector<1x2x4xf32> to vector<2x4xf32>
    %110 = arith.index_cast %93 : i32 to index
    %c0_69 = arith.constant 0 : index
    %111 = vector.load %arg25[%110, %c0_69] : memref<16x4xf32, #tpu.memory_space<vmem>>, vector<2x4xf32>
    tpu.vector_store %arg25[%110, %c0_69], %109 {strides = array<i32>} : memref<16x4xf32, #tpu.memory_space<vmem>>, vector<2x4xf32>,
    %c5_i32 = arith.constant 5 : i32
    %c2_i32_70 = arith.constant 2 : i32
    %112 = arith.muli %c5_i32, %c2_i32_70 : i32
    %113 = tpu.assume_multiple %112, 2 : i32
    %114 = arith.index_cast %c5_i32 : i32 to index
    %c0_71 = arith.constant 0 : index
    %c0_72 = arith.constant 0 : index
    %115 = vector.load %arg1[%114, %c0_71, %c0_72] : memref<8x2x4xf32, #tpu.memory_space<vmem>>, vector<1x2x4xf32>
    %116 = vector.shape_cast %115 : vector<1x2x4xf32> to vector<2x4xf32>
    %117 = arith.index_cast %c5_i32 : i32 to index
    %c0_73 = arith.constant 0 : index
    %c0_74 = arith.constant 0 : index
    %118 = vector.load %arg2[%117, %c0_73, %c0_74] : memref<8x2x4xf32, #tpu.memory_space<vmem>>, vector<1x2x4xf32>
    %119 = vector.shape_cast %118 : vector<1x2x4xf32> to vector<2x4xf32>
    %120 = arith.mulf %116, %119 : vector<2x4xf32>
    %121 = arith.index_cast %c5_i32 : i32 to index
    %c0_75 = arith.constant 0 : index
    %c0_76 = arith.constant 0 : index
    %122 = vector.load %arg3[%121, %c0_75, %c0_76] : memref<8x2x4xf32, #tpu.memory_space<vmem>>, vector<1x2x4xf32>
    %123 = vector.shape_cast %122 : vector<1x2x4xf32> to vector<2x4xf32>
    %124 = arith.addf %120, %123 : vector<2x4xf32>
    %125 = arith.index_cast %113 : i32 to index
    %c0_77 = arith.constant 0 : index
    %126 = vector.load %arg24[%125, %c0_77] : memref<16x4xf32, #tpu.memory_space<vmem>>, vector<2x4xf32>
    tpu.vector_store %arg24[%125, %c0_77], %124 {strides = array<i32>} : memref<16x4xf32, #tpu.memory_space<vmem>>, vector<2x4xf32>,
    %127 = arith.index_cast %c5_i32 : i32 to index
    %c0_78 = arith.constant 0 : index
    %c0_79 = arith.constant 0 : index
    %128 = vector.load %arg4[%127, %c0_78, %c0_79] : memref<8x2x4xf32, #tpu.memory_space<vmem>>, vector<1x2x4xf32>
    %129 = vector.shape_cast %128 : vector<1x2x4xf32> to vector<2x4xf32>
    %130 = arith.index_cast %113 : i32 to index
    %c0_80 = arith.constant 0 : index
    %131 = vector.load %arg25[%130, %c0_80] : memref<16x4xf32, #tpu.memory_space<vmem>>, vector<2x4xf32>
    tpu.vector_store %arg25[%130, %c0_80], %129 {strides = array<i32>} : memref<16x4xf32, #tpu.memory_space<vmem>>, vector<2x4xf32>,
    %c6_i32 = arith.constant 6 : i32
    %c2_i32_81 = arith.constant 2 : i32
    %132 = arith.muli %c6_i32, %c2_i32_81 : i32
    %133 = tpu.assume_multiple %132, 2 : i32
    %134 = arith.index_cast %c6_i32 : i32 to index
    %c0_82 = arith.constant 0 : index
    %c0_83 = arith.constant 0 : index
    %135 = vector.load %arg1[%134, %c0_82, %c0_83] : memref<8x2x4xf32, #tpu.memory_space<vmem>>, vector<1x2x4xf32>
    %136 = vector.shape_cast %135 : vector<1x2x4xf32> to vector<2x4xf32>
    %137 = arith.index_cast %c6_i32 : i32 to index
    %c0_84 = arith.constant 0 : index
    %c0_85 = arith.constant 0 : index
    %138 = vector.load %arg2[%137, %c0_84, %c0_85] : memref<8x2x4xf32, #tpu.memory_space<vmem>>, vector<1x2x4xf32>
    %139 = vector.shape_cast %138 : vector<1x2x4xf32> to vector<2x4xf32>
    %140 = arith.mulf %136, %139 : vector<2x4xf32>
    %141 = arith.index_cast %c6_i32 : i32 to index
    %c0_86 = arith.constant 0 : index
    %c0_87 = arith.constant 0 : index
    %142 = vector.load %arg3[%141, %c0_86, %c0_87] : memref<8x2x4xf32, #tpu.memory_space<vmem>>, vector<1x2x4xf32>
    %143 = vector.shape_cast %142 : vector<1x2x4xf32> to vector<2x4xf32>
    %144 = arith.addf %140, %143 : vector<2x4xf32>
    %145 = arith.index_cast %133 : i32 to index
    %c0_88 = arith.constant 0 : index
    %146 = vector.load %arg24[%145, %c0_88] : memref<16x4xf32, #tpu.memory_space<vmem>>, vector<2x4xf32>
    tpu.vector_store %arg24[%145, %c0_88], %144 {strides = array<i32>} : memref<16x4xf32, #tpu.memory_space<vmem>>, vector<2x4xf32>,
    %147 = arith.index_cast %c6_i32 : i32 to index
    %c0_89 = arith.constant 0 : index
    %c0_90 = arith.constant 0 : index
    %148 = vector.load %arg4[%147, %c0_89, %c0_90] : memref<8x2x4xf32, #tpu.memory_space<vmem>>, vector<1x2x4xf32>
    %149 = vector.shape_cast %148 : vector<1x2x4xf32> to vector<2x4xf32>
    %150 = arith.index_cast %133 : i32 to index
    %c0_91 = arith.constant 0 : index
    %151 = vector.load %arg25[%150, %c0_91] : memref<16x4xf32, #tpu.memory_space<vmem>>, vector<2x4xf32>
    tpu.vector_store %arg25[%150, %c0_91], %149 {strides = array<i32>} : memref<16x4xf32, #tpu.memory_space<vmem>>, vector<2x4xf32>,
    %c7_i32 = arith.constant 7 : i32
    %c2_i32_92 = arith.constant 2 : i32
    %152 = arith.muli %c7_i32, %c2_i32_92 : i32
    %153 = tpu.assume_multiple %152, 2 : i32
    %154 = arith.index_cast %c7_i32 : i32 to index
    %c0_93 = arith.constant 0 : index
    %c0_94 = arith.constant 0 : index
    %155 = vector.load %arg1[%154, %c0_93, %c0_94] : memref<8x2x4xf32, #tpu.memory_space<vmem>>, vector<1x2x4xf32>
    %156 = vector.shape_cast %155 : vector<1x2x4xf32> to vector<2x4xf32>
    %157 = arith.index_cast %c7_i32 : i32 to index
    %c0_95 = arith.constant 0 : index
    %c0_96 = arith.constant 0 : index
    %158 = vector.load %arg2[%157, %c0_95, %c0_96] : memref<8x2x4xf32, #tpu.memory_space<vmem>>, vector<1x2x4xf32>
    %159 = vector.shape_cast %158 : vector<1x2x4xf32> to vector<2x4xf32>
    %160 = arith.mulf %156, %159 : vector<2x4xf32>
    %161 = arith.index_cast %c7_i32 : i32 to index
    %c0_97 = arith.constant 0 : index
    %c0_98 = arith.constant 0 : index
    %162 = vector.load %arg3[%161, %c0_97, %c0_98] : memref<8x2x4xf32, #tpu.memory_space<vmem>>, vector<1x2x4xf32>
    %163 = vector.shape_cast %162 : vector<1x2x4xf32> to vector<2x4xf32>
    %164 = arith.addf %160, %163 : vector<2x4xf32>
    %165 = arith.index_cast %153 : i32 to index
    %c0_99 = arith.constant 0 : index
    %166 = vector.load %arg24[%165, %c0_99] : memref<16x4xf32, #tpu.memory_space<vmem>>, vector<2x4xf32>
    tpu.vector_store %arg24[%165, %c0_99], %164 {strides = array<i32>} : memref<16x4xf32, #tpu.memory_space<vmem>>, vector<2x4xf32>,
    %167 = arith.index_cast %c7_i32 : i32 to index
    %c0_100 = arith.constant 0 : index
    %c0_101 = arith.constant 0 : index
    %168 = vector.load %arg4[%167, %c0_100, %c0_101] : memref<8x2x4xf32, #tpu.memory_space<vmem>>, vector<1x2x4xf32>
    %169 = vector.shape_cast %168 : vector<1x2x4xf32> to vector<2x4xf32>
    %170 = arith.index_cast %153 : i32 to index
    %c0_102 = arith.constant 0 : index
    %171 = vector.load %arg25[%170, %c0_102] : memref<16x4xf32, #tpu.memory_space<vmem>>, vector<2x4xf32>
    tpu.vector_store %arg25[%170, %c0_102], %169 {strides = array<i32>} : memref<16x4xf32, #tpu.memory_space<vmem>>, vector<2x4xf32>,
    %c8_i32 = arith.constant 8 : i32
    %c0_103 = arith.constant 0 : index
    %c0_104 = arith.constant 0 : index
    %172 = vector.load %arg24[%c0_103, %c0_104] : memref<16x4xf32, #tpu.memory_space<vmem>>, vector<16x4xf32>
    %c0_105 = arith.constant 0 : index
    %c0_106 = arith.constant 0 : index
    %173 = vector.load %arg25[%c0_105, %c0_106] : memref<16x4xf32, #tpu.memory_space<vmem>>, vector<16x4xf32>
    %c0_107 = arith.constant 0 : index
    %c0_108 = arith.constant 0 : index
    %174 = vector.load %arg7[%c0_107, %c0_108] : memref<4x96xf32, #tpu.memory_space<vmem>>, vector<4x96xf32>
    %cst = arith.constant dense<0.000000e+00> : vector<16x96xf32>
    %175 = tpu.matmul %172, %174, %cst {dimension_numbers = #tpu.dot_dimension_numbers<[1], [0], [0], [1], [0, 0, 1, 1], [], []>} : vector<16x4xf32>, vector<4x96xf32>, vector<16x96xf32> -> vector<16x96xf32>
    %c0_109 = arith.constant 0 : index
    %c0_110 = arith.constant 0 : index
    %176 = vector.load %arg8[%c0_109, %c0_110] : memref<1x96xf32, #tpu.memory_space<vmem>>, vector<1x96xf32>
    %177 = vector.broadcast %176 : vector<1x96xf32> to vector<16x96xf32>
    %178 = arith.addf %175, %177 : vector<16x96xf32>
    %179 = vector.extract_strided_slice %178 {offsets = [0, 0], sizes = [16, 64], strides = [1, 1]} : vector<16x96xf32> to vector<16x64xf32>
    %c0_111 = arith.constant 0 : index
    %c0_112 = arith.constant 0 : index
    %180 = vector.load %arg26[%c0_111, %c0_112] : memref<16x64xf32, #tpu.memory_space<vmem>>, vector<16x64xf32>
    tpu.vector_store %arg26[%c0_111, %c0_112], %179 {strides = array<i32>} : memref<16x64xf32, #tpu.memory_space<vmem>>, vector<16x64xf32>,
    %181 = vector.extract_strided_slice %178 {offsets = [0, 64], sizes = [16, 32], strides = [1, 1]} : vector<16x96xf32> to vector<16x32xf32>
    %c0_113 = arith.constant 0 : index
    %c0_114 = arith.constant 0 : index
    %182 = vector.load %arg27[%c0_113, %c0_114] : memref<16x32xf32, #tpu.memory_space<vmem>>, vector<16x32xf32>
    tpu.vector_store %arg27[%c0_113, %c0_114], %181 {strides = array<i32>} : memref<16x32xf32, #tpu.memory_space<vmem>>, vector<16x32xf32>,
    %c0_115 = arith.constant 0 : index
    %c0_116 = arith.constant 0 : index
    %183 = vector.load %arg5[%c0_115, %c0_116] : memref<4x32xf32, #tpu.memory_space<vmem>>, vector<4x32xf32>
    %cst_117 = arith.constant dense<0.000000e+00> : vector<16x32xf32>
    %184 = tpu.matmul %173, %183, %cst_117 {dimension_numbers = #tpu.dot_dimension_numbers<[1], [0], [0], [1], [0, 0, 1, 1], [], []>} : vector<16x4xf32>, vector<4x32xf32>, vector<16x32xf32> -> vector<16x32xf32>
    %c0_118 = arith.constant 0 : index
    %c0_119 = arith.constant 0 : index
    %185 = vector.load %arg6[%c0_118, %c0_119] : memref<1x32xf32, #tpu.memory_space<vmem>>, vector<1x32xf32>
    %186 = vector.broadcast %185 : vector<1x32xf32> to vector<16x32xf32>
    %187 = arith.addf %184, %186 : vector<16x32xf32>
    %cst_120 = arith.constant 0.000000e+00 : f32
    %188 = vector.broadcast %cst_120 : f32 to vector<16x32xf32>
    %189 = arith.maximumf %187, %188 : vector<16x32xf32>
    %cst_121 = arith.constant 0.000000e+00 : f32
    %190 = vector.broadcast %cst_121 : f32 to vector<16x32xf32>
    %191 = arith.subf %190, %189 : vector<16x32xf32>
    %192 = math.exp %191 : vector<16x32xf32>
    %c0_122 = arith.constant 0 : index
    %c0_123 = arith.constant 0 : index
    %193 = vector.load %arg28[%c0_122, %c0_123] : memref<16x32xf32, #tpu.memory_space<vmem>>, vector<16x32xf32>
    tpu.vector_store %arg28[%c0_122, %c0_123], %192 {strides = array<i32>} : memref<16x32xf32, #tpu.memory_space<vmem>>, vector<16x32xf32>,
    %c0_124 = arith.constant 0 : index
    %c0_125 = arith.constant 0 : index
    %194 = vector.load %arg15[%c0_124, %c0_125] : memref<4x32xf32, #tpu.memory_space<vmem>>, vector<4x32xf32>
    %cst_126 = arith.constant dense<0.000000e+00> : vector<16x32xf32>
    %195 = tpu.matmul %173, %194, %cst_126 {dimension_numbers = #tpu.dot_dimension_numbers<[1], [0], [0], [1], [0, 0, 1, 1], [], []>} : vector<16x4xf32>, vector<4x32xf32>, vector<16x32xf32> -> vector<16x32xf32>
    %c0_127 = arith.constant 0 : index
    %c0_128 = arith.constant 0 : index
    %196 = vector.load %arg16[%c0_127, %c0_128] : memref<1x32xf32, #tpu.memory_space<vmem>>, vector<1x32xf32>
    %197 = vector.broadcast %196 : vector<1x32xf32> to vector<16x32xf32>
    %198 = arith.addf %195, %197 : vector<16x32xf32>
    %cst_129 = arith.constant 0.000000e+00 : f32
    %199 = vector.broadcast %cst_129 : f32 to vector<16x32xf32>
    %200 = arith.maximumf %198, %199 : vector<16x32xf32>
    %cst_130 = arith.constant 0.000000e+00 : f32
    %201 = vector.broadcast %cst_130 : f32 to vector<16x32xf32>
    %202 = arith.subf %201, %200 : vector<16x32xf32>
    %203 = math.exp %202 : vector<16x32xf32>
    %c0_131 = arith.constant 0 : index
    %c0_132 = arith.constant 0 : index
    %204 = vector.load %arg29[%c0_131, %c0_132] : memref<16x32xf32, #tpu.memory_space<vmem>>, vector<16x32xf32>
    tpu.vector_store %arg29[%c0_131, %c0_132], %203 {strides = array<i32>} : memref<16x32xf32, #tpu.memory_space<vmem>>, vector<16x32xf32>,
    %cst_133 = arith.constant 0.000000e+00 : f32
    %205 = vector.broadcast %cst_133 : f32 to vector<2x32xf32>
    %c0_i32_134 = arith.constant 0 : i32
    %c2_i32_135 = arith.constant 2 : i32
    %206 = arith.muli %c0_i32_134, %c2_i32_135 : i32
    %207 = tpu.assume_multiple %206, 2 : i32
    %208 = arith.index_cast %207 : i32 to index
    %c0_136 = arith.constant 0 : index
    %209 = vector.load %arg28[%208, %c0_136] : memref<16x32xf32, #tpu.memory_space<vmem>>, vector<2x32xf32>
    %210 = arith.index_cast %207 : i32 to index
    %c0_137 = arith.constant 0 : index
    %211 = vector.load %arg26[%210, %c0_137] : memref<16x64xf32, #tpu.memory_space<vmem>>, vector<2x64xf32>
    %212 = arith.index_cast %207 : i32 to index
    %c0_138 = arith.constant 0 : index
    %213 = vector.load %arg27[%212, %c0_138] : memref<16x32xf32, #tpu.memory_space<vmem>>, vector<2x32xf32>
    %214 = arith.mulf %209, %205 : vector<2x32xf32>
    %cst_139 = arith.constant dense<0.000000e+00> : vector<2x64xf32>
    %215 = tpu.matmul %214, %0, %cst_139 {dimension_numbers = #tpu.dot_dimension_numbers<[1], [0], [0], [1], [0, 0, 1, 1], [], []>} : vector<2x32xf32>, vector<32x64xf32>, vector<2x64xf32> -> vector<2x64xf32>
    %216 = arith.addf %215, %211 : vector<2x64xf32>
    %217 = arith.negf %216 : vector<2x64xf32>
    %218 = math.exp %217 : vector<2x64xf32>
    %cst_140 = arith.constant 1.000000e+00 : f32
    %219 = vector.broadcast %cst_140 : f32 to vector<2x64xf32>
    %220 = arith.addf %219, %218 : vector<2x64xf32>
    %221 = arith.divf %219, %220 : vector<2x64xf32>
    %222 = vector.extract_strided_slice %221 {offsets = [0, 0], sizes = [2, 32], strides = [1, 1]} : vector<2x64xf32> to vector<2x32xf32>
    %223 = vector.extract_strided_slice %221 {offsets = [0, 32], sizes = [2, 32], strides = [1, 1]} : vector<2x64xf32> to vector<2x32xf32>
    %224 = arith.mulf %222, %214 : vector<2x32xf32>
    %cst_141 = arith.constant dense<0.000000e+00> : vector<2x32xf32>
    %225 = tpu.matmul %224, %1, %cst_141 {dimension_numbers = #tpu.dot_dimension_numbers<[1], [0], [0], [1], [0, 0, 1, 1], [], []>} : vector<2x32xf32>, vector<32x32xf32>, vector<2x32xf32> -> vector<2x32xf32>
    %226 = arith.addf %225, %213 : vector<2x32xf32>
    %227 = math.tanh %226 : vector<2x32xf32>
    %cst_142 = arith.constant 1.000000e+00 : f32
    %228 = vector.broadcast %cst_142 : f32 to vector<2x32xf32>
    %229 = arith.subf %228, %223 : vector<2x32xf32>
    %230 = arith.mulf %229, %214 : vector<2x32xf32>
    %231 = arith.mulf %223, %227 : vector<2x32xf32>
    %232 = arith.addf %230, %231 : vector<2x32xf32>
    %c1_i32_143 = arith.constant 1 : i32
    %c2_i32_144 = arith.constant 2 : i32
    %233 = arith.muli %c1_i32_143, %c2_i32_144 : i32
    %234 = tpu.assume_multiple %233, 2 : i32
    %235 = arith.index_cast %234 : i32 to index
    %c0_145 = arith.constant 0 : index
    %236 = vector.load %arg28[%235, %c0_145] : memref<16x32xf32, #tpu.memory_space<vmem>>, vector<2x32xf32>
    %237 = arith.index_cast %234 : i32 to index
    %c0_146 = arith.constant 0 : index
    %238 = vector.load %arg26[%237, %c0_146] : memref<16x64xf32, #tpu.memory_space<vmem>>, vector<2x64xf32>
    %239 = arith.index_cast %234 : i32 to index
    %c0_147 = arith.constant 0 : index
    %240 = vector.load %arg27[%239, %c0_147] : memref<16x32xf32, #tpu.memory_space<vmem>>, vector<2x32xf32>
    %241 = arith.mulf %236, %232 : vector<2x32xf32>
    %cst_148 = arith.constant dense<0.000000e+00> : vector<2x64xf32>
    %242 = tpu.matmul %241, %0, %cst_148 {dimension_numbers = #tpu.dot_dimension_numbers<[1], [0], [0], [1], [0, 0, 1, 1], [], []>} : vector<2x32xf32>, vector<32x64xf32>, vector<2x64xf32> -> vector<2x64xf32>
    %243 = arith.addf %242, %238 : vector<2x64xf32>
    %244 = arith.negf %243 : vector<2x64xf32>
    %245 = math.exp %244 : vector<2x64xf32>
    %cst_149 = arith.constant 1.000000e+00 : f32
    %246 = vector.broadcast %cst_149 : f32 to vector<2x64xf32>
    %247 = arith.addf %246, %245 : vector<2x64xf32>
    %248 = arith.divf %246, %247 : vector<2x64xf32>
    %249 = vector.extract_strided_slice %248 {offsets = [0, 0], sizes = [2, 32], strides = [1, 1]} : vector<2x64xf32> to vector<2x32xf32>
    %250 = vector.extract_strided_slice %248 {offsets = [0, 32], sizes = [2, 32], strides = [1, 1]} : vector<2x64xf32> to vector<2x32xf32>
    %251 = arith.mulf %249, %241 : vector<2x32xf32>
    %cst_150 = arith.constant dense<0.000000e+00> : vector<2x32xf32>
    %252 = tpu.matmul %251, %1, %cst_150 {dimension_numbers = #tpu.dot_dimension_numbers<[1], [0], [0], [1], [0, 0, 1, 1], [], []>} : vector<2x32xf32>, vector<32x32xf32>, vector<2x32xf32> -> vector<2x32xf32>
    %253 = arith.addf %252, %240 : vector<2x32xf32>
    %254 = math.tanh %253 : vector<2x32xf32>
    %cst_151 = arith.constant 1.000000e+00 : f32
    %255 = vector.broadcast %cst_151 : f32 to vector<2x32xf32>
    %256 = arith.subf %255, %250 : vector<2x32xf32>
    %257 = arith.mulf %256, %241 : vector<2x32xf32>
    %258 = arith.mulf %250, %254 : vector<2x32xf32>
    %259 = arith.addf %257, %258 : vector<2x32xf32>
    %c2_i32_152 = arith.constant 2 : i32
    %c2_i32_153 = arith.constant 2 : i32
    %260 = arith.muli %c2_i32_152, %c2_i32_153 : i32
    %261 = tpu.assume_multiple %260, 2 : i32
    %262 = arith.index_cast %261 : i32 to index
    %c0_154 = arith.constant 0 : index
    %263 = vector.load %arg28[%262, %c0_154] : memref<16x32xf32, #tpu.memory_space<vmem>>, vector<2x32xf32>
    %264 = arith.index_cast %261 : i32 to index
    %c0_155 = arith.constant 0 : index
    %265 = vector.load %arg26[%264, %c0_155] : memref<16x64xf32, #tpu.memory_space<vmem>>, vector<2x64xf32>
    %266 = arith.index_cast %261 : i32 to index
    %c0_156 = arith.constant 0 : index
    %267 = vector.load %arg27[%266, %c0_156] : memref<16x32xf32, #tpu.memory_space<vmem>>, vector<2x32xf32>
    %268 = arith.mulf %263, %259 : vector<2x32xf32>
    %cst_157 = arith.constant dense<0.000000e+00> : vector<2x64xf32>
    %269 = tpu.matmul %268, %0, %cst_157 {dimension_numbers = #tpu.dot_dimension_numbers<[1], [0], [0], [1], [0, 0, 1, 1], [], []>} : vector<2x32xf32>, vector<32x64xf32>, vector<2x64xf32> -> vector<2x64xf32>
    %270 = arith.addf %269, %265 : vector<2x64xf32>
    %271 = arith.negf %270 : vector<2x64xf32>
    %272 = math.exp %271 : vector<2x64xf32>
    %cst_158 = arith.constant 1.000000e+00 : f32
    %273 = vector.broadcast %cst_158 : f32 to vector<2x64xf32>
    %274 = arith.addf %273, %272 : vector<2x64xf32>
    %275 = arith.divf %273, %274 : vector<2x64xf32>
    %276 = vector.extract_strided_slice %275 {offsets = [0, 0], sizes = [2, 32], strides = [1, 1]} : vector<2x64xf32> to vector<2x32xf32>
    %277 = vector.extract_strided_slice %275 {offsets = [0, 32], sizes = [2, 32], strides = [1, 1]} : vector<2x64xf32> to vector<2x32xf32>
    %278 = arith.mulf %276, %268 : vector<2x32xf32>
    %cst_159 = arith.constant dense<0.000000e+00> : vector<2x32xf32>
    %279 = tpu.matmul %278, %1, %cst_159 {dimension_numbers = #tpu.dot_dimension_numbers<[1], [0], [0], [1], [0, 0, 1, 1], [], []>} : vector<2x32xf32>, vector<32x32xf32>, vector<2x32xf32> -> vector<2x32xf32>
    %280 = arith.addf %279, %267 : vector<2x32xf32>
    %281 = math.tanh %280 : vector<2x32xf32>
    %cst_160 = arith.constant 1.000000e+00 : f32
    %282 = vector.broadcast %cst_160 : f32 to vector<2x32xf32>
    %283 = arith.subf %282, %277 : vector<2x32xf32>
    %284 = arith.mulf %283, %268 : vector<2x32xf32>
    %285 = arith.mulf %277, %281 : vector<2x32xf32>
    %286 = arith.addf %284, %285 : vector<2x32xf32>
    %c3_i32_161 = arith.constant 3 : i32
    %c2_i32_162 = arith.constant 2 : i32
    %287 = arith.muli %c3_i32_161, %c2_i32_162 : i32
    %288 = tpu.assume_multiple %287, 2 : i32
    %289 = arith.index_cast %288 : i32 to index
    %c0_163 = arith.constant 0 : index
    %290 = vector.load %arg28[%289, %c0_163] : memref<16x32xf32, #tpu.memory_space<vmem>>, vector<2x32xf32>
    %291 = arith.index_cast %288 : i32 to index
    %c0_164 = arith.constant 0 : index
    %292 = vector.load %arg26[%291, %c0_164] : memref<16x64xf32, #tpu.memory_space<vmem>>, vector<2x64xf32>
    %293 = arith.index_cast %288 : i32 to index
    %c0_165 = arith.constant 0 : index
    %294 = vector.load %arg27[%293, %c0_165] : memref<16x32xf32, #tpu.memory_space<vmem>>, vector<2x32xf32>
    %295 = arith.mulf %290, %286 : vector<2x32xf32>
    %cst_166 = arith.constant dense<0.000000e+00> : vector<2x64xf32>
    %296 = tpu.matmul %295, %0, %cst_166 {dimension_numbers = #tpu.dot_dimension_numbers<[1], [0], [0], [1], [0, 0, 1, 1], [], []>} : vector<2x32xf32>, vector<32x64xf32>, vector<2x64xf32> -> vector<2x64xf32>
    %297 = arith.addf %296, %292 : vector<2x64xf32>
    %298 = arith.negf %297 : vector<2x64xf32>
    %299 = math.exp %298 : vector<2x64xf32>
    %cst_167 = arith.constant 1.000000e+00 : f32
    %300 = vector.broadcast %cst_167 : f32 to vector<2x64xf32>
    %301 = arith.addf %300, %299 : vector<2x64xf32>
    %302 = arith.divf %300, %301 : vector<2x64xf32>
    %303 = vector.extract_strided_slice %302 {offsets = [0, 0], sizes = [2, 32], strides = [1, 1]} : vector<2x64xf32> to vector<2x32xf32>
    %304 = vector.extract_strided_slice %302 {offsets = [0, 32], sizes = [2, 32], strides = [1, 1]} : vector<2x64xf32> to vector<2x32xf32>
    %305 = arith.mulf %303, %295 : vector<2x32xf32>
    %cst_168 = arith.constant dense<0.000000e+00> : vector<2x32xf32>
    %306 = tpu.matmul %305, %1, %cst_168 {dimension_numbers = #tpu.dot_dimension_numbers<[1], [0], [0], [1], [0, 0, 1, 1], [], []>} : vector<2x32xf32>, vector<32x32xf32>, vector<2x32xf32> -> vector<2x32xf32>
    %307 = arith.addf %306, %294 : vector<2x32xf32>
    %308 = math.tanh %307 : vector<2x32xf32>
    %cst_169 = arith.constant 1.000000e+00 : f32
    %309 = vector.broadcast %cst_169 : f32 to vector<2x32xf32>
    %310 = arith.subf %309, %304 : vector<2x32xf32>
    %311 = arith.mulf %310, %295 : vector<2x32xf32>
    %312 = arith.mulf %304, %308 : vector<2x32xf32>
    %313 = arith.addf %311, %312 : vector<2x32xf32>
    %c4_i32_170 = arith.constant 4 : i32
    %c2_i32_171 = arith.constant 2 : i32
    %314 = arith.muli %c4_i32_170, %c2_i32_171 : i32
    %315 = tpu.assume_multiple %314, 2 : i32
    %316 = arith.index_cast %315 : i32 to index
    %c0_172 = arith.constant 0 : index
    %317 = vector.load %arg28[%316, %c0_172] : memref<16x32xf32, #tpu.memory_space<vmem>>, vector<2x32xf32>
    %318 = arith.index_cast %315 : i32 to index
    %c0_173 = arith.constant 0 : index
    %319 = vector.load %arg26[%318, %c0_173] : memref<16x64xf32, #tpu.memory_space<vmem>>, vector<2x64xf32>
    %320 = arith.index_cast %315 : i32 to index
    %c0_174 = arith.constant 0 : index
    %321 = vector.load %arg27[%320, %c0_174] : memref<16x32xf32, #tpu.memory_space<vmem>>, vector<2x32xf32>
    %322 = arith.mulf %317, %313 : vector<2x32xf32>
    %cst_175 = arith.constant dense<0.000000e+00> : vector<2x64xf32>
    %323 = tpu.matmul %322, %0, %cst_175 {dimension_numbers = #tpu.dot_dimension_numbers<[1], [0], [0], [1], [0, 0, 1, 1], [], []>} : vector<2x32xf32>, vector<32x64xf32>, vector<2x64xf32> -> vector<2x64xf32>
    %324 = arith.addf %323, %319 : vector<2x64xf32>
    %325 = arith.negf %324 : vector<2x64xf32>
    %326 = math.exp %325 : vector<2x64xf32>
    %cst_176 = arith.constant 1.000000e+00 : f32
    %327 = vector.broadcast %cst_176 : f32 to vector<2x64xf32>
    %328 = arith.addf %327, %326 : vector<2x64xf32>
    %329 = arith.divf %327, %328 : vector<2x64xf32>
    %330 = vector.extract_strided_slice %329 {offsets = [0, 0], sizes = [2, 32], strides = [1, 1]} : vector<2x64xf32> to vector<2x32xf32>
    %331 = vector.extract_strided_slice %329 {offsets = [0, 32], sizes = [2, 32], strides = [1, 1]} : vector<2x64xf32> to vector<2x32xf32>
    %332 = arith.mulf %330, %322 : vector<2x32xf32>
    %cst_177 = arith.constant dense<0.000000e+00> : vector<2x32xf32>
    %333 = tpu.matmul %332, %1, %cst_177 {dimension_numbers = #tpu.dot_dimension_numbers<[1], [0], [0], [1], [0, 0, 1, 1], [], []>} : vector<2x32xf32>, vector<32x32xf32>, vector<2x32xf32> -> vector<2x32xf32>
    %334 = arith.addf %333, %321 : vector<2x32xf32>
    %335 = math.tanh %334 : vector<2x32xf32>
    %cst_178 = arith.constant 1.000000e+00 : f32
    %336 = vector.broadcast %cst_178 : f32 to vector<2x32xf32>
    %337 = arith.subf %336, %331 : vector<2x32xf32>
    %338 = arith.mulf %337, %322 : vector<2x32xf32>
    %339 = arith.mulf %331, %335 : vector<2x32xf32>
    %340 = arith.addf %338, %339 : vector<2x32xf32>
    %c5_i32_179 = arith.constant 5 : i32
    %c2_i32_180 = arith.constant 2 : i32
    %341 = arith.muli %c5_i32_179, %c2_i32_180 : i32
    %342 = tpu.assume_multiple %341, 2 : i32
    %343 = arith.index_cast %342 : i32 to index
    %c0_181 = arith.constant 0 : index
    %344 = vector.load %arg28[%343, %c0_181] : memref<16x32xf32, #tpu.memory_space<vmem>>, vector<2x32xf32>
    %345 = arith.index_cast %342 : i32 to index
    %c0_182 = arith.constant 0 : index
    %346 = vector.load %arg26[%345, %c0_182] : memref<16x64xf32, #tpu.memory_space<vmem>>, vector<2x64xf32>
    %347 = arith.index_cast %342 : i32 to index
    %c0_183 = arith.constant 0 : index
    %348 = vector.load %arg27[%347, %c0_183] : memref<16x32xf32, #tpu.memory_space<vmem>>, vector<2x32xf32>
    %349 = arith.mulf %344, %340 : vector<2x32xf32>
    %cst_184 = arith.constant dense<0.000000e+00> : vector<2x64xf32>
    %350 = tpu.matmul %349, %0, %cst_184 {dimension_numbers = #tpu.dot_dimension_numbers<[1], [0], [0], [1], [0, 0, 1, 1], [], []>} : vector<2x32xf32>, vector<32x64xf32>, vector<2x64xf32> -> vector<2x64xf32>
    %351 = arith.addf %350, %346 : vector<2x64xf32>
    %352 = arith.negf %351 : vector<2x64xf32>
    %353 = math.exp %352 : vector<2x64xf32>
    %cst_185 = arith.constant 1.000000e+00 : f32
    %354 = vector.broadcast %cst_185 : f32 to vector<2x64xf32>
    %355 = arith.addf %354, %353 : vector<2x64xf32>
    %356 = arith.divf %354, %355 : vector<2x64xf32>
    %357 = vector.extract_strided_slice %356 {offsets = [0, 0], sizes = [2, 32], strides = [1, 1]} : vector<2x64xf32> to vector<2x32xf32>
    %358 = vector.extract_strided_slice %356 {offsets = [0, 32], sizes = [2, 32], strides = [1, 1]} : vector<2x64xf32> to vector<2x32xf32>
    %359 = arith.mulf %357, %349 : vector<2x32xf32>
    %cst_186 = arith.constant dense<0.000000e+00> : vector<2x32xf32>
    %360 = tpu.matmul %359, %1, %cst_186 {dimension_numbers = #tpu.dot_dimension_numbers<[1], [0], [0], [1], [0, 0, 1, 1], [], []>} : vector<2x32xf32>, vector<32x32xf32>, vector<2x32xf32> -> vector<2x32xf32>
    %361 = arith.addf %360, %348 : vector<2x32xf32>
    %362 = math.tanh %361 : vector<2x32xf32>
    %cst_187 = arith.constant 1.000000e+00 : f32
    %363 = vector.broadcast %cst_187 : f32 to vector<2x32xf32>
    %364 = arith.subf %363, %358 : vector<2x32xf32>
    %365 = arith.mulf %364, %349 : vector<2x32xf32>
    %366 = arith.mulf %358, %362 : vector<2x32xf32>
    %367 = arith.addf %365, %366 : vector<2x32xf32>
    %c6_i32_188 = arith.constant 6 : i32
    %c2_i32_189 = arith.constant 2 : i32
    %368 = arith.muli %c6_i32_188, %c2_i32_189 : i32
    %369 = tpu.assume_multiple %368, 2 : i32
    %370 = arith.index_cast %369 : i32 to index
    %c0_190 = arith.constant 0 : index
    %371 = vector.load %arg28[%370, %c0_190] : memref<16x32xf32, #tpu.memory_space<vmem>>, vector<2x32xf32>
    %372 = arith.index_cast %369 : i32 to index
    %c0_191 = arith.constant 0 : index
    %373 = vector.load %arg26[%372, %c0_191] : memref<16x64xf32, #tpu.memory_space<vmem>>, vector<2x64xf32>
    %374 = arith.index_cast %369 : i32 to index
    %c0_192 = arith.constant 0 : index
    %375 = vector.load %arg27[%374, %c0_192] : memref<16x32xf32, #tpu.memory_space<vmem>>, vector<2x32xf32>
    %376 = arith.mulf %371, %367 : vector<2x32xf32>
    %cst_193 = arith.constant dense<0.000000e+00> : vector<2x64xf32>
    %377 = tpu.matmul %376, %0, %cst_193 {dimension_numbers = #tpu.dot_dimension_numbers<[1], [0], [0], [1], [0, 0, 1, 1], [], []>} : vector<2x32xf32>, vector<32x64xf32>, vector<2x64xf32> -> vector<2x64xf32>
    %378 = arith.addf %377, %373 : vector<2x64xf32>
    %379 = arith.negf %378 : vector<2x64xf32>
    %380 = math.exp %379 : vector<2x64xf32>
    %cst_194 = arith.constant 1.000000e+00 : f32
    %381 = vector.broadcast %cst_194 : f32 to vector<2x64xf32>
    %382 = arith.addf %381, %380 : vector<2x64xf32>
    %383 = arith.divf %381, %382 : vector<2x64xf32>
    %384 = vector.extract_strided_slice %383 {offsets = [0, 0], sizes = [2, 32], strides = [1, 1]} : vector<2x64xf32> to vector<2x32xf32>
    %385 = vector.extract_strided_slice %383 {offsets = [0, 32], sizes = [2, 32], strides = [1, 1]} : vector<2x64xf32> to vector<2x32xf32>
    %386 = arith.mulf %384, %376 : vector<2x32xf32>
    %cst_195 = arith.constant dense<0.000000e+00> : vector<2x32xf32>
    %387 = tpu.matmul %386, %1, %cst_195 {dimension_numbers = #tpu.dot_dimension_numbers<[1], [0], [0], [1], [0, 0, 1, 1], [], []>} : vector<2x32xf32>, vector<32x32xf32>, vector<2x32xf32> -> vector<2x32xf32>
    %388 = arith.addf %387, %375 : vector<2x32xf32>
    %389 = math.tanh %388 : vector<2x32xf32>
    %cst_196 = arith.constant 1.000000e+00 : f32
    %390 = vector.broadcast %cst_196 : f32 to vector<2x32xf32>
    %391 = arith.subf %390, %385 : vector<2x32xf32>
    %392 = arith.mulf %391, %376 : vector<2x32xf32>
    %393 = arith.mulf %385, %389 : vector<2x32xf32>
    %394 = arith.addf %392, %393 : vector<2x32xf32>
    %c7_i32_197 = arith.constant 7 : i32
    %c2_i32_198 = arith.constant 2 : i32
    %395 = arith.muli %c7_i32_197, %c2_i32_198 : i32
    %396 = tpu.assume_multiple %395, 2 : i32
    %397 = arith.index_cast %396 : i32 to index
    %c0_199 = arith.constant 0 : index
    %398 = vector.load %arg28[%397, %c0_199] : memref<16x32xf32, #tpu.memory_space<vmem>>, vector<2x32xf32>
    %399 = arith.index_cast %396 : i32 to index
    %c0_200 = arith.constant 0 : index
    %400 = vector.load %arg26[%399, %c0_200] : memref<16x64xf32, #tpu.memory_space<vmem>>, vector<2x64xf32>
    %401 = arith.index_cast %396 : i32 to index
    %c0_201 = arith.constant 0 : index
    %402 = vector.load %arg27[%401, %c0_201] : memref<16x32xf32, #tpu.memory_space<vmem>>, vector<2x32xf32>
    %403 = arith.mulf %398, %394 : vector<2x32xf32>
    %cst_202 = arith.constant dense<0.000000e+00> : vector<2x64xf32>
    %404 = tpu.matmul %403, %0, %cst_202 {dimension_numbers = #tpu.dot_dimension_numbers<[1], [0], [0], [1], [0, 0, 1, 1], [], []>} : vector<2x32xf32>, vector<32x64xf32>, vector<2x64xf32> -> vector<2x64xf32>
    %405 = arith.addf %404, %400 : vector<2x64xf32>
    %406 = arith.negf %405 : vector<2x64xf32>
    %407 = math.exp %406 : vector<2x64xf32>
    %cst_203 = arith.constant 1.000000e+00 : f32
    %408 = vector.broadcast %cst_203 : f32 to vector<2x64xf32>
    %409 = arith.addf %408, %407 : vector<2x64xf32>
    %410 = arith.divf %408, %409 : vector<2x64xf32>
    %411 = vector.extract_strided_slice %410 {offsets = [0, 0], sizes = [2, 32], strides = [1, 1]} : vector<2x64xf32> to vector<2x32xf32>
    %412 = vector.extract_strided_slice %410 {offsets = [0, 32], sizes = [2, 32], strides = [1, 1]} : vector<2x64xf32> to vector<2x32xf32>
    %413 = arith.mulf %411, %403 : vector<2x32xf32>
    %cst_204 = arith.constant dense<0.000000e+00> : vector<2x32xf32>
    %414 = tpu.matmul %413, %1, %cst_204 {dimension_numbers = #tpu.dot_dimension_numbers<[1], [0], [0], [1], [0, 0, 1, 1], [], []>} : vector<2x32xf32>, vector<32x32xf32>, vector<2x32xf32> -> vector<2x32xf32>
    %415 = arith.addf %414, %402 : vector<2x32xf32>
    %416 = math.tanh %415 : vector<2x32xf32>
    %cst_205 = arith.constant 1.000000e+00 : f32
    %417 = vector.broadcast %cst_205 : f32 to vector<2x32xf32>
    %418 = arith.subf %417, %412 : vector<2x32xf32>
    %419 = arith.mulf %418, %403 : vector<2x32xf32>
    %420 = arith.mulf %412, %416 : vector<2x32xf32>
    %421 = arith.addf %419, %420 : vector<2x32xf32>
    %c8_i32_206 = arith.constant 8 : i32
    %c0_207 = arith.constant 0 : index
    %c0_208 = arith.constant 0 : index
    %422 = vector.load %arg11[%c0_207, %c0_208] : memref<32x32xf32, #tpu.memory_space<vmem>>, vector<32x32xf32>
    %cst_209 = arith.constant dense<0.000000e+00> : vector<2x32xf32>
    %423 = tpu.matmul %421, %422, %cst_209 {dimension_numbers = #tpu.dot_dimension_numbers<[1], [0], [0], [1], [0, 0, 1, 1], [], []>} : vector<2x32xf32>, vector<32x32xf32>, vector<2x32xf32> -> vector<2x32xf32>
    %c0_210 = arith.constant 0 : index
    %c0_211 = arith.constant 0 : index
    %424 = vector.load %arg12[%c0_210, %c0_211] : memref<1x32xf32, #tpu.memory_space<vmem>>, vector<1x32xf32>
    %425 = vector.broadcast %424 : vector<1x32xf32> to vector<2x32xf32>
    %426 = arith.addf %423, %425 : vector<2x32xf32>
    %c0_212 = arith.constant 0 : index
    %c0_213 = arith.constant 0 : index
    %427 = vector.load %arg13[%c0_212, %c0_213] : memref<32x4xf32, #tpu.memory_space<vmem>>, vector<32x4xf32>
    %cst_214 = arith.constant dense<0.000000e+00> : vector<2x4xf32>
    %428 = tpu.matmul %426, %427, %cst_214 {dimension_numbers = #tpu.dot_dimension_numbers<[1], [0], [0], [1], [0, 0, 1, 1], [], []>} : vector<2x32xf32>, vector<32x4xf32>, vector<2x4xf32> -> vector<2x4xf32>
    %c0_215 = arith.constant 0 : index
    %c0_216 = arith.constant 0 : index
    %429 = vector.load %arg14[%c0_215, %c0_216] : memref<1x4xf32, #tpu.memory_space<vmem>>, vector<1x4xf32>
    %430 = vector.broadcast %429 : vector<1x4xf32> to vector<2x4xf32>
    %431 = arith.addf %428, %430 : vector<2x4xf32>
    %cst_217 = arith.constant 0.000000e+00 : f32
    %432 = vector.broadcast %cst_217 : f32 to vector<2x32xf32>
    %c0_i32_218 = arith.constant 0 : i32
    %c2_i32_219 = arith.constant 2 : i32
    %433 = arith.muli %c0_i32_218, %c2_i32_219 : i32
    %434 = tpu.assume_multiple %433, 2 : i32
    %cst_220 = arith.constant dense<0.000000e+00> : vector<2x96xf32>
    %435 = tpu.matmul %431, %4, %cst_220 {dimension_numbers = #tpu.dot_dimension_numbers<[1], [0], [0], [1], [0, 0, 1, 1], [], []>} : vector<2x4xf32>, vector<4x96xf32>, vector<2x96xf32> -> vector<2x96xf32>
    %436 = arith.addf %435, %8 : vector<2x96xf32>
    %437 = arith.index_cast %434 : i32 to index
    %c0_221 = arith.constant 0 : index
    %438 = vector.load %arg29[%437, %c0_221] : memref<16x32xf32, #tpu.memory_space<vmem>>, vector<2x32xf32>
    %439 = vector.extract_strided_slice %436 {offsets = [0, 0], sizes = [2, 64], strides = [1, 1]} : vector<2x96xf32> to vector<2x64xf32>
    %440 = vector.extract_strided_slice %436 {offsets = [0, 64], sizes = [2, 32], strides = [1, 1]} : vector<2x96xf32> to vector<2x32xf32>
    %441 = arith.mulf %438, %432 : vector<2x32xf32>
    %cst_222 = arith.constant dense<0.000000e+00> : vector<2x64xf32>
    %442 = tpu.matmul %441, %2, %cst_222 {dimension_numbers = #tpu.dot_dimension_numbers<[1], [0], [0], [1], [0, 0, 1, 1], [], []>} : vector<2x32xf32>, vector<32x64xf32>, vector<2x64xf32> -> vector<2x64xf32>
    %443 = arith.addf %442, %439 : vector<2x64xf32>
    %444 = arith.negf %443 : vector<2x64xf32>
    %445 = math.exp %444 : vector<2x64xf32>
    %cst_223 = arith.constant 1.000000e+00 : f32
    %446 = vector.broadcast %cst_223 : f32 to vector<2x64xf32>
    %447 = arith.addf %446, %445 : vector<2x64xf32>
    %448 = arith.divf %446, %447 : vector<2x64xf32>
    %449 = vector.extract_strided_slice %448 {offsets = [0, 0], sizes = [2, 32], strides = [1, 1]} : vector<2x64xf32> to vector<2x32xf32>
    %450 = vector.extract_strided_slice %448 {offsets = [0, 32], sizes = [2, 32], strides = [1, 1]} : vector<2x64xf32> to vector<2x32xf32>
    %451 = arith.mulf %449, %441 : vector<2x32xf32>
    %cst_224 = arith.constant dense<0.000000e+00> : vector<2x32xf32>
    %452 = tpu.matmul %451, %3, %cst_224 {dimension_numbers = #tpu.dot_dimension_numbers<[1], [0], [0], [1], [0, 0, 1, 1], [], []>} : vector<2x32xf32>, vector<32x32xf32>, vector<2x32xf32> -> vector<2x32xf32>
    %453 = arith.addf %452, %440 : vector<2x32xf32>
    %454 = math.tanh %453 : vector<2x32xf32>
    %cst_225 = arith.constant 1.000000e+00 : f32
    %455 = vector.broadcast %cst_225 : f32 to vector<2x32xf32>
    %456 = arith.subf %455, %450 : vector<2x32xf32>
    %457 = arith.mulf %456, %441 : vector<2x32xf32>
    %458 = arith.mulf %450, %454 : vector<2x32xf32>
    %459 = arith.addf %457, %458 : vector<2x32xf32>
    %cst_226 = arith.constant dense<0.000000e+00> : vector<2x4xf32>
    %460 = tpu.matmul %459, %5, %cst_226 {dimension_numbers = #tpu.dot_dimension_numbers<[1], [0], [0], [1], [0, 0, 1, 1], [], []>} : vector<2x32xf32>, vector<32x4xf32>, vector<2x4xf32> -> vector<2x4xf32>
    %461 = arith.addf %460, %11 : vector<2x4xf32>
    %462 = math.tanh %461 : vector<2x4xf32>
    %463 = arith.index_cast %c0_i32_218 : i32 to index
    %c0_227 = arith.constant 0 : index
    %c0_228 = arith.constant 0 : index
    %464 = vector.load %arg23[%463, %c0_227, %c0_228] : memref<8x2x4xf32, #tpu.memory_space<vmem>>, vector<1x2x4xf32>
    %465 = vector.shape_cast %464 : vector<1x2x4xf32> to vector<2x4xf32>
    %466 = vector.shape_cast %462 : vector<2x4xf32> to vector<1x2x4xf32>
    tpu.vector_store %arg23[%463, %c0_227, %c0_228], %466 {strides = array<i32>} : memref<8x2x4xf32, #tpu.memory_space<vmem>>, vector<1x2x4xf32>,
    %c1_i32_229 = arith.constant 1 : i32
    %c2_i32_230 = arith.constant 2 : i32
    %467 = arith.muli %c1_i32_229, %c2_i32_230 : i32
    %468 = tpu.assume_multiple %467, 2 : i32
    %cst_231 = arith.constant dense<0.000000e+00> : vector<2x96xf32>
    %469 = tpu.matmul %462, %4, %cst_231 {dimension_numbers = #tpu.dot_dimension_numbers<[1], [0], [0], [1], [0, 0, 1, 1], [], []>} : vector<2x4xf32>, vector<4x96xf32>, vector<2x96xf32> -> vector<2x96xf32>
    %470 = arith.addf %469, %8 : vector<2x96xf32>
    %471 = arith.index_cast %468 : i32 to index
    %c0_232 = arith.constant 0 : index
    %472 = vector.load %arg29[%471, %c0_232] : memref<16x32xf32, #tpu.memory_space<vmem>>, vector<2x32xf32>
    %473 = vector.extract_strided_slice %470 {offsets = [0, 0], sizes = [2, 64], strides = [1, 1]} : vector<2x96xf32> to vector<2x64xf32>
    %474 = vector.extract_strided_slice %470 {offsets = [0, 64], sizes = [2, 32], strides = [1, 1]} : vector<2x96xf32> to vector<2x32xf32>
    %475 = arith.mulf %472, %459 : vector<2x32xf32>
    %cst_233 = arith.constant dense<0.000000e+00> : vector<2x64xf32>
    %476 = tpu.matmul %475, %2, %cst_233 {dimension_numbers = #tpu.dot_dimension_numbers<[1], [0], [0], [1], [0, 0, 1, 1], [], []>} : vector<2x32xf32>, vector<32x64xf32>, vector<2x64xf32> -> vector<2x64xf32>
    %477 = arith.addf %476, %473 : vector<2x64xf32>
    %478 = arith.negf %477 : vector<2x64xf32>
    %479 = math.exp %478 : vector<2x64xf32>
    %cst_234 = arith.constant 1.000000e+00 : f32
    %480 = vector.broadcast %cst_234 : f32 to vector<2x64xf32>
    %481 = arith.addf %480, %479 : vector<2x64xf32>
    %482 = arith.divf %480, %481 : vector<2x64xf32>
    %483 = vector.extract_strided_slice %482 {offsets = [0, 0], sizes = [2, 32], strides = [1, 1]} : vector<2x64xf32> to vector<2x32xf32>
    %484 = vector.extract_strided_slice %482 {offsets = [0, 32], sizes = [2, 32], strides = [1, 1]} : vector<2x64xf32> to vector<2x32xf32>
    %485 = arith.mulf %483, %475 : vector<2x32xf32>
    %cst_235 = arith.constant dense<0.000000e+00> : vector<2x32xf32>
    %486 = tpu.matmul %485, %3, %cst_235 {dimension_numbers = #tpu.dot_dimension_numbers<[1], [0], [0], [1], [0, 0, 1, 1], [], []>} : vector<2x32xf32>, vector<32x32xf32>, vector<2x32xf32> -> vector<2x32xf32>
    %487 = arith.addf %486, %474 : vector<2x32xf32>
    %488 = math.tanh %487 : vector<2x32xf32>
    %cst_236 = arith.constant 1.000000e+00 : f32
    %489 = vector.broadcast %cst_236 : f32 to vector<2x32xf32>
    %490 = arith.subf %489, %484 : vector<2x32xf32>
    %491 = arith.mulf %490, %475 : vector<2x32xf32>
    %492 = arith.mulf %484, %488 : vector<2x32xf32>
    %493 = arith.addf %491, %492 : vector<2x32xf32>
    %cst_237 = arith.constant dense<0.000000e+00> : vector<2x4xf32>
    %494 = tpu.matmul %493, %5, %cst_237 {dimension_numbers = #tpu.dot_dimension_numbers<[1], [0], [0], [1], [0, 0, 1, 1], [], []>} : vector<2x32xf32>, vector<32x4xf32>, vector<2x4xf32> -> vector<2x4xf32>
    %495 = arith.addf %494, %11 : vector<2x4xf32>
    %496 = math.tanh %495 : vector<2x4xf32>
    %497 = arith.index_cast %c1_i32_229 : i32 to index
    %c0_238 = arith.constant 0 : index
    %c0_239 = arith.constant 0 : index
    %498 = vector.load %arg23[%497, %c0_238, %c0_239] : memref<8x2x4xf32, #tpu.memory_space<vmem>>, vector<1x2x4xf32>
    %499 = vector.shape_cast %498 : vector<1x2x4xf32> to vector<2x4xf32>
    %500 = vector.shape_cast %496 : vector<2x4xf32> to vector<1x2x4xf32>
    tpu.vector_store %arg23[%497, %c0_238, %c0_239], %500 {strides = array<i32>} : memref<8x2x4xf32, #tpu.memory_space<vmem>>, vector<1x2x4xf32>,
    %c2_i32_240 = arith.constant 2 : i32
    %c2_i32_241 = arith.constant 2 : i32
    %501 = arith.muli %c2_i32_240, %c2_i32_241 : i32
    %502 = tpu.assume_multiple %501, 2 : i32
    %cst_242 = arith.constant dense<0.000000e+00> : vector<2x96xf32>
    %503 = tpu.matmul %496, %4, %cst_242 {dimension_numbers = #tpu.dot_dimension_numbers<[1], [0], [0], [1], [0, 0, 1, 1], [], []>} : vector<2x4xf32>, vector<4x96xf32>, vector<2x96xf32> -> vector<2x96xf32>
    %504 = arith.addf %503, %8 : vector<2x96xf32>
    %505 = arith.index_cast %502 : i32 to index
    %c0_243 = arith.constant 0 : index
    %506 = vector.load %arg29[%505, %c0_243] : memref<16x32xf32, #tpu.memory_space<vmem>>, vector<2x32xf32>
    %507 = vector.extract_strided_slice %504 {offsets = [0, 0], sizes = [2, 64], strides = [1, 1]} : vector<2x96xf32> to vector<2x64xf32>
    %508 = vector.extract_strided_slice %504 {offsets = [0, 64], sizes = [2, 32], strides = [1, 1]} : vector<2x96xf32> to vector<2x32xf32>
    %509 = arith.mulf %506, %493 : vector<2x32xf32>
    %cst_244 = arith.constant dense<0.000000e+00> : vector<2x64xf32>
    %510 = tpu.matmul %509, %2, %cst_244 {dimension_numbers = #tpu.dot_dimension_numbers<[1], [0], [0], [1], [0, 0, 1, 1], [], []>} : vector<2x32xf32>, vector<32x64xf32>, vector<2x64xf32> -> vector<2x64xf32>
    %511 = arith.addf %510, %507 : vector<2x64xf32>
    %512 = arith.negf %511 : vector<2x64xf32>
    %513 = math.exp %512 : vector<2x64xf32>
    %cst_245 = arith.constant 1.000000e+00 : f32
    %514 = vector.broadcast %cst_245 : f32 to vector<2x64xf32>
    %515 = arith.addf %514, %513 : vector<2x64xf32>
    %516 = arith.divf %514, %515 : vector<2x64xf32>
    %517 = vector.extract_strided_slice %516 {offsets = [0, 0], sizes = [2, 32], strides = [1, 1]} : vector<2x64xf32> to vector<2x32xf32>
    %518 = vector.extract_strided_slice %516 {offsets = [0, 32], sizes = [2, 32], strides = [1, 1]} : vector<2x64xf32> to vector<2x32xf32>
    %519 = arith.mulf %517, %509 : vector<2x32xf32>
    %cst_246 = arith.constant dense<0.000000e+00> : vector<2x32xf32>
    %520 = tpu.matmul %519, %3, %cst_246 {dimension_numbers = #tpu.dot_dimension_numbers<[1], [0], [0], [1], [0, 0, 1, 1], [], []>} : vector<2x32xf32>, vector<32x32xf32>, vector<2x32xf32> -> vector<2x32xf32>
    %521 = arith.addf %520, %508 : vector<2x32xf32>
    %522 = math.tanh %521 : vector<2x32xf32>
    %cst_247 = arith.constant 1.000000e+00 : f32
    %523 = vector.broadcast %cst_247 : f32 to vector<2x32xf32>
    %524 = arith.subf %523, %518 : vector<2x32xf32>
    %525 = arith.mulf %524, %509 : vector<2x32xf32>
    %526 = arith.mulf %518, %522 : vector<2x32xf32>
    %527 = arith.addf %525, %526 : vector<2x32xf32>
    %cst_248 = arith.constant dense<0.000000e+00> : vector<2x4xf32>
    %528 = tpu.matmul %527, %5, %cst_248 {dimension_numbers = #tpu.dot_dimension_numbers<[1], [0], [0], [1], [0, 0, 1, 1], [], []>} : vector<2x32xf32>, vector<32x4xf32>, vector<2x4xf32> -> vector<2x4xf32>
    %529 = arith.addf %528, %11 : vector<2x4xf32>
    %530 = math.tanh %529 : vector<2x4xf32>
    %531 = arith.index_cast %c2_i32_240 : i32 to index
    %c0_249 = arith.constant 0 : index
    %c0_250 = arith.constant 0 : index
    %532 = vector.load %arg23[%531, %c0_249, %c0_250] : memref<8x2x4xf32, #tpu.memory_space<vmem>>, vector<1x2x4xf32>
    %533 = vector.shape_cast %532 : vector<1x2x4xf32> to vector<2x4xf32>
    %534 = vector.shape_cast %530 : vector<2x4xf32> to vector<1x2x4xf32>
    tpu.vector_store %arg23[%531, %c0_249, %c0_250], %534 {strides = array<i32>} : memref<8x2x4xf32, #tpu.memory_space<vmem>>, vector<1x2x4xf32>,
    %c3_i32_251 = arith.constant 3 : i32
    %c2_i32_252 = arith.constant 2 : i32
    %535 = arith.muli %c3_i32_251, %c2_i32_252 : i32
    %536 = tpu.assume_multiple %535, 2 : i32
    %cst_253 = arith.constant dense<0.000000e+00> : vector<2x96xf32>
    %537 = tpu.matmul %530, %4, %cst_253 {dimension_numbers = #tpu.dot_dimension_numbers<[1], [0], [0], [1], [0, 0, 1, 1], [], []>} : vector<2x4xf32>, vector<4x96xf32>, vector<2x96xf32> -> vector<2x96xf32>
    %538 = arith.addf %537, %8 : vector<2x96xf32>
    %539 = arith.index_cast %536 : i32 to index
    %c0_254 = arith.constant 0 : index
    %540 = vector.load %arg29[%539, %c0_254] : memref<16x32xf32, #tpu.memory_space<vmem>>, vector<2x32xf32>
    %541 = vector.extract_strided_slice %538 {offsets = [0, 0], sizes = [2, 64], strides = [1, 1]} : vector<2x96xf32> to vector<2x64xf32>
    %542 = vector.extract_strided_slice %538 {offsets = [0, 64], sizes = [2, 32], strides = [1, 1]} : vector<2x96xf32> to vector<2x32xf32>
    %543 = arith.mulf %540, %527 : vector<2x32xf32>
    %cst_255 = arith.constant dense<0.000000e+00> : vector<2x64xf32>
    %544 = tpu.matmul %543, %2, %cst_255 {dimension_numbers = #tpu.dot_dimension_numbers<[1], [0], [0], [1], [0, 0, 1, 1], [], []>} : vector<2x32xf32>, vector<32x64xf32>, vector<2x64xf32> -> vector<2x64xf32>
    %545 = arith.addf %544, %541 : vector<2x64xf32>
    %546 = arith.negf %545 : vector<2x64xf32>
    %547 = math.exp %546 : vector<2x64xf32>
    %cst_256 = arith.constant 1.000000e+00 : f32
    %548 = vector.broadcast %cst_256 : f32 to vector<2x64xf32>
    %549 = arith.addf %548, %547 : vector<2x64xf32>
    %550 = arith.divf %548, %549 : vector<2x64xf32>
    %551 = vector.extract_strided_slice %550 {offsets = [0, 0], sizes = [2, 32], strides = [1, 1]} : vector<2x64xf32> to vector<2x32xf32>
    %552 = vector.extract_strided_slice %550 {offsets = [0, 32], sizes = [2, 32], strides = [1, 1]} : vector<2x64xf32> to vector<2x32xf32>
    %553 = arith.mulf %551, %543 : vector<2x32xf32>
    %cst_257 = arith.constant dense<0.000000e+00> : vector<2x32xf32>
    %554 = tpu.matmul %553, %3, %cst_257 {dimension_numbers = #tpu.dot_dimension_numbers<[1], [0], [0], [1], [0, 0, 1, 1], [], []>} : vector<2x32xf32>, vector<32x32xf32>, vector<2x32xf32> -> vector<2x32xf32>
    %555 = arith.addf %554, %542 : vector<2x32xf32>
    %556 = math.tanh %555 : vector<2x32xf32>
    %cst_258 = arith.constant 1.000000e+00 : f32
    %557 = vector.broadcast %cst_258 : f32 to vector<2x32xf32>
    %558 = arith.subf %557, %552 : vector<2x32xf32>
    %559 = arith.mulf %558, %543 : vector<2x32xf32>
    %560 = arith.mulf %552, %556 : vector<2x32xf32>
    %561 = arith.addf %559, %560 : vector<2x32xf32>
    %cst_259 = arith.constant dense<0.000000e+00> : vector<2x4xf32>
    %562 = tpu.matmul %561, %5, %cst_259 {dimension_numbers = #tpu.dot_dimension_numbers<[1], [0], [0], [1], [0, 0, 1, 1], [], []>} : vector<2x32xf32>, vector<32x4xf32>, vector<2x4xf32> -> vector<2x4xf32>
    %563 = arith.addf %562, %11 : vector<2x4xf32>
    %564 = math.tanh %563 : vector<2x4xf32>
    %565 = arith.index_cast %c3_i32_251 : i32 to index
    %c0_260 = arith.constant 0 : index
    %c0_261 = arith.constant 0 : index
    %566 = vector.load %arg23[%565, %c0_260, %c0_261] : memref<8x2x4xf32, #tpu.memory_space<vmem>>, vector<1x2x4xf32>
    %567 = vector.shape_cast %566 : vector<1x2x4xf32> to vector<2x4xf32>
    %568 = vector.shape_cast %564 : vector<2x4xf32> to vector<1x2x4xf32>
    tpu.vector_store %arg23[%565, %c0_260, %c0_261], %568 {strides = array<i32>} : memref<8x2x4xf32, #tpu.memory_space<vmem>>, vector<1x2x4xf32>,
    %c4_i32_262 = arith.constant 4 : i32
    %c2_i32_263 = arith.constant 2 : i32
    %569 = arith.muli %c4_i32_262, %c2_i32_263 : i32
    %570 = tpu.assume_multiple %569, 2 : i32
    %cst_264 = arith.constant dense<0.000000e+00> : vector<2x96xf32>
    %571 = tpu.matmul %564, %4, %cst_264 {dimension_numbers = #tpu.dot_dimension_numbers<[1], [0], [0], [1], [0, 0, 1, 1], [], []>} : vector<2x4xf32>, vector<4x96xf32>, vector<2x96xf32> -> vector<2x96xf32>
    %572 = arith.addf %571, %8 : vector<2x96xf32>
    %573 = arith.index_cast %570 : i32 to index
    %c0_265 = arith.constant 0 : index
    %574 = vector.load %arg29[%573, %c0_265] : memref<16x32xf32, #tpu.memory_space<vmem>>, vector<2x32xf32>
    %575 = vector.extract_strided_slice %572 {offsets = [0, 0], sizes = [2, 64], strides = [1, 1]} : vector<2x96xf32> to vector<2x64xf32>
    %576 = vector.extract_strided_slice %572 {offsets = [0, 64], sizes = [2, 32], strides = [1, 1]} : vector<2x96xf32> to vector<2x32xf32>
    %577 = arith.mulf %574, %561 : vector<2x32xf32>
    %cst_266 = arith.constant dense<0.000000e+00> : vector<2x64xf32>
    %578 = tpu.matmul %577, %2, %cst_266 {dimension_numbers = #tpu.dot_dimension_numbers<[1], [0], [0], [1], [0, 0, 1, 1], [], []>} : vector<2x32xf32>, vector<32x64xf32>, vector<2x64xf32> -> vector<2x64xf32>
    %579 = arith.addf %578, %575 : vector<2x64xf32>
    %580 = arith.negf %579 : vector<2x64xf32>
    %581 = math.exp %580 : vector<2x64xf32>
    %cst_267 = arith.constant 1.000000e+00 : f32
    %582 = vector.broadcast %cst_267 : f32 to vector<2x64xf32>
    %583 = arith.addf %582, %581 : vector<2x64xf32>
    %584 = arith.divf %582, %583 : vector<2x64xf32>
    %585 = vector.extract_strided_slice %584 {offsets = [0, 0], sizes = [2, 32], strides = [1, 1]} : vector<2x64xf32> to vector<2x32xf32>
    %586 = vector.extract_strided_slice %584 {offsets = [0, 32], sizes = [2, 32], strides = [1, 1]} : vector<2x64xf32> to vector<2x32xf32>
    %587 = arith.mulf %585, %577 : vector<2x32xf32>
    %cst_268 = arith.constant dense<0.000000e+00> : vector<2x32xf32>
    %588 = tpu.matmul %587, %3, %cst_268 {dimension_numbers = #tpu.dot_dimension_numbers<[1], [0], [0], [1], [0, 0, 1, 1], [], []>} : vector<2x32xf32>, vector<32x32xf32>, vector<2x32xf32> -> vector<2x32xf32>
    %589 = arith.addf %588, %576 : vector<2x32xf32>
    %590 = math.tanh %589 : vector<2x32xf32>
    %cst_269 = arith.constant 1.000000e+00 : f32
    %591 = vector.broadcast %cst_269 : f32 to vector<2x32xf32>
    %592 = arith.subf %591, %586 : vector<2x32xf32>
    %593 = arith.mulf %592, %577 : vector<2x32xf32>
    %594 = arith.mulf %586, %590 : vector<2x32xf32>
    %595 = arith.addf %593, %594 : vector<2x32xf32>
    %cst_270 = arith.constant dense<0.000000e+00> : vector<2x4xf32>
    %596 = tpu.matmul %595, %5, %cst_270 {dimension_numbers = #tpu.dot_dimension_numbers<[1], [0], [0], [1], [0, 0, 1, 1], [], []>} : vector<2x32xf32>, vector<32x4xf32>, vector<2x4xf32> -> vector<2x4xf32>
    %597 = arith.addf %596, %11 : vector<2x4xf32>
    %598 = math.tanh %597 : vector<2x4xf32>
    %599 = arith.index_cast %c4_i32_262 : i32 to index
    %c0_271 = arith.constant 0 : index
    %c0_272 = arith.constant 0 : index
    %600 = vector.load %arg23[%599, %c0_271, %c0_272] : memref<8x2x4xf32, #tpu.memory_space<vmem>>, vector<1x2x4xf32>
    %601 = vector.shape_cast %600 : vector<1x2x4xf32> to vector<2x4xf32>
    %602 = vector.shape_cast %598 : vector<2x4xf32> to vector<1x2x4xf32>
    tpu.vector_store %arg23[%599, %c0_271, %c0_272], %602 {strides = array<i32>} : memref<8x2x4xf32, #tpu.memory_space<vmem>>, vector<1x2x4xf32>,
    %c5_i32_273 = arith.constant 5 : i32
    %c2_i32_274 = arith.constant 2 : i32
    %603 = arith.muli %c5_i32_273, %c2_i32_274 : i32
    %604 = tpu.assume_multiple %603, 2 : i32
    %cst_275 = arith.constant dense<0.000000e+00> : vector<2x96xf32>
    %605 = tpu.matmul %598, %4, %cst_275 {dimension_numbers = #tpu.dot_dimension_numbers<[1], [0], [0], [1], [0, 0, 1, 1], [], []>} : vector<2x4xf32>, vector<4x96xf32>, vector<2x96xf32> -> vector<2x96xf32>
    %606 = arith.addf %605, %8 : vector<2x96xf32>
    %607 = arith.index_cast %604 : i32 to index
    %c0_276 = arith.constant 0 : index
    %608 = vector.load %arg29[%607, %c0_276] : memref<16x32xf32, #tpu.memory_space<vmem>>, vector<2x32xf32>
    %609 = vector.extract_strided_slice %606 {offsets = [0, 0], sizes = [2, 64], strides = [1, 1]} : vector<2x96xf32> to vector<2x64xf32>
    %610 = vector.extract_strided_slice %606 {offsets = [0, 64], sizes = [2, 32], strides = [1, 1]} : vector<2x96xf32> to vector<2x32xf32>
    %611 = arith.mulf %608, %595 : vector<2x32xf32>
    %cst_277 = arith.constant dense<0.000000e+00> : vector<2x64xf32>
    %612 = tpu.matmul %611, %2, %cst_277 {dimension_numbers = #tpu.dot_dimension_numbers<[1], [0], [0], [1], [0, 0, 1, 1], [], []>} : vector<2x32xf32>, vector<32x64xf32>, vector<2x64xf32> -> vector<2x64xf32>
    %613 = arith.addf %612, %609 : vector<2x64xf32>
    %614 = arith.negf %613 : vector<2x64xf32>
    %615 = math.exp %614 : vector<2x64xf32>
    %cst_278 = arith.constant 1.000000e+00 : f32
    %616 = vector.broadcast %cst_278 : f32 to vector<2x64xf32>
    %617 = arith.addf %616, %615 : vector<2x64xf32>
    %618 = arith.divf %616, %617 : vector<2x64xf32>
    %619 = vector.extract_strided_slice %618 {offsets = [0, 0], sizes = [2, 32], strides = [1, 1]} : vector<2x64xf32> to vector<2x32xf32>
    %620 = vector.extract_strided_slice %618 {offsets = [0, 32], sizes = [2, 32], strides = [1, 1]} : vector<2x64xf32> to vector<2x32xf32>
    %621 = arith.mulf %619, %611 : vector<2x32xf32>
    %cst_279 = arith.constant dense<0.000000e+00> : vector<2x32xf32>
    %622 = tpu.matmul %621, %3, %cst_279 {dimension_numbers = #tpu.dot_dimension_numbers<[1], [0], [0], [1], [0, 0, 1, 1], [], []>} : vector<2x32xf32>, vector<32x32xf32>, vector<2x32xf32> -> vector<2x32xf32>
    %623 = arith.addf %622, %610 : vector<2x32xf32>
    %624 = math.tanh %623 : vector<2x32xf32>
    %cst_280 = arith.constant 1.000000e+00 : f32
    %625 = vector.broadcast %cst_280 : f32 to vector<2x32xf32>
    %626 = arith.subf %625, %620 : vector<2x32xf32>
    %627 = arith.mulf %626, %611 : vector<2x32xf32>
    %628 = arith.mulf %620, %624 : vector<2x32xf32>
    %629 = arith.addf %627, %628 : vector<2x32xf32>
    %cst_281 = arith.constant dense<0.000000e+00> : vector<2x4xf32>
    %630 = tpu.matmul %629, %5, %cst_281 {dimension_numbers = #tpu.dot_dimension_numbers<[1], [0], [0], [1], [0, 0, 1, 1], [], []>} : vector<2x32xf32>, vector<32x4xf32>, vector<2x4xf32> -> vector<2x4xf32>
    %631 = arith.addf %630, %11 : vector<2x4xf32>
    %632 = math.tanh %631 : vector<2x4xf32>
    %633 = arith.index_cast %c5_i32_273 : i32 to index
    %c0_282 = arith.constant 0 : index
    %c0_283 = arith.constant 0 : index
    %634 = vector.load %arg23[%633, %c0_282, %c0_283] : memref<8x2x4xf32, #tpu.memory_space<vmem>>, vector<1x2x4xf32>
    %635 = vector.shape_cast %634 : vector<1x2x4xf32> to vector<2x4xf32>
    %636 = vector.shape_cast %632 : vector<2x4xf32> to vector<1x2x4xf32>
    tpu.vector_store %arg23[%633, %c0_282, %c0_283], %636 {strides = array<i32>} : memref<8x2x4xf32, #tpu.memory_space<vmem>>, vector<1x2x4xf32>,
    %c6_i32_284 = arith.constant 6 : i32
    %c2_i32_285 = arith.constant 2 : i32
    %637 = arith.muli %c6_i32_284, %c2_i32_285 : i32
    %638 = tpu.assume_multiple %637, 2 : i32
    %cst_286 = arith.constant dense<0.000000e+00> : vector<2x96xf32>
    %639 = tpu.matmul %632, %4, %cst_286 {dimension_numbers = #tpu.dot_dimension_numbers<[1], [0], [0], [1], [0, 0, 1, 1], [], []>} : vector<2x4xf32>, vector<4x96xf32>, vector<2x96xf32> -> vector<2x96xf32>
    %640 = arith.addf %639, %8 : vector<2x96xf32>
    %641 = arith.index_cast %638 : i32 to index
    %c0_287 = arith.constant 0 : index
    %642 = vector.load %arg29[%641, %c0_287] : memref<16x32xf32, #tpu.memory_space<vmem>>, vector<2x32xf32>
    %643 = vector.extract_strided_slice %640 {offsets = [0, 0], sizes = [2, 64], strides = [1, 1]} : vector<2x96xf32> to vector<2x64xf32>
    %644 = vector.extract_strided_slice %640 {offsets = [0, 64], sizes = [2, 32], strides = [1, 1]} : vector<2x96xf32> to vector<2x32xf32>
    %645 = arith.mulf %642, %629 : vector<2x32xf32>
    %cst_288 = arith.constant dense<0.000000e+00> : vector<2x64xf32>
    %646 = tpu.matmul %645, %2, %cst_288 {dimension_numbers = #tpu.dot_dimension_numbers<[1], [0], [0], [1], [0, 0, 1, 1], [], []>} : vector<2x32xf32>, vector<32x64xf32>, vector<2x64xf32> -> vector<2x64xf32>
    %647 = arith.addf %646, %643 : vector<2x64xf32>
    %648 = arith.negf %647 : vector<2x64xf32>
    %649 = math.exp %648 : vector<2x64xf32>
    %cst_289 = arith.constant 1.000000e+00 : f32
    %650 = vector.broadcast %cst_289 : f32 to vector<2x64xf32>
    %651 = arith.addf %650, %649 : vector<2x64xf32>
    %652 = arith.divf %650, %651 : vector<2x64xf32>
    %653 = vector.extract_strided_slice %652 {offsets = [0, 0], sizes = [2, 32], strides = [1, 1]} : vector<2x64xf32> to vector<2x32xf32>
    %654 = vector.extract_strided_slice %652 {offsets = [0, 32], sizes = [2, 32], strides = [1, 1]} : vector<2x64xf32> to vector<2x32xf32>
    %655 = arith.mulf %653, %645 : vector<2x32xf32>
    %cst_290 = arith.constant dense<0.000000e+00> : vector<2x32xf32>
    %656 = tpu.matmul %655, %3, %cst_290 {dimension_numbers = #tpu.dot_dimension_numbers<[1], [0], [0], [1], [0, 0, 1, 1], [], []>} : vector<2x32xf32>, vector<32x32xf32>, vector<2x32xf32> -> vector<2x32xf32>
    %657 = arith.addf %656, %644 : vector<2x32xf32>
    %658 = math.tanh %657 : vector<2x32xf32>
    %cst_291 = arith.constant 1.000000e+00 : f32
    %659 = vector.broadcast %cst_291 : f32 to vector<2x32xf32>
    %660 = arith.subf %659, %654 : vector<2x32xf32>
    %661 = arith.mulf %660, %645 : vector<2x32xf32>
    %662 = arith.mulf %654, %658 : vector<2x32xf32>
    %663 = arith.addf %661, %662 : vector<2x32xf32>
    %cst_292 = arith.constant dense<0.000000e+00> : vector<2x4xf32>
    %664 = tpu.matmul %663, %5, %cst_292 {dimension_numbers = #tpu.dot_dimension_numbers<[1], [0], [0], [1], [0, 0, 1, 1], [], []>} : vector<2x32xf32>, vector<32x4xf32>, vector<2x4xf32> -> vector<2x4xf32>
    %665 = arith.addf %664, %11 : vector<2x4xf32>
    %666 = math.tanh %665 : vector<2x4xf32>
    %667 = arith.index_cast %c6_i32_284 : i32 to index
    %c0_293 = arith.constant 0 : index
    %c0_294 = arith.constant 0 : index
    %668 = vector.load %arg23[%667, %c0_293, %c0_294] : memref<8x2x4xf32, #tpu.memory_space<vmem>>, vector<1x2x4xf32>
    %669 = vector.shape_cast %668 : vector<1x2x4xf32> to vector<2x4xf32>
    %670 = vector.shape_cast %666 : vector<2x4xf32> to vector<1x2x4xf32>
    tpu.vector_store %arg23[%667, %c0_293, %c0_294], %670 {strides = array<i32>} : memref<8x2x4xf32, #tpu.memory_space<vmem>>, vector<1x2x4xf32>,
    %c7_i32_295 = arith.constant 7 : i32
    %c2_i32_296 = arith.constant 2 : i32
    %671 = arith.muli %c7_i32_295, %c2_i32_296 : i32
    %672 = tpu.assume_multiple %671, 2 : i32
    %cst_297 = arith.constant dense<0.000000e+00> : vector<2x96xf32>
    %673 = tpu.matmul %666, %4, %cst_297 {dimension_numbers = #tpu.dot_dimension_numbers<[1], [0], [0], [1], [0, 0, 1, 1], [], []>} : vector<2x4xf32>, vector<4x96xf32>, vector<2x96xf32> -> vector<2x96xf32>
    %674 = arith.addf %673, %8 : vector<2x96xf32>
    %675 = arith.index_cast %672 : i32 to index
    %c0_298 = arith.constant 0 : index
    %676 = vector.load %arg29[%675, %c0_298] : memref<16x32xf32, #tpu.memory_space<vmem>>, vector<2x32xf32>
    %677 = vector.extract_strided_slice %674 {offsets = [0, 0], sizes = [2, 64], strides = [1, 1]} : vector<2x96xf32> to vector<2x64xf32>
    %678 = vector.extract_strided_slice %674 {offsets = [0, 64], sizes = [2, 32], strides = [1, 1]} : vector<2x96xf32> to vector<2x32xf32>
    %679 = arith.mulf %676, %663 : vector<2x32xf32>
    %cst_299 = arith.constant dense<0.000000e+00> : vector<2x64xf32>
    %680 = tpu.matmul %679, %2, %cst_299 {dimension_numbers = #tpu.dot_dimension_numbers<[1], [0], [0], [1], [0, 0, 1, 1], [], []>} : vector<2x32xf32>, vector<32x64xf32>, vector<2x64xf32> -> vector<2x64xf32>
    %681 = arith.addf %680, %677 : vector<2x64xf32>
    %682 = arith.negf %681 : vector<2x64xf32>
    %683 = math.exp %682 : vector<2x64xf32>
    %cst_300 = arith.constant 1.000000e+00 : f32
    %684 = vector.broadcast %cst_300 : f32 to vector<2x64xf32>
    %685 = arith.addf %684, %683 : vector<2x64xf32>
    %686 = arith.divf %684, %685 : vector<2x64xf32>
    %687 = vector.extract_strided_slice %686 {offsets = [0, 0], sizes = [2, 32], strides = [1, 1]} : vector<2x64xf32> to vector<2x32xf32>
    %688 = vector.extract_strided_slice %686 {offsets = [0, 32], sizes = [2, 32], strides = [1, 1]} : vector<2x64xf32> to vector<2x32xf32>
    %689 = arith.mulf %687, %679 : vector<2x32xf32>
    %cst_301 = arith.constant dense<0.000000e+00> : vector<2x32xf32>
    %690 = tpu.matmul %689, %3, %cst_301 {dimension_numbers = #tpu.dot_dimension_numbers<[1], [0], [0], [1], [0, 0, 1, 1], [], []>} : vector<2x32xf32>, vector<32x32xf32>, vector<2x32xf32> -> vector<2x32xf32>
    %691 = arith.addf %690, %678 : vector<2x32xf32>
    %692 = math.tanh %691 : vector<2x32xf32>
    %cst_302 = arith.constant 1.000000e+00 : f32
    %693 = vector.broadcast %cst_302 : f32 to vector<2x32xf32>
    %694 = arith.subf %693, %688 : vector<2x32xf32>
    %695 = arith.mulf %694, %679 : vector<2x32xf32>
    %696 = arith.mulf %688, %692 : vector<2x32xf32>
    %697 = arith.addf %695, %696 : vector<2x32xf32>
    %cst_303 = arith.constant dense<0.000000e+00> : vector<2x4xf32>
    %698 = tpu.matmul %697, %5, %cst_303 {dimension_numbers = #tpu.dot_dimension_numbers<[1], [0], [0], [1], [0, 0, 1, 1], [], []>} : vector<2x32xf32>, vector<32x4xf32>, vector<2x4xf32> -> vector<2x4xf32>
    %699 = arith.addf %698, %11 : vector<2x4xf32>
    %700 = math.tanh %699 : vector<2x4xf32>
    %701 = arith.index_cast %c7_i32_295 : i32 to index
    %c0_304 = arith.constant 0 : index
    %c0_305 = arith.constant 0 : index
    %702 = vector.load %arg23[%701, %c0_304, %c0_305] : memref<8x2x4xf32, #tpu.memory_space<vmem>>, vector<1x2x4xf32>
    %703 = vector.shape_cast %702 : vector<1x2x4xf32> to vector<2x4xf32>
    %704 = vector.shape_cast %700 : vector<2x4xf32> to vector<1x2x4xf32>
    tpu.vector_store %arg23[%701, %c0_304, %c0_305], %704 {strides = array<i32>} : memref<8x2x4xf32, #tpu.memory_space<vmem>>, vector<1x2x4xf32>,
    %c8_i32_306 = arith.constant 8 : i32
    return
  }
  func.func @transform_0(%arg0: i32) -> (i32, i32, i32) {
    %c0_i32 = arith.constant 0 : i32
    %c0_i32_0 = arith.constant 0 : i32
    %c0_i32_1 = arith.constant 0 : i32
    return %c0_i32, %arg0, %c0_i32_0 : i32, i32, i32
  }
  func.func @transform_1(%arg0: i32) -> (i32, i32, i32) {
    %c0_i32 = arith.constant 0 : i32
    %c0_i32_0 = arith.constant 0 : i32
    %c0_i32_1 = arith.constant 0 : i32
    return %c0_i32, %arg0, %c0_i32_0 : i32, i32, i32
  }
  func.func @transform_2(%arg0: i32) -> (i32, i32, i32) {
    %c0_i32 = arith.constant 0 : i32
    %c0_i32_0 = arith.constant 0 : i32
    %c0_i32_1 = arith.constant 0 : i32
    return %c0_i32, %arg0, %c0_i32_0 : i32, i32, i32
  }
  func.func @transform_3(%arg0: i32) -> (i32, i32, i32) {
    %c0_i32 = arith.constant 0 : i32
    %c0_i32_0 = arith.constant 0 : i32
    %c0_i32_1 = arith.constant 0 : i32
    return %c0_i32, %arg0, %c0_i32_0 : i32, i32, i32
  }
  func.func @transform_4(%arg0: i32) -> (i32, i32) {
    %c0_i32 = arith.constant 0 : i32
    %c0_i32_0 = arith.constant 0 : i32
    %c0_i32_1 = arith.constant 0 : i32
    return %c0_i32, %c0_i32_0 : i32, i32
  }
  func.func @transform_5(%arg0: i32) -> (i32, i32) {
    %c0_i32 = arith.constant 0 : i32
    %c0_i32_0 = arith.constant 0 : i32
    %c0_i32_1 = arith.constant 0 : i32
    return %c0_i32, %c0_i32_0 : i32, i32
  }
  func.func @transform_6(%arg0: i32) -> (i32, i32) {
    %c0_i32 = arith.constant 0 : i32
    %c0_i32_0 = arith.constant 0 : i32
    %c0_i32_1 = arith.constant 0 : i32
    return %c0_i32, %c0_i32_0 : i32, i32
  }
  func.func @transform_7(%arg0: i32) -> (i32, i32) {
    %c0_i32 = arith.constant 0 : i32
    %c0_i32_0 = arith.constant 0 : i32
    %c0_i32_1 = arith.constant 0 : i32
    return %c0_i32, %c0_i32_0 : i32, i32
  }
  func.func @transform_8(%arg0: i32) -> (i32, i32) {
    %c0_i32 = arith.constant 0 : i32
    %c0_i32_0 = arith.constant 0 : i32
    %c0_i32_1 = arith.constant 0 : i32
    return %c0_i32, %c0_i32_0 : i32, i32
  }
  func.func @transform_9(%arg0: i32) -> (i32, i32) {
    %c0_i32 = arith.constant 0 : i32
    %c0_i32_0 = arith.constant 0 : i32
    %c0_i32_1 = arith.constant 0 : i32
    return %c0_i32, %c0_i32_0 : i32, i32
  }
  func.func @transform_10(%arg0: i32) -> (i32, i32) {
    %c0_i32 = arith.constant 0 : i32
    %c0_i32_0 = arith.constant 0 : i32
    %c0_i32_1 = arith.constant 0 : i32
    return %c0_i32, %c0_i32_0 : i32, i32
  }
  func.func @transform_11(%arg0: i32) -> (i32, i32) {
    %c0_i32 = arith.constant 0 : i32
    %c0_i32_0 = arith.constant 0 : i32
    %c0_i32_1 = arith.constant 0 : i32
    return %c0_i32, %c0_i32_0 : i32, i32
  }
  func.func @transform_12(%arg0: i32) -> (i32, i32) {
    %c0_i32 = arith.constant 0 : i32
    %c0_i32_0 = arith.constant 0 : i32
    %c0_i32_1 = arith.constant 0 : i32
    return %c0_i32, %c0_i32_0 : i32, i32
  }
  func.func @transform_13(%arg0: i32) -> (i32, i32) {
    %c0_i32 = arith.constant 0 : i32
    %c0_i32_0 = arith.constant 0 : i32
    %c0_i32_1 = arith.constant 0 : i32
    return %c0_i32, %c0_i32_0 : i32, i32
  }
  func.func @transform_14(%arg0: i32) -> (i32, i32) {
    %c0_i32 = arith.constant 0 : i32
    %c0_i32_0 = arith.constant 0 : i32
    %c0_i32_1 = arith.constant 0 : i32
    return %c0_i32, %c0_i32_0 : i32, i32
  }
  func.func @transform_15(%arg0: i32) -> (i32, i32) {
    %c0_i32 = arith.constant 0 : i32
    %c0_i32_0 = arith.constant 0 : i32
    %c0_i32_1 = arith.constant 0 : i32
    return %c0_i32, %c0_i32_0 : i32, i32
  }
  func.func @transform_16(%arg0: i32) -> (i32, i32) {
    %c0_i32 = arith.constant 0 : i32
    %c0_i32_0 = arith.constant 0 : i32
    %c0_i32_1 = arith.constant 0 : i32
    return %c0_i32, %c0_i32_0 : i32, i32
  }
  func.func @transform_17(%arg0: i32) -> (i32, i32) {
    %c0_i32 = arith.constant 0 : i32
    %c0_i32_0 = arith.constant 0 : i32
    %c0_i32_1 = arith.constant 0 : i32
    return %c0_i32, %c0_i32_0 : i32, i32
  }
  func.func @transform_18(%arg0: i32) -> (i32, i32) {
    %c0_i32 = arith.constant 0 : i32
    %c0_i32_0 = arith.constant 0 : i32
    %c0_i32_1 = arith.constant 0 : i32
    return %c0_i32, %c0_i32_0 : i32, i32
  }
  func.func @transform_19(%arg0: i32) -> (i32, i32) {
    %c0_i32 = arith.constant 0 : i32
    %c0_i32_0 = arith.constant 0 : i32
    %c0_i32_1 = arith.constant 0 : i32
    return %c0_i32, %c0_i32_0 : i32, i32
  }
  func.func @transform_20(%arg0: i32) -> (i32, i32) {
    %c0_i32 = arith.constant 0 : i32
    %c0_i32_0 = arith.constant 0 : i32
    %c0_i32_1 = arith.constant 0 : i32
    return %c0_i32, %c0_i32_0 : i32, i32
  }
  func.func @transform_21(%arg0: i32) -> (i32, i32) {
    %c0_i32 = arith.constant 0 : i32
    %c0_i32_0 = arith.constant 0 : i32
    %c0_i32_1 = arith.constant 0 : i32
    return %c0_i32, %c0_i32_0 : i32, i32
  }
  func.func @transform_22(%arg0: i32) -> (i32, i32, i32) {
    %c0_i32 = arith.constant 0 : i32
    %c0_i32_0 = arith.constant 0 : i32
    %c0_i32_1 = arith.constant 0 : i32
    return %c0_i32, %arg0, %c0_i32_0 : i32, i32, i32
  }
}

</mosaic_0001>

<llo_original>
// kernel: tpu_custom_call.1
$region0: #{tpu_custom_call.1}
  #allocation0 [shape = 'u32[]', space=smem, size = 0x4, offset = 0x4, fixed_abs, tag = 'smem constant byte address 0x4 - core index']
  #allocation1 [shape = 'u32[144,128]{1,0:T(1,128)}', space=vmem, size = 0x12000, scoped, tag = 'internal scratch']
  #allocation2 [shape = 'f32[16,4]{1,0:T(8,128)}', space=vmem, size = 0x2000, scoped, tag = 'scratch operand']
  #allocation3 [shape = 'f32[16,4]{1,0:T(8,128)}', space=vmem, size = 0x2000, scoped, tag = 'scratch operand']
  #allocation4 [shape = 'f32[16,64]{1,0:T(8,128)}', space=vmem, size = 0x2000, scoped, tag = 'scratch operand']
  #allocation5 [shape = 'f32[16,32]{1,0:T(8,128)}', space=vmem, size = 0x2000, scoped, tag = 'scratch operand']
  #allocation6 [shape = 'f32[16,32]{1,0:T(8,128)}', space=vmem, size = 0x2000, scoped, tag = 'scratch operand']
  #allocation7 [shape = 'f32[16,32]{1,0:T(8,128)}', space=vmem, size = 0x2000, scoped, tag = 'scratch operand']
  %s0 = inlined_call_operand.vmem [shape: f32[8,2,4], index: 0, kind: input, shape index: {}]
  %s1 = inlined_call_operand.vmem [shape: f32[8,2,4], index: 1, kind: input, shape index: {}]
  %s2 = inlined_call_operand.vmem [shape: f32[8,2,4], index: 2, kind: input, shape index: {}]
  %s3 = inlined_call_operand.vmem [shape: f32[8,2,4], index: 3, kind: input, shape index: {}]
  %s4 = inlined_call_operand.hbm [shape: f32[4,32], index: 4, kind: input, shape index: {}]
  %s5 = inlined_call_operand.vmem [shape: f32[1,32], index: 5, kind: input, shape index: {}]
  %s6 = inlined_call_operand.hbm [shape: f32[4,96], index: 6, kind: input, shape index: {}]
  %s7 = inlined_call_operand.vmem [shape: f32[1,96], index: 7, kind: input, shape index: {}]
  %s8 = inlined_call_operand.vmem [shape: f32[32,64], index: 8, kind: input, shape index: {}]
  %s9 = inlined_call_operand.vmem [shape: f32[32,32], index: 9, kind: input, shape index: {}]
  %s10 = inlined_call_operand.vmem [shape: f32[32,32], index: 10, kind: input, shape index: {}]
  %s11 = inlined_call_operand.hbm [shape: f32[1,32], index: 11, kind: input, shape index: {}]
  %s12 = inlined_call_operand.vmem [shape: f32[32,4], index: 12, kind: input, shape index: {}]
  %s13 = inlined_call_operand.vmem [shape: f32[1,4], index: 13, kind: input, shape index: {}]
  %s14 = inlined_call_operand.vmem [shape: f32[4,32], index: 14, kind: input, shape index: {}]
  %s15 = inlined_call_operand.vmem [shape: f32[1,32], index: 15, kind: input, shape index: {}]
  %s16 = inlined_call_operand.vmem [shape: f32[4,96], index: 16, kind: input, shape index: {}]
  %s17 = inlined_call_operand.vmem [shape: f32[1,96], index: 17, kind: input, shape index: {}]
  %s18 = inlined_call_operand.vmem [shape: f32[32,64], index: 18, kind: input, shape index: {}]
  %s19 = inlined_call_operand.vmem [shape: f32[32,32], index: 19, kind: input, shape index: {}]
  %s20 = inlined_call_operand.vmem [shape: f32[32,4], index: 20, kind: input, shape index: {}]
  %s21 = inlined_call_operand.vmem [shape: f32[1,4], index: 21, kind: input, shape index: {}]
  %s22 = inlined_call_operand.vmem [shape: f32[8,2,4], index: 22, kind: output, shape index: {}]
  %s23 = sld [smem:[#allocation0]]
  $region110: #{tpu_custom_call.1} parent=0
    _
  %s25 = ssub.s32 1, %s23
  %s26 = scalar_select 0, %s25, %s23
  $region1: #{tpu_custom_call.1} parent=0
    #allocation8 [shape = 'u8[2048]{0}', space=vmem, size = 0x800, scoped, tag = 'input window, operand 4, single buffered']
    #allocation9 [shape = 's32[1]{0}', space=sflag, size = 0x4, scoped, tag = 'scoped memory for tpu_custom_call.1']
    #allocation10 [shape = 'u8[2048]{0}', space=vmem, size = 0x800, scoped, tag = 'input window, operand 6, single buffered']
    #allocation11 [shape = 's32[1]{0}', space=sflag, size = 0x4, scoped, tag = 'scoped memory for tpu_custom_call.1']
    #allocation12 [shape = 'u8[512]{0}', space=vmem, size = 0x400, scoped, tag = 'input window, operand 11, single buffered']
    %27 = vsyncpa [#allocation9], 0
    %28 = vsyncpa [#allocation11], 0
    // Predicated region
    $region2: #{tpu_custom_call.1} parent=1 // pred_check
      _
    $region3: #{tpu_custom_call.1} parent=1 // pred_check_branch
      %30 = sbr.rel (0) target = $region5
    $region4: #{tpu_custom_call.1} parent=1 // pred_region
      _
    $region5: #{tpu_custom_call.1} parent=1 // pred_fallthru
      _
    // Predicated region
    $region6: #{tpu_custom_call.1} parent=1 // pred_check
      _
    $region7: #{tpu_custom_call.1} parent=1 // pred_check_branch
      %32 = sbr.rel (0) target = $region9
    $region8: #{tpu_custom_call.1} parent=1 // pred_region
      _
    $region9: #{tpu_custom_call.1} parent=1 // pred_fallthru
      _
    // Predicated region
    $region10: #{tpu_custom_call.1} parent=1 // pred_check
      _
    $region11: #{tpu_custom_call.1} parent=1 // pred_check_branch
      %34 = sbr.rel (0) target = $region13
    $region12: #{tpu_custom_call.1} parent=1 // pred_region
      _
    $region13: #{tpu_custom_call.1} parent=1 // pred_fallthru
      _
    // Predicated region
    $region14: #{tpu_custom_call.1} parent=1 // pred_check
      _
    $region15: #{tpu_custom_call.1} parent=1 // pred_check_branch
      %36 = sbr.rel (0) target = $region17
    $region16: #{tpu_custom_call.1} parent=1 // pred_region
      _
    $region17: #{tpu_custom_call.1} parent=1 // pred_fallthru
      _
    // Predicated region
    $region18: #{tpu_custom_call.1} parent=1 // pred_check
      _
    $region19: #{tpu_custom_call.1} parent=1 // pred_check_branch
      %38 = sbr.rel (0) target = $region21
    $region20: #{tpu_custom_call.1} parent=1 // pred_region
      %s40 = ssub.s32 64, 64
      %41 = vsyncadd [#allocation9], %s40
      %s43 = sshll.u32 [#allocation8], 4
      %s44 = int_to_ptr.vmem [resolvable:$true] %s43
      %46 = dma.hbm_to_vmem [thread:$0]  %s4, 64, %s44, [#allocation9]
    $region21: #{tpu_custom_call.1} parent=1 // pred_fallthru
      _
    // Predicated region
    $region22: #{tpu_custom_call.1} parent=1 // pred_check
      _
    $region23: #{tpu_custom_call.1} parent=1 // pred_check_branch
      %48 = sbr.rel (0) target = $region25
    $region24: #{tpu_custom_call.1} parent=1 // pred_region
      _
    $region25: #{tpu_custom_call.1} parent=1 // pred_fallthru
      _
    // Predicated region
    $region26: #{tpu_custom_call.1} parent=1 // pred_check
      _
    $region27: #{tpu_custom_call.1} parent=1 // pred_check_branch
      %50 = sbr.rel (0) target = $region29
    $region28: #{tpu_custom_call.1} parent=1 // pred_region
      %s52 = ssub.s32 64, 64
      %53 = vsyncadd [#allocation11], %s52
      %s55 = sshll.u32 [#allocation10], 4
      %s56 = int_to_ptr.vmem [resolvable:$true] %s55
      %58 = dma.hbm_to_vmem [thread:$0]  %s6, 64, %s56, [#allocation11]
    $region29: #{tpu_custom_call.1} parent=1 // pred_fallthru
      _
    // Predicated region
    $region30: #{tpu_custom_call.1} parent=1 // pred_check
      _
    $region31: #{tpu_custom_call.1} parent=1 // pred_check_branch
      %60 = sbr.rel (0) target = $region33
    $region32: #{tpu_custom_call.1} parent=1 // pred_region
      _
    $region33: #{tpu_custom_call.1} parent=1 // pred_fallthru
      _
    // Predicated region
    $region34: #{tpu_custom_call.1} parent=1 // pred_check
      _
    $region35: #{tpu_custom_call.1} parent=1 // pred_check_branch
      %62 = sbr.rel (0) target = $region37
    $region36: #{tpu_custom_call.1} parent=1 // pred_region
      _
    $region37: #{tpu_custom_call.1} parent=1 // pred_fallthru
      _
    // Predicated region
    $region38: #{tpu_custom_call.1} parent=1 // pred_check
      _
    $region39: #{tpu_custom_call.1} parent=1 // pred_check_branch
      %64 = sbr.rel (0) target = $region41
    $region40: #{tpu_custom_call.1} parent=1 // pred_region
      _
    $region41: #{tpu_custom_call.1} parent=1 // pred_fallthru
      _
    // Predicated region
    $region42: #{tpu_custom_call.1} parent=1 // pred_check
      _
    $region43: #{tpu_custom_call.1} parent=1 // pred_check_branch
      %66 = sbr.rel (0) target = $region45
    $region44: #{tpu_custom_call.1} parent=1 // pred_region
      _
    $region45: #{tpu_custom_call.1} parent=1 // pred_fallthru
      _
    // Predicated region
    $region46: #{tpu_custom_call.1} parent=1 // pred_check
      _
    $region47: #{tpu_custom_call.1} parent=1 // pred_check_branch
      %68 = sbr.rel (0) target = $region49
    $region48: #{tpu_custom_call.1} parent=1 // pred_region
      %s70 = ssub.s32 16, 16
      %71 = vsyncadd [#allocation11], %s70
      %s73 = sshll.u32 [#allocation12], 4
      %s74 = int_to_ptr.vmem [resolvable:$true] %s73
      %76 = dma.hbm_to_vmem [thread:$0]  %s11, 16, %s74, [#allocation11]
    $region49: #{tpu_custom_call.1} parent=1 // pred_fallthru
      _
    // Predicated region
    $region50: #{tpu_custom_call.1} parent=1 // pred_check
      _
    $region51: #{tpu_custom_call.1} parent=1 // pred_check_branch
      %78 = sbr.rel (0) target = $region53
    $region52: #{tpu_custom_call.1} parent=1 // pred_region
      _
    $region53: #{tpu_custom_call.1} parent=1 // pred_fallthru
      _
    // Predicated region
    $region54: #{tpu_custom_call.1} parent=1 // pred_check
      _
    $region55: #{tpu_custom_call.1} parent=1 // pred_check_branch
      %80 = sbr.rel (0) target = $region57
    $region56: #{tpu_custom_call.1} parent=1 // pred_region
      _
    $region57: #{tpu_custom_call.1} parent=1 // pred_fallthru
      _
    // Predicated region
    $region58: #{tpu_custom_call.1} parent=1 // pred_check
      _
    $region59: #{tpu_custom_call.1} parent=1 // pred_check_branch
      %82 = sbr.rel (0) target = $region61
    $region60: #{tpu_custom_call.1} parent=1 // pred_region
      _
    $region61: #{tpu_custom_call.1} parent=1 // pred_fallthru
      _
    // Predicated region
    $region62: #{tpu_custom_call.1} parent=1 // pred_check
      _
    $region63: #{tpu_custom_call.1} parent=1 // pred_check_branch
      %84 = sbr.rel (0) target = $region65
    $region64: #{tpu_custom_call.1} parent=1 // pred_region
      _
    $region65: #{tpu_custom_call.1} parent=1 // pred_fallthru
      _
    // Predicated region
    $region66: #{tpu_custom_call.1} parent=1 // pred_check
      _
    $region67: #{tpu_custom_call.1} parent=1 // pred_check_branch
      %86 = sbr.rel (0) target = $region69
    $region68: #{tpu_custom_call.1} parent=1 // pred_region
      _
    $region69: #{tpu_custom_call.1} parent=1 // pred_fallthru
      _
    // Predicated region
    $region70: #{tpu_custom_call.1} parent=1 // pred_check
      _
    $region71: #{tpu_custom_call.1} parent=1 // pred_check_branch
      %88 = sbr.rel (0) target = $region73
    $region72: #{tpu_custom_call.1} parent=1 // pred_region
      _
    $region73: #{tpu_custom_call.1} parent=1 // pred_fallthru
      _
    // Predicated region
    $region74: #{tpu_custom_call.1} parent=1 // pred_check
      _
    $region75: #{tpu_custom_call.1} parent=1 // pred_check_branch
      %90 = sbr.rel (0) target = $region77
    $region76: #{tpu_custom_call.1} parent=1 // pred_region
      _
    $region77: #{tpu_custom_call.1} parent=1 // pred_fallthru
      _
    // Predicated region
    $region78: #{tpu_custom_call.1} parent=1 // pred_check
      _
    $region79: #{tpu_custom_call.1} parent=1 // pred_check_branch
      %92 = sbr.rel (0) target = $region81
    $region80: #{tpu_custom_call.1} parent=1 // pred_region
      _
    $region81: #{tpu_custom_call.1} parent=1 // pred_fallthru
      _
    // Predicated region
    $region82: #{tpu_custom_call.1} parent=1 // pred_check
      _
    $region83: #{tpu_custom_call.1} parent=1 // pred_check_branch
      %94 = sbr.rel (0) target = $region85
    $region84: #{tpu_custom_call.1} parent=1 // pred_region
      _
    $region85: #{tpu_custom_call.1} parent=1 // pred_fallthru
      _
    // Predicated region
    $region86: #{tpu_custom_call.1} parent=1 // pred_check
      _
    $region87: #{tpu_custom_call.1} parent=1 // pred_check_branch
      %96 = sbr.rel (0) target = $region89
    $region88: #{tpu_custom_call.1} parent=1 // pred_region
      _
    $region89: #{tpu_custom_call.1} parent=1 // pred_fallthru
      _
    // Predicated region
    $region90: #{tpu_custom_call.1} parent=1 // pred_check
      _
    $region91: #{tpu_custom_call.1} parent=1 // pred_check_branch
      %98 = sbr.rel (0) target = $region93
    $region92: #{tpu_custom_call.1} parent=1 // pred_region
      %99 = dma.done [#allocation9], 64
    $region93: #{tpu_custom_call.1} parent=1 // pred_fallthru
      _
    // Predicated region
    $region94: #{tpu_custom_call.1} parent=1 // pred_check
      _
    $region95: #{tpu_custom_call.1} parent=1 // pred_check_branch
      %101 = sbr.rel (0) target = $region97
    $region96: #{tpu_custom_call.1} parent=1 // pred_region
      %102 = dma.done [#allocation11], 64
    $region97: #{tpu_custom_call.1} parent=1 // pred_fallthru
      _
    // Predicated region
    $region98: #{tpu_custom_call.1} parent=1 // pred_check
      _
    $region99: #{tpu_custom_call.1} parent=1 // pred_check_branch
      %104 = sbr.rel (0) target = $region101
    $region100: #{tpu_custom_call.1} parent=1 // pred_region
      %105 = dma.done [#allocation11], 16
    $region101: #{tpu_custom_call.1} parent=1 // pred_fallthru
      _
    %v106 = vld [vmem:[%s8] sm:$0xff]
    %v107 = vld [vmem:[%s8 + $0x8] sm:$0xff]
    %v108 = vld [vmem:[%s8 + $0x10] sm:$0xff]
    %v109 = vld [vmem:[%s8 + $0x18] sm:$0xff]
    %v110 = vld [vmem:[%s9] sm:$0xff]
    %v111 = vld [vmem:[%s9 + $0x8] sm:$0xff]
    %v112 = vld [vmem:[%s9 + $0x10] sm:$0xff]
    %v113 = vld [vmem:[%s9 + $0x18] sm:$0xff]
    %v114 = vld [vmem:[%s18] sm:$0xff]
    %v115 = vld [vmem:[%s18 + $0x8] sm:$0xff]
    %v116 = vld [vmem:[%s18 + $0x10] sm:$0xff]
    %v117 = vld [vmem:[%s18 + $0x18] sm:$0xff]
    %v118 = vld [vmem:[%s19] sm:$0xff]
    %v119 = vld [vmem:[%s19 + $0x8] sm:$0xff]
    %v120 = vld [vmem:[%s19 + $0x10] sm:$0xff]
    %v121 = vld [vmem:[%s19 + $0x18] sm:$0xff]
    %v122 = vld [vmem:[%s16] sm:$0xf]
    %v123 = vld [vmem:[%s20] sm:$0xff]
    %v124 = vld [vmem:[%s20 + $0x8] sm:$0xff]
    %v125 = vld [vmem:[%s20 + $0x10] sm:$0xff]
    %v126 = vld [vmem:[%s20 + $0x18] sm:$0xff]
    %v127 = vld [vmem:[%s17] sm:$0x1]
    %v129 = vlaneseq
    %v130 = vshrl.u32 %v129, 7
    %v131 = vsub.s32 0, %v130
    %v132 = vrot.slane %v127, %v131
    %v134 = vld [vmem:[%s21] sm:$0x1]
    %v136 = vlaneseq
    %v137 = vshrl.u32 %v136, 7
    %v138 = vsub.s32 0, %v137
    %v139 = vrot.slane %v134, %v138
    %v141 = vld [vmem:[%s0] sm:$0x3]
    %v142 = vld [vmem:[%s1] sm:$0x3]
    %v143 = vmul.f32 %v141, %v142
    %v144 = vld [vmem:[%s2] sm:$0x3]
    %v145 = vadd.f32 %v143, %v144
    %vm146 = vcmask 25600
    %147 = vst.msk [vmem:[#allocation2] sm:$0x3] %vm146, %v145
    %v148 = vld [vmem:[%s3] sm:$0x3]
    %149 = vst.msk [vmem:[#allocation3] sm:$0x3] %vm146, %v148
    %s150 = scalar_lea.vmem %s0, 2
    %v151 = vld [vmem:[%s150] sm:$0x3]
    %s152 = scalar_lea.vmem %s1, 2
    %v153 = vld [vmem:[%s152] sm:$0x3]
    %v154 = vmul.f32 %v151, %v153
    %s155 = scalar_lea.vmem %s2, 2
    %v156 = vld [vmem:[%s155] sm:$0x3]
    %v157 = vadd.f32 %v154, %v156
    %s158 = scalar_lea.vmem [#allocation2], 2
    %159 = vst.msk [vmem:[%s158] sm:$0x3] %vm146, %v157
    %s160 = scalar_lea.vmem %s3, 2
    %v161 = vld [vmem:[%s160] sm:$0x3]
    %s162 = scalar_lea.vmem [#allocation3], 2
    %163 = vst.msk [vmem:[%s162] sm:$0x3] %vm146, %v161
    %s164 = scalar_lea.vmem %s0, 4
    %v165 = vld [vmem:[%s164] sm:$0x3]
    %s166 = scalar_lea.vmem %s1, 4
    %v167 = vld [vmem:[%s166] sm:$0x3]
    %v168 = vmul.f32 %v165, %v167
    %s169 = scalar_lea.vmem %s2, 4
    %v170 = vld [vmem:[%s169] sm:$0x3]
    %v171 = vadd.f32 %v168, %v170
    %s172 = scalar_lea.vmem [#allocation2], 4
    %173 = vst.msk [vmem:[%s172] sm:$0x3] %vm146, %v171
    %s174 = scalar_lea.vmem %s3, 4
    %v175 = vld [vmem:[%s174] sm:$0x3]
    %s176 = scalar_lea.vmem [#allocation3], 4
    %177 = vst.msk [vmem:[%s176] sm:$0x3] %vm146, %v175
    %s178 = scalar_lea.vmem %s0, 6
    %v179 = vld [vmem:[%s178] sm:$0x3]
    %s180 = scalar_lea.vmem %s1, 6
    %v181 = vld [vmem:[%s180] sm:$0x3]
    %v182 = vmul.f32 %v179, %v181
    %s183 = scalar_lea.vmem %s2, 6
    %v184 = vld [vmem:[%s183] sm:$0x3]
    %v185 = vadd.f32 %v182, %v184
    %s186 = scalar_lea.vmem [#allocation2], 6
    %187 = vst.msk [vmem:[%s186] sm:$0x3] %vm146, %v185
    %s188 = scalar_lea.vmem %s3, 6
    %v189 = vld [vmem:[%s188] sm:$0x3]
    %s190 = scalar_lea.vmem [#allocation3], 6
    %191 = vst.msk [vmem:[%s190] sm:$0x3] %vm146, %v189
    %s192 = scalar_lea.vmem %s0, 8
    %v193 = vld [vmem:[%s192] sm:$0x3]
    %s194 = scalar_lea.vmem %s1, 8
    %v195 = vld [vmem:[%s194] sm:$0x3]
    %v196 = vmul.f32 %v193, %v195
    %s197 = scalar_lea.vmem %s2, 8
    %v198 = vld [vmem:[%s197] sm:$0x3]
    %v199 = vadd.f32 %v196, %v198
    %s200 = scalar_lea.vmem [#allocation2], 8
    %201 = vst.msk [vmem:[%s200] sm:$0x3] %vm146, %v199
    %s202 = scalar_lea.vmem %s3, 8
    %v203 = vld [vmem:[%s202] sm:$0x3]
    %s204 = scalar_lea.vmem [#allocation3], 8
    %205 = vst.msk [vmem:[%s204] sm:$0x3] %vm146, %v203
    %s206 = scalar_lea.vmem %s0, 10
    %v207 = vld [vmem:[%s206] sm:$0x3]
    %s208 = scalar_lea.vmem %s1, 10
    %v209 = vld [vmem:[%s208] sm:$0x3]
    %v210 = vmul.f32 %v207, %v209
    %s211 = scalar_lea.vmem %s2, 10
    %v212 = vld [vmem:[%s211] sm:$0x3]
    %v213 = vadd.f32 %v210, %v212
    %s214 = scalar_lea.vmem [#allocation2], 10
    %215 = vst.msk [vmem:[%s214] sm:$0x3] %vm146, %v213
    %s216 = scalar_lea.vmem %s3, 10
    %v217 = vld [vmem:[%s216] sm:$0x3]
    %s218 = scalar_lea.vmem [#allocation3], 10
    %219 = vst.msk [vmem:[%s218] sm:$0x3] %vm146, %v217
    %s220 = scalar_lea.vmem %s0, 12
    %v221 = vld [vmem:[%s220] sm:$0x3]
    %s222 = scalar_lea.vmem %s1, 12
    %v223 = vld [vmem:[%s222] sm:$0x3]
    %v224 = vmul.f32 %v221, %v223
    %s225 = scalar_lea.vmem %s2, 12
    %v226 = vld [vmem:[%s225] sm:$0x3]
    %v227 = vadd.f32 %v224, %v226
    %s228 = scalar_lea.vmem [#allocation2], 12
    %229 = vst.msk [vmem:[%s228] sm:$0x3] %vm146, %v227
    %s230 = scalar_lea.vmem %s3, 12
    %v231 = vld [vmem:[%s230] sm:$0x3]
    %s232 = scalar_lea.vmem [#allocation3], 12
    %233 = vst.msk [vmem:[%s232] sm:$0x3] %vm146, %v231
    %s234 = scalar_lea.vmem %s0, 14
    %v235 = vld [vmem:[%s234] sm:$0x3]
    %s236 = scalar_lea.vmem %s1, 14
    %v237 = vld [vmem:[%s236] sm:$0x3]
    %v238 = vmul.f32 %v235, %v237
    %s239 = scalar_lea.vmem %s2, 14
    %v240 = vld [vmem:[%s239] sm:$0x3]
    %v241 = vadd.f32 %v238, %v240
    %s242 = scalar_lea.vmem [#allocation2], 14
    %243 = vst.msk [vmem:[%s242] sm:$0x3] %vm146, %v241
    %s244 = scalar_lea.vmem %s3, 14
    %v245 = vld [vmem:[%s244] sm:$0x3]
    %s246 = scalar_lea.vmem [#allocation3], 14
    %247 = vst.msk [vmem:[%s246] sm:$0x3] %vm146, %v245
    %v248 = vld [vmem:[#allocation2] sm:$0xff]
    %v249 = vld [vmem:[#allocation2 + $0x8] sm:$0xff]
    %v250 = vld [vmem:[#allocation3] sm:$0xff]
    %v251 = vld [vmem:[#allocation3 + $0x8] sm:$0xff]
    %v252 = vld [vmem:[#allocation10] sm:$0xf]
    %v253 = vld [vmem:[%s7] sm:$0x1]
    %v255 = vlaneseq
    %v256 = vshrl.u32 %v255, 7
    %v257 = vsub.s32 0, %v256
    %v258 = vrot.slane %v253, %v257
    %vm260 = vcmask 31744
    %v262 = vsel %vm260, %v248, 0
    %v265 = vsel %vm260, %v249, 0
    %vm267 = vcmask 1043456
    %v269 = vsel %vm267, %v252, 0
    %271 = vmatprep.subr.mxu0 0.0
    %272 = vmatpush1.msra.mxu0 0.0
    %273 = vmatprep.subr.mxu0 0.0
    %274 = vmatpush1.msra.mxu0 0.0
    %275 = vmatprep.subr.mxu0 0.0
    %276 = vmatpush1.msra.mxu0 0.0
    %277 = vmatprep.subr.mxu0 0.0
    %278 = vmatpush1.msra.mxu0 0.0
    %279 = vmatprep.subr.mxu0 0.0
    %280 = vmatpush1.msra.mxu0 0.0
    %281 = vmatprep.subr.mxu0 0.0
    %282 = vmatpush1.msra.mxu0 0.0
    %283 = vmatprep.subr.mxu0 0.0
    %284 = vmatpush1.msra.mxu0 0.0
    %285 = vmatprep.subr.mxu0 0.0
    %286 = vmatpush1.msra.mxu0 0.0
    %287 = vmatprep.subr.mxu0 0.0
    %288 = vmatpush1.msra.mxu0 0.0
    %289 = vmatprep.subr.mxu0 0.0
    %290 = vmatpush1.msra.mxu0 0.0
    %291 = vmatprep.subr.mxu0 0.0
    %292 = vmatpush1.msra.mxu0 0.0
    %293 = vmatprep.subr.mxu0 0.0
    %294 = vmatpush1.msra.mxu0 0.0
    %295 = vmatprep.subr.mxu0 0.0
    %296 = vmatpush1.msra.mxu0 0.0
    %297 = vmatprep.subr.mxu0 0.0
    %298 = vmatpush1.msra.mxu0 0.0
    %299 = vmatprep.subr.mxu0 0.0
    %300 = vmatpush1.msra.mxu0 0.0
    %301 = vmatprep.subr.mxu0 0.0
    %302 = vmatpush1.msra.mxu0 %v269
    %303 = vmatprep.subr.mxu0 0.0
    %304 = vmatpush2.msra.mxu0 0.0
    %305 = vmatprep.subr.mxu0 0.0
    %306 = vmatpush2.msra.mxu0 0.0
    %307 = vmatprep.subr.mxu0 0.0
    %308 = vmatpush2.msra.mxu0 0.0
    %309 = vmatprep.subr.mxu0 0.0
    %310 = vmatpush2.msra.mxu0 0.0
    %311 = vmatprep.subr.mxu0 0.0
    %312 = vmatpush2.msra.mxu0 0.0
    %313 = vmatprep.subr.mxu0 0.0
    %314 = vmatpush2.msra.mxu0 0.0
    %315 = vmatprep.subr.mxu0 0.0
    %316 = vmatpush2.msra.mxu0 0.0
    %317 = vmatprep.subr.mxu0 0.0
    %318 = vmatpush2.msra.mxu0 0.0
    %319 = vmatprep.subr.mxu0 0.0
    %320 = vmatpush2.msra.mxu0 0.0
    %321 = vmatprep.subr.mxu0 0.0
    %322 = vmatpush2.msra.mxu0 0.0
    %323 = vmatprep.subr.mxu0 0.0
    %324 = vmatpush2.msra.mxu0 0.0
    %325 = vmatprep.subr.mxu0 0.0
    %326 = vmatpush2.msra.mxu0 0.0
    %327 = vmatprep.subr.mxu0 0.0
    %328 = vmatpush2.msra.mxu0 0.0
    %329 = vmatprep.subr.mxu0 0.0
    %330 = vmatpush2.msra.mxu0 0.0
    %331 = vmatprep.subr.mxu0 0.0
    %332 = vmatpush2.msra.mxu0 0.0
    %333 = vmatprep.subr.mxu0 0.0
    %334 = vmatpush2.msra.mxu0 0.0
    %335 = vmatprep.mubr.f32.mxu0 0.0
    %336 = vmatmul.mubr.f32.gmra.mxu0 %v262
    %v337 = vpop.f32.mrf.mxu0
    %v338 = vadd.f32 %v258, %v337
    %v339 = vpop.f32.mrf.mxu0
    %340 = vmatprep.mubr.f32.mxu0 0.0
    %341 = vmatmul.mubr.f32.gmra.mxu0 %v265
    %v342 = vpop.f32.mrf.mxu0
    %v343 = vadd.f32 %v258, %v342
    %v344 = vpop.f32.mrf.mxu0
    %345 = vdwg.mxu0
    %vm346 = vcmask 523264
    %347 = vst.msk [vmem:[#allocation4] sm:$0xff] %vm346, %v338
    %348 = vst.msk [vmem:[#allocation4 + $0x8] sm:$0xff] %vm346, %v343
    %351 = vrot.lane.b32.xlu0 %v338, 64
    %v352 = vpop.permute.xlu0 %351
    %353 = vrot.lane.b32.xlu0 %v343, 64
    %v354 = vpop.permute.xlu0 %353
    %vm357 = vcmask 261120
    %358 = vst.msk [vmem:[#allocation5] sm:$0xff] %vm357, %v352
    %359 = vst.msk [vmem:[#allocation5 + $0x8] sm:$0xff] %vm357, %v354
    %v360 = vld [vmem:[#allocation8] sm:$0xf]
    %v361 = vld [vmem:[%s5] sm:$0x1]
    %v363 = vlaneseq
    %v364 = vshrl.u32 %v363, 7
    %v365 = vsub.s32 0, %v364
    %v366 = vrot.slane %v361, %v365
    %v369 = vsel %vm260, %v250, 0
    %v372 = vsel %vm260, %v251, 0
    %v375 = vsel %vm267, %v360, 0
    %377 = vmatprep.subr.mxu0 0.0
    %378 = vmatpush1.msra.mxu0 0.0
    %379 = vmatprep.subr.mxu0 0.0
    %380 = vmatpush1.msra.mxu0 0.0
    %381 = vmatprep.subr.mxu0 0.0
    %382 = vmatpush1.msra.mxu0 0.0
    %383 = vmatprep.subr.mxu0 0.0
    %384 = vmatpush1.msra.mxu0 0.0
    %385 = vmatprep.subr.mxu0 0.0
    %386 = vmatpush1.msra.mxu0 0.0
    %387 = vmatprep.subr.mxu0 0.0
    %388 = vmatpush1.msra.mxu0 0.0
    %389 = vmatprep.subr.mxu0 0.0
    %390 = vmatpush1.msra.mxu0 0.0
    %391 = vmatprep.subr.mxu0 0.0
    %392 = vmatpush1.msra.mxu0 0.0
    %393 = vmatprep.subr.mxu0 0.0
    %394 = vmatpush1.msra.mxu0 0.0
    %395 = vmatprep.subr.mxu0 0.0
    %396 = vmatpush1.msra.mxu0 0.0
    %397 = vmatprep.subr.mxu0 0.0
    %398 = vmatpush1.msra.mxu0 0.0
    %399 = vmatprep.subr.mxu0 0.0
    %400 = vmatpush1.msra.mxu0 0.0
    %401 = vmatprep.subr.mxu0 0.0
    %402 = vmatpush1.msra.mxu0 0.0
    %403 = vmatprep.subr.mxu0 0.0
    %404 = vmatpush1.msra.mxu0 0.0
    %405 = vmatprep.subr.mxu0 0.0
    %406 = vmatpush1.msra.mxu0 0.0
    %407 = vmatprep.subr.mxu0 0.0
    %408 = vmatpush1.msra.mxu0 %v375
    %409 = vmatprep.subr.mxu0 0.0
    %410 = vmatpush2.msra.mxu0 0.0
    %411 = vmatprep.subr.mxu0 0.0
    %412 = vmatpush2.msra.mxu0 0.0
    %413 = vmatprep.subr.mxu0 0.0
    %414 = vmatpush2.msra.mxu0 0.0
    %415 = vmatprep.subr.mxu0 0.0
    %416 = vmatpush2.msra.mxu0 0.0
    %417 = vmatprep.subr.mxu0 0.0
    %418 = vmatpush2.msra.mxu0 0.0
    %419 = vmatprep.subr.mxu0 0.0
    %420 = vmatpush2.msra.mxu0 0.0
    %421 = vmatprep.subr.mxu0 0.0
    %422 = vmatpush2.msra.mxu0 0.0
    %423 = vmatprep.subr.mxu0 0.0
    %424 = vmatpush2.msra.mxu0 0.0
    %425 = vmatprep.subr.mxu0 0.0
    %426 = vmatpush2.msra.mxu0 0.0
    %427 = vmatprep.subr.mxu0 0.0
    %428 = vmatpush2.msra.mxu0 0.0
    %429 = vmatprep.subr.mxu0 0.0
    %430 = vmatpush2.msra.mxu0 0.0
    %431 = vmatprep.subr.mxu0 0.0
    %432 = vmatpush2.msra.mxu0 0.0
    %433 = vmatprep.subr.mxu0 0.0
    %434 = vmatpush2.msra.mxu0 0.0
    %435 = vmatprep.subr.mxu0 0.0
    %436 = vmatpush2.msra.mxu0 0.0
    %437 = vmatprep.subr.mxu0 0.0
    %438 = vmatpush2.msra.mxu0 0.0
    %439 = vmatprep.subr.mxu0 0.0
    %440 = vmatpush2.msra.mxu0 0.0
    %441 = vmatprep.mubr.f32.mxu0 0.0
    %442 = vmatmul.mubr.f32.gmra.mxu0 %v369
    %v443 = vpop.f32.mrf.mxu0
    %v444 = vadd.f32 %v366, %v443
    %v445 = vpop.f32.mrf.mxu0
    %446 = vmatprep.mubr.f32.mxu0 0.0
    %447 = vmatmul.mubr.f32.gmra.mxu0 %v372
    %v448 = vpop.f32.mrf.mxu0
    %v449 = vadd.f32 %v366, %v448
    %v450 = vpop.f32.mrf.mxu0
    %451 = vdwg.mxu0
    %v452 = vmax.f32 %v444, 0.0
    %v453 = vmax.f32 %v449, 0.0
    %v454 = vsub.f32 0.0, %v452
    %v455 = vsub.f32 0.0, %v453
    %v456 = vmul.f32 %v454, 1.442695
    %v457 = vpow.pop %v456
    %v458 = vmul.f32 %v455, 1.442695
    %v459 = vpow.pop %v458
    %460 = vst.msk [vmem:[#allocation6] sm:$0xff] %vm357, %v457
    %461 = vst.msk [vmem:[#allocation6 + $0x8] sm:$0xff] %vm357, %v459
    %v462 = vld [vmem:[%s14] sm:$0xf]
    %v463 = vld [vmem:[%s15] sm:$0x1]
    %v465 = vlaneseq
    %v466 = vshrl.u32 %v465, 7
    %v467 = vsub.s32 0, %v466
    %v468 = vrot.slane %v463, %v467
    %v471 = vsel %vm267, %v462, 0
    %473 = vmatprep.subr.mxu0 0.0
    %474 = vmatpush1.msra.mxu0 0.0
    %475 = vmatprep.subr.mxu0 0.0
    %476 = vmatpush1.msra.mxu0 0.0
    %477 = vmatprep.subr.mxu0 0.0
    %478 = vmatpush1.msra.mxu0 0.0
    %479 = vmatprep.subr.mxu0 0.0
    %480 = vmatpush1.msra.mxu0 0.0
    %481 = vmatprep.subr.mxu0 0.0
    %482 = vmatpush1.msra.mxu0 0.0
    %483 = vmatprep.subr.mxu0 0.0
    %484 = vmatpush1.msra.mxu0 0.0
    %485 = vmatprep.subr.mxu0 0.0
    %486 = vmatpush1.msra.mxu0 0.0
    %487 = vmatprep.subr.mxu0 0.0
    %488 = vmatpush1.msra.mxu0 0.0
    %489 = vmatprep.subr.mxu0 0.0
    %490 = vmatpush1.msra.mxu0 0.0
    %491 = vmatprep.subr.mxu0 0.0
    %492 = vmatpush1.msra.mxu0 0.0
    %493 = vmatprep.subr.mxu0 0.0
    %494 = vmatpush1.msra.mxu0 0.0
    %495 = vmatprep.subr.mxu0 0.0
    %496 = vmatpush1.msra.mxu0 0.0
    %497 = vmatprep.subr.mxu0 0.0
    %498 = vmatpush1.msra.mxu0 0.0
    %499 = vmatprep.subr.mxu0 0.0
    %500 = vmatpush1.msra.mxu0 0.0
    %501 = vmatprep.subr.mxu0 0.0
    %502 = vmatpush1.msra.mxu0 0.0
    %503 = vmatprep.subr.mxu0 0.0
    %504 = vmatpush1.msra.mxu0 %v471
    %505 = vmatprep.subr.mxu0 0.0
    %506 = vmatpush2.msra.mxu0 0.0
    %507 = vmatprep.subr.mxu0 0.0
    %508 = vmatpush2.msra.mxu0 0.0
    %509 = vmatprep.subr.mxu0 0.0
    %510 = vmatpush2.msra.mxu0 0.0
    %511 = vmatprep.subr.mxu0 0.0
    %512 = vmatpush2.msra.mxu0 0.0
    %513 = vmatprep.subr.mxu0 0.0
    %514 = vmatpush2.msra.mxu0 0.0
    %515 = vmatprep.subr.mxu0 0.0
    %516 = vmatpush2.msra.mxu0 0.0
    %517 = vmatprep.subr.mxu0 0.0
    %518 = vmatpush2.msra.mxu0 0.0
    %519 = vmatprep.subr.mxu0 0.0
    %520 = vmatpush2.msra.mxu0 0.0
    %521 = vmatprep.subr.mxu0 0.0
    %522 = vmatpush2.msra.mxu0 0.0
    %523 = vmatprep.subr.mxu0 0.0
    %524 = vmatpush2.msra.mxu0 0.0
    %525 = vmatprep.subr.mxu0 0.0
    %526 = vmatpush2.msra.mxu0 0.0
    %527 = vmatprep.subr.mxu0 0.0
    %528 = vmatpush2.msra.mxu0 0.0
    %529 = vmatprep.subr.mxu0 0.0
    %530 = vmatpush2.msra.mxu0 0.0
    %531 = vmatprep.subr.mxu0 0.0
    %532 = vmatpush2.msra.mxu0 0.0
    %533 = vmatprep.subr.mxu0 0.0
    %534 = vmatpush2.msra.mxu0 0.0
    %535 = vmatprep.subr.mxu0 0.0
    %536 = vmatpush2.msra.mxu0 0.0
    %537 = vmatprep.mubr.f32.mxu0 0.0
    %538 = vmatmul.mubr.f32.gmra.mxu0 %v369
    %v539 = vpop.f32.mrf.mxu0
    %v540 = vadd.f32 %v468, %v539
    %v541 = vpop.f32.mrf.mxu0
    %542 = vmatprep.mubr.f32.mxu0 0.0
    %543 = vmatmul.mubr.f32.gmra.mxu0 %v372
    %v544 = vpop.f32.mrf.mxu0
    %v545 = vadd.f32 %v468, %v544
    %v546 = vpop.f32.mrf.mxu0
    %547 = vdwg.mxu0
    %v548 = vmax.f32 %v540, 0.0
    %v549 = vmax.f32 %v545, 0.0
    %v550 = vsub.f32 0.0, %v548
    %v551 = vsub.f32 0.0, %v549
    %v552 = vmul.f32 %v550, 1.442695
    %v553 = vpow.pop %v552
    %v554 = vmul.f32 %v551, 1.442695
    %v555 = vpow.pop %v554
    %556 = vst.msk [vmem:[#allocation7] sm:$0xff] %vm357, %v553
    %557 = vst.msk [vmem:[#allocation7 + $0x8] sm:$0xff] %vm357, %v555
    %v558 = vld [vmem:[#allocation6] sm:$0x3]
    %v559 = vld [vmem:[#allocation4] sm:$0x3]
    %v560 = vld [vmem:[#allocation5] sm:$0x3]
    %v561 = vmul.f32 %v558, 0.0
    %v563 = vsel %vm357, %v561, 0
    %565 = vmatprep.subr.mxu0 0.0
    %566 = vmatpush1.msra.mxu0 0.0
    %567 = vmatprep.subr.mxu0 0.0
    %568 = vmatpush1.msra.mxu0 0.0
    %569 = vmatprep.subr.mxu0 0.0
    %570 = vmatpush1.msra.mxu0 0.0
    %571 = vmatprep.subr.mxu0 0.0
    %572 = vmatpush1.msra.mxu0 0.0
    %573 = vmatprep.subr.mxu0 0.0
    %574 = vmatpush1.msra.mxu0 0.0
    %575 = vmatprep.subr.mxu0 0.0
    %576 = vmatpush1.msra.mxu0 0.0
    %577 = vmatprep.subr.mxu0 0.0
    %578 = vmatpush1.msra.mxu0 0.0
    %579 = vmatprep.subr.mxu0 0.0
    %580 = vmatpush1.msra.mxu0 0.0
    %581 = vmatprep.subr.mxu0 0.0
    %582 = vmatpush1.msra.mxu0 0.0
    %583 = vmatprep.subr.mxu0 0.0
    %584 = vmatpush1.msra.mxu0 0.0
    %585 = vmatprep.subr.mxu0 0.0
    %586 = vmatpush1.msra.mxu0 0.0
    %587 = vmatprep.subr.mxu0 0.0
    %588 = vmatpush1.msra.mxu0 0.0
    %589 = vmatprep.subr.mxu0 0.0
    %590 = vmatpush1.msra.mxu0 %v109
    %591 = vmatprep.subr.mxu0 0.0
    %592 = vmatpush1.msra.mxu0 %v108
    %593 = vmatprep.subr.mxu0 0.0
    %594 = vmatpush1.msra.mxu0 %v107
    %595 = vmatprep.subr.mxu0 0.0
    %596 = vmatpush1.msra.mxu0 %v106
    %597 = vmatprep.subr.mxu0 0.0
    %598 = vmatpush2.msra.mxu0 0.0
    %599 = vmatprep.subr.mxu0 0.0
    %600 = vmatpush2.msra.mxu0 0.0
    %601 = vmatprep.subr.mxu0 0.0
    %602 = vmatpush2.msra.mxu0 0.0
    %603 = vmatprep.subr.mxu0 0.0
    %604 = vmatpush2.msra.mxu0 0.0
    %605 = vmatprep.subr.mxu0 0.0
    %606 = vmatpush2.msra.mxu0 0.0
    %607 = vmatprep.subr.mxu0 0.0
    %608 = vmatpush2.msra.mxu0 0.0
    %609 = vmatprep.subr.mxu0 0.0
    %610 = vmatpush2.msra.mxu0 0.0
    %611 = vmatprep.subr.mxu0 0.0
    %612 = vmatpush2.msra.mxu0 0.0
    %613 = vmatprep.subr.mxu0 0.0
    %614 = vmatpush2.msra.mxu0 0.0
    %615 = vmatprep.subr.mxu0 0.0
    %616 = vmatpush2.msra.mxu0 0.0
    %617 = vmatprep.subr.mxu0 0.0
    %618 = vmatpush2.msra.mxu0 0.0
    %619 = vmatprep.subr.mxu0 0.0
    %620 = vmatpush2.msra.mxu0 0.0
    %621 = vmatprep.subr.mxu0 0.0
    %622 = vmatpush2.msra.mxu0 0.0
    %623 = vmatprep.subr.mxu0 0.0
    %624 = vmatpush2.msra.mxu0 0.0
    %625 = vmatprep.subr.mxu0 0.0
    %626 = vmatpush2.msra.mxu0 0.0
    %627 = vmatprep.subr.mxu0 0.0
    %628 = vmatpush2.msra.mxu0 0.0
    %629 = vmatprep.mubr.f32.mxu0 0.0
    %630 = vmatmul.mubr.f32.gmra.mxu0 %v563
    %v631 = vpop.f32.mrf.mxu0
    %v632 = vadd.f32 %v559, %v631
    %v633 = vpop.f32.mrf.mxu0
    %634 = vdwg.mxu0
    %v635 = vxor.u32 %v632, 2147483648
    %v636 = vmul.f32 %v635, 1.442695
    %v637 = vpow.pop %v636
    %v638 = vadd.f32 %v637, 1.0
    %v639 = vrcp.pop %v638
    %v640 = vmul.f32 1.0, %v639
    %v641 = vmul.f32 %v640, %v561
    %v643 = vsel %vm357, %v641, 0
    %645 = vmatprep.subr.mxu0 0.0
    %646 = vmatpush1.msra.mxu0 0.0
    %647 = vmatprep.subr.mxu0 0.0
    %648 = vmatpush1.msra.mxu0 0.0
    %649 = vmatprep.subr.mxu0 0.0
    %650 = vmatpush1.msra.mxu0 0.0
    %651 = vmatprep.subr.mxu0 0.0
    %652 = vmatpush1.msra.mxu0 0.0
    %653 = vmatprep.subr.mxu0 0.0
    %654 = vmatpush1.msra.mxu0 0.0
    %655 = vmatprep.subr.mxu0 0.0
    %656 = vmatpush1.msra.mxu0 0.0
    %657 = vmatprep.subr.mxu0 0.0
    %658 = vmatpush1.msra.mxu0 0.0
    %659 = vmatprep.subr.mxu0 0.0
    %660 = vmatpush1.msra.mxu0 0.0
    %661 = vmatprep.subr.mxu0 0.0
    %662 = vmatpush1.msra.mxu0 0.0
    %663 = vmatprep.subr.mxu0 0.0
    %664 = vmatpush1.msra.mxu0 0.0
    %665 = vmatprep.subr.mxu0 0.0
    %666 = vmatpush1.msra.mxu0 0.0
    %667 = vmatprep.subr.mxu0 0.0
    %668 = vmatpush1.msra.mxu0 0.0
    %669 = vmatprep.subr.mxu0 0.0
    %670 = vmatpush1.msra.mxu0 %v113
    %671 = vmatprep.subr.mxu0 0.0
    %672 = vmatpush1.msra.mxu0 %v112
    %673 = vmatprep.subr.mxu0 0.0
    %674 = vmatpush1.msra.mxu0 %v111
    %675 = vmatprep.subr.mxu0 0.0
    %676 = vmatpush1.msra.mxu0 %v110
    %677 = vmatprep.subr.mxu0 0.0
    %678 = vmatpush2.msra.mxu0 0.0
    %679 = vmatprep.subr.mxu0 0.0
    %680 = vmatpush2.msra.mxu0 0.0
    %681 = vmatprep.subr.mxu0 0.0
    %682 = vmatpush2.msra.mxu0 0.0
    %683 = vmatprep.subr.mxu0 0.0
    %684 = vmatpush2.msra.mxu0 0.0
    %685 = vmatprep.subr.mxu0 0.0
    %686 = vmatpush2.msra.mxu0 0.0
    %687 = vmatprep.subr.mxu0 0.0
    %688 = vmatpush2.msra.mxu0 0.0
    %689 = vmatprep.subr.mxu0 0.0
    %690 = vmatpush2.msra.mxu0 0.0
    %691 = vmatprep.subr.mxu0 0.0
    %692 = vmatpush2.msra.mxu0 0.0
    %693 = vmatprep.subr.mxu0 0.0
    %694 = vmatpush2.msra.mxu0 0.0
    %695 = vmatprep.subr.mxu0 0.0
    %696 = vmatpush2.msra.mxu0 0.0
    %697 = vmatprep.subr.mxu0 0.0
    %698 = vmatpush2.msra.mxu0 0.0
    %699 = vmatprep.subr.mxu0 0.0
    %700 = vmatpush2.msra.mxu0 0.0
    %701 = vmatprep.subr.mxu0 0.0
    %702 = vmatpush2.msra.mxu0 0.0
    %703 = vmatprep.subr.mxu0 0.0
    %704 = vmatpush2.msra.mxu0 0.0
    %705 = vmatprep.subr.mxu0 0.0
    %706 = vmatpush2.msra.mxu0 0.0
    %707 = vmatprep.subr.mxu0 0.0
    %708 = vmatpush2.msra.mxu0 0.0
    %709 = vmatprep.mubr.f32.mxu0 0.0
    %710 = vmatmul.mubr.f32.gmra.mxu0 %v643
    %v711 = vpop.f32.mrf.mxu0
    %v712 = vadd.f32 %v560, %v711
    %v713 = vpop.f32.mrf.mxu0
    %714 = vdwg.mxu0
    %v715 = vtanh.pop %v712
    %v716 = vsub.f32 1.0, %v640
    %717 = vrot.lane.b32.xlu0 %v561, 32
    %v718 = vpop.permute.xlu0 %717
    %v720 = vmul.f32 %v716, %v718
    %722 = vrot.lane.b32.xlu0 %v715, 32
    %v723 = vpop.permute.xlu0 %722
    %v725 = vmul.f32 %v640, %v723
    %v726 = vadd.f32 %v720, %v725
    %s727 = scalar_lea.vmem [#allocation6], 2
    %v728 = vld [vmem:[%s727] sm:$0x3]
    %s729 = scalar_lea.vmem [#allocation4], 2
    %v730 = vld [vmem:[%s729] sm:$0x3]
    %s731 = scalar_lea.vmem [#allocation5], 2
    %v732 = vld [vmem:[%s731] sm:$0x3]
    %734 = vrot.lane.b32.xlu0 %v726, 96
    %v735 = vpop.permute.xlu0 %734
    %v737 = vmul.f32 %v728, %v735
    %v739 = vsel %vm357, %v737, 0
    %741 = vmatprep.subr.mxu0 0.0
    %742 = vmatpush1.msra.mxu0 0.0
    %743 = vmatprep.subr.mxu0 0.0
    %744 = vmatpush1.msra.mxu0 0.0
    %745 = vmatprep.subr.mxu0 0.0
    %746 = vmatpush1.msra.mxu0 0.0
    %747 = vmatprep.subr.mxu0 0.0
    %748 = vmatpush1.msra.mxu0 0.0
    %749 = vmatprep.subr.mxu0 0.0
    %750 = vmatpush1.msra.mxu0 0.0
    %751 = vmatprep.subr.mxu0 0.0
    %752 = vmatpush1.msra.mxu0 0.0
    %753 = vmatprep.subr.mxu0 0.0
    %754 = vmatpush1.msra.mxu0 0.0
    %755 = vmatprep.subr.mxu0 0.0
    %756 = vmatpush1.msra.mxu0 0.0
    %757 = vmatprep.subr.mxu0 0.0
    %758 = vmatpush1.msra.mxu0 0.0
    %759 = vmatprep.subr.mxu0 0.0
    %760 = vmatpush1.msra.mxu0 0.0
    %761 = vmatprep.subr.mxu0 0.0
    %762 = vmatpush1.msra.mxu0 0.0
    %763 = vmatprep.subr.mxu0 0.0
    %764 = vmatpush1.msra.mxu0 0.0
    %765 = vmatprep.subr.mxu0 0.0
    %766 = vmatpush1.msra.mxu0 %v109
    %767 = vmatprep.subr.mxu0 0.0
    %768 = vmatpush1.msra.mxu0 %v108
    %769 = vmatprep.subr.mxu0 0.0
    %770 = vmatpush1.msra.mxu0 %v107
    %771 = vmatprep.subr.mxu0 0.0
    %772 = vmatpush1.msra.mxu0 %v106
    %773 = vmatprep.subr.mxu0 0.0
    %774 = vmatpush2.msra.mxu0 0.0
    %775 = vmatprep.subr.mxu0 0.0
    %776 = vmatpush2.msra.mxu0 0.0
    %777 = vmatprep.subr.mxu0 0.0
    %778 = vmatpush2.msra.mxu0 0.0
    %779 = vmatprep.subr.mxu0 0.0
    %780 = vmatpush2.msra.mxu0 0.0
    %781 = vmatprep.subr.mxu0 0.0
    %782 = vmatpush2.msra.mxu0 0.0
    %783 = vmatprep.subr.mxu0 0.0
    %784 = vmatpush2.msra.mxu0 0.0
    %785 = vmatprep.subr.mxu0 0.0
    %786 = vmatpush2.msra.mxu0 0.0
    %787 = vmatprep.subr.mxu0 0.0
    %788 = vmatpush2.msra.mxu0 0.0
    %789 = vmatprep.subr.mxu0 0.0
    %790 = vmatpush2.msra.mxu0 0.0
    %791 = vmatprep.subr.mxu0 0.0
    %792 = vmatpush2.msra.mxu0 0.0
    %793 = vmatprep.subr.mxu0 0.0
    %794 = vmatpush2.msra.mxu0 0.0
    %795 = vmatprep.subr.mxu0 0.0
    %796 = vmatpush2.msra.mxu0 0.0
    %797 = vmatprep.subr.mxu0 0.0
    %798 = vmatpush2.msra.mxu0 0.0
    %799 = vmatprep.subr.mxu0 0.0
    %800 = vmatpush2.msra.mxu0 0.0
    %801 = vmatprep.subr.mxu0 0.0
    %802 = vmatpush2.msra.mxu0 0.0
    %803 = vmatprep.subr.mxu0 0.0
    %804 = vmatpush2.msra.mxu0 0.0
    %805 = vmatprep.mubr.f32.mxu0 0.0
    %806 = vmatmul.mubr.f32.gmra.mxu0 %v739
    %v807 = vpop.f32.mrf.mxu0
    %v808 = vadd.f32 %v730, %v807
    %v809 = vpop.f32.mrf.mxu0
    %810 = vdwg.mxu0
    %v811 = vxor.u32 %v808, 2147483648
    %v812 = vmul.f32 %v811, 1.442695
    %v813 = vpow.pop %v812
    %v814 = vadd.f32 %v813, 1.0
    %v815 = vrcp.pop %v814
    %v816 = vmul.f32 1.0, %v815
    %v817 = vmul.f32 %v816, %v737
    %v819 = vsel %vm357, %v817, 0
    %821 = vmatprep.subr.mxu0 0.0
    %822 = vmatpush1.msra.mxu0 0.0
    %823 = vmatprep.subr.mxu0 0.0
    %824 = vmatpush1.msra.mxu0 0.0
    %825 = vmatprep.subr.mxu0 0.0
    %826 = vmatpush1.msra.mxu0 0.0
    %827 = vmatprep.subr.mxu0 0.0
    %828 = vmatpush1.msra.mxu0 0.0
    %829 = vmatprep.subr.mxu0 0.0
    %830 = vmatpush1.msra.mxu0 0.0
    %831 = vmatprep.subr.mxu0 0.0
    %832 = vmatpush1.msra.mxu0 0.0
    %833 = vmatprep.subr.mxu0 0.0
    %834 = vmatpush1.msra.mxu0 0.0
    %835 = vmatprep.subr.mxu0 0.0
    %836 = vmatpush1.msra.mxu0 0.0
    %837 = vmatprep.subr.mxu0 0.0
    %838 = vmatpush1.msra.mxu0 0.0
    %839 = vmatprep.subr.mxu0 0.0
    %840 = vmatpush1.msra.mxu0 0.0
    %841 = vmatprep.subr.mxu0 0.0
    %842 = vmatpush1.msra.mxu0 0.0
    %843 = vmatprep.subr.mxu0 0.0
    %844 = vmatpush1.msra.mxu0 0.0
    %845 = vmatprep.subr.mxu0 0.0
    %846 = vmatpush1.msra.mxu0 %v113
    %847 = vmatprep.subr.mxu0 0.0
    %848 = vmatpush1.msra.mxu0 %v112
    %849 = vmatprep.subr.mxu0 0.0
    %850 = vmatpush1.msra.mxu0 %v111
    %851 = vmatprep.subr.mxu0 0.0
    %852 = vmatpush1.msra.mxu0 %v110
    %853 = vmatprep.subr.mxu0 0.0
    %854 = vmatpush2.msra.mxu0 0.0
    %855 = vmatprep.subr.mxu0 0.0
    %856 = vmatpush2.msra.mxu0 0.0
    %857 = vmatprep.subr.mxu0 0.0
    %858 = vmatpush2.msra.mxu0 0.0
    %859 = vmatprep.subr.mxu0 0.0
    %860 = vmatpush2.msra.mxu0 0.0
    %861 = vmatprep.subr.mxu0 0.0
    %862 = vmatpush2.msra.mxu0 0.0
    %863 = vmatprep.subr.mxu0 0.0
    %864 = vmatpush2.msra.mxu0 0.0
    %865 = vmatprep.subr.mxu0 0.0
    %866 = vmatpush2.msra.mxu0 0.0
    %867 = vmatprep.subr.mxu0 0.0
    %868 = vmatpush2.msra.mxu0 0.0
    %869 = vmatprep.subr.mxu0 0.0
    %870 = vmatpush2.msra.mxu0 0.0
    %871 = vmatprep.subr.mxu0 0.0
    %872 = vmatpush2.msra.mxu0 0.0
    %873 = vmatprep.subr.mxu0 0.0
    %874 = vmatpush2.msra.mxu0 0.0
    %875 = vmatprep.subr.mxu0 0.0
    %876 = vmatpush2.msra.mxu0 0.0
    %877 = vmatprep.subr.mxu0 0.0
    %878 = vmatpush2.msra.mxu0 0.0
    %879 = vmatprep.subr.mxu0 0.0
    %880 = vmatpush2.msra.mxu0 0.0
    %881 = vmatprep.subr.mxu0 0.0
    %882 = vmatpush2.msra.mxu0 0.0
    %883 = vmatprep.subr.mxu0 0.0
    %884 = vmatpush2.msra.mxu0 0.0
    %885 = vmatprep.mubr.f32.mxu0 0.0
    %886 = vmatmul.mubr.f32.gmra.mxu0 %v819
    %v887 = vpop.f32.mrf.mxu0
    %v888 = vadd.f32 %v732, %v887
    %v889 = vpop.f32.mrf.mxu0
    %890 = vdwg.mxu0
    %v891 = vtanh.pop %v888
    %v892 = vsub.f32 1.0, %v816
    %893 = vrot.lane.b32.xlu0 %v737, 32
    %v894 = vpop.permute.xlu0 %893
    %v896 = vmul.f32 %v892, %v894
    %898 = vrot.lane.b32.xlu0 %v891, 32
    %v899 = vpop.permute.xlu0 %898
    %v901 = vmul.f32 %v816, %v899
    %v902 = vadd.f32 %v896, %v901
    %s903 = scalar_lea.vmem [#allocation6], 4
    %v904 = vld [vmem:[%s903] sm:$0x3]
    %s905 = scalar_lea.vmem [#allocation4], 4
    %v906 = vld [vmem:[%s905] sm:$0x3]
    %s907 = scalar_lea.vmem [#allocation5], 4
    %v908 = vld [vmem:[%s907] sm:$0x3]
    %910 = vrot.lane.b32.xlu0 %v902, 96
    %v911 = vpop.permute.xlu0 %910
    %v913 = vmul.f32 %v904, %v911
    %v915 = vsel %vm357, %v913, 0
    %917 = vmatprep.subr.mxu0 0.0
    %918 = vmatpush1.msra.mxu0 0.0
    %919 = vmatprep.subr.mxu0 0.0
    %920 = vmatpush1.msra.mxu0 0.0
    %921 = vmatprep.subr.mxu0 0.0
    %922 = vmatpush1.msra.mxu0 0.0
    %923 = vmatprep.subr.mxu0 0.0
    %924 = vmatpush1.msra.mxu0 0.0
    %925 = vmatprep.subr.mxu0 0.0
    %926 = vmatpush1.msra.mxu0 0.0
    %927 = vmatprep.subr.mxu0 0.0
    %928 = vmatpush1.msra.mxu0 0.0
    %929 = vmatprep.subr.mxu0 0.0
    %930 = vmatpush1.msra.mxu0 0.0
    %931 = vmatprep.subr.mxu0 0.0
    %932 = vmatpush1.msra.mxu0 0.0
    %933 = vmatprep.subr.mxu0 0.0
    %934 = vmatpush1.msra.mxu0 0.0
    %935 = vmatprep.subr.mxu0 0.0
    %936 = vmatpush1.msra.mxu0 0.0
    %937 = vmatprep.subr.mxu0 0.0
    %938 = vmatpush1.msra.mxu0 0.0
    %939 = vmatprep.subr.mxu0 0.0
    %940 = vmatpush1.msra.mxu0 0.0
    %941 = vmatprep.subr.mxu0 0.0
    %942 = vmatpush1.msra.mxu0 %v109
    %943 = vmatprep.subr.mxu0 0.0
    %944 = vmatpush1.msra.mxu0 %v108
    %945 = vmatprep.subr.mxu0 0.0
    %946 = vmatpush1.msra.mxu0 %v107
    %947 = vmatprep.subr.mxu0 0.0
    %948 = vmatpush1.msra.mxu0 %v106
    %949 = vmatprep.subr.mxu0 0.0
    %950 = vmatpush2.msra.mxu0 0.0
    %951 = vmatprep.subr.mxu0 0.0
    %952 = vmatpush2.msra.mxu0 0.0
    %953 = vmatprep.subr.mxu0 0.0
    %954 = vmatpush2.msra.mxu0 0.0
    %955 = vmatprep.subr.mxu0 0.0
    %956 = vmatpush2.msra.mxu0 0.0
    %957 = vmatprep.subr.mxu0 0.0
    %958 = vmatpush2.msra.mxu0 0.0
    %959 = vmatprep.subr.mxu0 0.0
    %960 = vmatpush2.msra.mxu0 0.0
    %961 = vmatprep.subr.mxu0 0.0
    %962 = vmatpush2.msra.mxu0 0.0
    %963 = vmatprep.subr.mxu0 0.0
    %964 = vmatpush2.msra.mxu0 0.0
    %965 = vmatprep.subr.mxu0 0.0
    %966 = vmatpush2.msra.mxu0 0.0
    %967 = vmatprep.subr.mxu0 0.0
    %968 = vmatpush2.msra.mxu0 0.0
    %969 = vmatprep.subr.mxu0 0.0
    %970 = vmatpush2.msra.mxu0 0.0
    %971 = vmatprep.subr.mxu0 0.0
    %972 = vmatpush2.msra.mxu0 0.0
    %973 = vmatprep.subr.mxu0 0.0
    %974 = vmatpush2.msra.mxu0 0.0
    %975 = vmatprep.subr.mxu0 0.0
    %976 = vmatpush2.msra.mxu0 0.0
    %977 = vmatprep.subr.mxu0 0.0
    %978 = vmatpush2.msra.mxu0 0.0
    %979 = vmatprep.subr.mxu0 0.0
    %980 = vmatpush2.msra.mxu0 0.0
    %981 = vmatprep.mubr.f32.mxu0 0.0
    %982 = vmatmul.mubr.f32.gmra.mxu0 %v915
    %v983 = vpop.f32.mrf.mxu0
    %v984 = vadd.f32 %v906, %v983
    %v985 = vpop.f32.mrf.mxu0
    %986 = vdwg.mxu0
    %v987 = vxor.u32 %v984, 2147483648
    %v988 = vmul.f32 %v987, 1.442695
    %v989 = vpow.pop %v988
    %v990 = vadd.f32 %v989, 1.0
    %v991 = vrcp.pop %v990
    %v992 = vmul.f32 1.0, %v991
    %v993 = vmul.f32 %v992, %v913
    %v995 = vsel %vm357, %v993, 0
    %997 = vmatprep.subr.mxu0 0.0
    %998 = vmatpush1.msra.mxu0 0.0
    %999 = vmatprep.subr.mxu0 0.0
    %1000 = vmatpush1.msra.mxu0 0.0
    %1001 = vmatprep.subr.mxu0 0.0
    %1002 = vmatpush1.msra.mxu0 0.0
    %1003 = vmatprep.subr.mxu0 0.0
    %1004 = vmatpush1.msra.mxu0 0.0
    %1005 = vmatprep.subr.mxu0 0.0
    %1006 = vmatpush1.msra.mxu0 0.0
    %1007 = vmatprep.subr.mxu0 0.0
    %1008 = vmatpush1.msra.mxu0 0.0
    %1009 = vmatprep.subr.mxu0 0.0
    %1010 = vmatpush1.msra.mxu0 0.0
    %1011 = vmatprep.subr.mxu0 0.0
    %1012 = vmatpush1.msra.mxu0 0.0
    %1013 = vmatprep.subr.mxu0 0.0
    %1014 = vmatpush1.msra.mxu0 0.0
    %1015 = vmatprep.subr.mxu0 0.0
    %1016 = vmatpush1.msra.mxu0 0.0
    %1017 = vmatprep.subr.mxu0 0.0
    %1018 = vmatpush1.msra.mxu0 0.0
    %1019 = vmatprep.subr.mxu0 0.0
    %1020 = vmatpush1.msra.mxu0 0.0
    %1021 = vmatprep.subr.mxu0 0.0
    %1022 = vmatpush1.msra.mxu0 %v113
    %1023 = vmatprep.subr.mxu0 0.0
    %1024 = vmatpush1.msra.mxu0 %v112
    %1025 = vmatprep.subr.mxu0 0.0
    %1026 = vmatpush1.msra.mxu0 %v111
    %1027 = vmatprep.subr.mxu0 0.0
    %1028 = vmatpush1.msra.mxu0 %v110
    %1029 = vmatprep.subr.mxu0 0.0
    %1030 = vmatpush2.msra.mxu0 0.0
    %1031 = vmatprep.subr.mxu0 0.0
    %1032 = vmatpush2.msra.mxu0 0.0
    %1033 = vmatprep.subr.mxu0 0.0
    %1034 = vmatpush2.msra.mxu0 0.0
    %1035 = vmatprep.subr.mxu0 0.0
    %1036 = vmatpush2.msra.mxu0 0.0
    %1037 = vmatprep.subr.mxu0 0.0
    %1038 = vmatpush2.msra.mxu0 0.0
    %1039 = vmatprep.subr.mxu0 0.0
    %1040 = vmatpush2.msra.mxu0 0.0
    %1041 = vmatprep.subr.mxu0 0.0
    %1042 = vmatpush2.msra.mxu0 0.0
    %1043 = vmatprep.subr.mxu0 0.0
    %1044 = vmatpush2.msra.mxu0 0.0
    %1045 = vmatprep.subr.mxu0 0.0
    %1046 = vmatpush2.msra.mxu0 0.0
    %1047 = vmatprep.subr.mxu0 0.0
    %1048 = vmatpush2.msra.mxu0 0.0
    %1049 = vmatprep.subr.mxu0 0.0
    %1050 = vmatpush2.msra.mxu0 0.0
    %1051 = vmatprep.subr.mxu0 0.0
    %1052 = vmatpush2.msra.mxu0 0.0
    %1053 = vmatprep.subr.mxu0 0.0
    %1054 = vmatpush2.msra.mxu0 0.0
    %1055 = vmatprep.subr.mxu0 0.0
    %1056 = vmatpush2.msra.mxu0 0.0
    %1057 = vmatprep.subr.mxu0 0.0
    %1058 = vmatpush2.msra.mxu0 0.0
    %1059 = vmatprep.subr.mxu0 0.0
    %1060 = vmatpush2.msra.mxu0 0.0
    %1061 = vmatprep.mubr.f32.mxu0 0.0
    %1062 = vmatmul.mubr.f32.gmra.mxu0 %v995
    %v1063 = vpop.f32.mrf.mxu0
    %v1064 = vadd.f32 %v908, %v1063
    %v1065 = vpop.f32.mrf.mxu0
    %1066 = vdwg.mxu0
    %v1067 = vtanh.pop %v1064
    %v1068 = vsub.f32 1.0, %v992
    %1069 = vrot.lane.b32.xlu0 %v913, 32
    %v1070 = vpop.permute.xlu0 %1069
    %v1072 = vmul.f32 %v1068, %v1070
    %1074 = vrot.lane.b32.xlu0 %v1067, 32
    %v1075 = vpop.permute.xlu0 %1074
    %v1077 = vmul.f32 %v992, %v1075
    %v1078 = vadd.f32 %v1072, %v1077
    %s1079 = scalar_lea.vmem [#allocation6], 6
    %v1080 = vld [vmem:[%s1079] sm:$0x3]
    %s1081 = scalar_lea.vmem [#allocation4], 6
    %v1082 = vld [vmem:[%s1081] sm:$0x3]
    %s1083 = scalar_lea.vmem [#allocation5], 6
    %v1084 = vld [vmem:[%s1083] sm:$0x3]
    %1086 = vrot.lane.b32.xlu0 %v1078, 96
    %v1087 = vpop.permute.xlu0 %1086
    %v1089 = vmul.f32 %v1080, %v1087
    %v1091 = vsel %vm357, %v1089, 0
    %1093 = vmatprep.subr.mxu0 0.0
    %1094 = vmatpush1.msra.mxu0 0.0
    %1095 = vmatprep.subr.mxu0 0.0
    %1096 = vmatpush1.msra.mxu0 0.0
    %1097 = vmatprep.subr.mxu0 0.0
    %1098 = vmatpush1.msra.mxu0 0.0
    %1099 = vmatprep.subr.mxu0 0.0
    %1100 = vmatpush1.msra.mxu0 0.0
    %1101 = vmatprep.subr.mxu0 0.0
    %1102 = vmatpush1.msra.mxu0 0.0
    %1103 = vmatprep.subr.mxu0 0.0
    %1104 = vmatpush1.msra.mxu0 0.0
    %1105 = vmatprep.subr.mxu0 0.0
    %1106 = vmatpush1.msra.mxu0 0.0
    %1107 = vmatprep.subr.mxu0 0.0
    %1108 = vmatpush1.msra.mxu0 0.0
    %1109 = vmatprep.subr.mxu0 0.0
    %1110 = vmatpush1.msra.mxu0 0.0
    %1111 = vmatprep.subr.mxu0 0.0
    %1112 = vmatpush1.msra.mxu0 0.0
    %1113 = vmatprep.subr.mxu0 0.0
    %1114 = vmatpush1.msra.mxu0 0.0
    %1115 = vmatprep.subr.mxu0 0.0
    %1116 = vmatpush1.msra.mxu0 0.0
    %1117 = vmatprep.subr.mxu0 0.0
    %1118 = vmatpush1.msra.mxu0 %v109
    %1119 = vmatprep.subr.mxu0 0.0
    %1120 = vmatpush1.msra.mxu0 %v108
    %1121 = vmatprep.subr.mxu0 0.0
    %1122 = vmatpush1.msra.mxu0 %v107
    %1123 = vmatprep.subr.mxu0 0.0
    %1124 = vmatpush1.msra.mxu0 %v106
    %1125 = vmatprep.subr.mxu0 0.0
    %1126 = vmatpush2.msra.mxu0 0.0
    %1127 = vmatprep.subr.mxu0 0.0
    %1128 = vmatpush2.msra.mxu0 0.0
    %1129 = vmatprep.subr.mxu0 0.0
    %1130 = vmatpush2.msra.mxu0 0.0
    %1131 = vmatprep.subr.mxu0 0.0
    %1132 = vmatpush2.msra.mxu0 0.0
    %1133 = vmatprep.subr.mxu0 0.0
    %1134 = vmatpush2.msra.mxu0 0.0
    %1135 = vmatprep.subr.mxu0 0.0
    %1136 = vmatpush2.msra.mxu0 0.0
    %1137 = vmatprep.subr.mxu0 0.0
    %1138 = vmatpush2.msra.mxu0 0.0
    %1139 = vmatprep.subr.mxu0 0.0
    %1140 = vmatpush2.msra.mxu0 0.0
    %1141 = vmatprep.subr.mxu0 0.0
    %1142 = vmatpush2.msra.mxu0 0.0
    %1143 = vmatprep.subr.mxu0 0.0
    %1144 = vmatpush2.msra.mxu0 0.0
    %1145 = vmatprep.subr.mxu0 0.0
    %1146 = vmatpush2.msra.mxu0 0.0
    %1147 = vmatprep.subr.mxu0 0.0
    %1148 = vmatpush2.msra.mxu0 0.0
    %1149 = vmatprep.subr.mxu0 0.0
    %1150 = vmatpush2.msra.mxu0 0.0
    %1151 = vmatprep.subr.mxu0 0.0
    %1152 = vmatpush2.msra.mxu0 0.0
    %1153 = vmatprep.subr.mxu0 0.0
    %1154 = vmatpush2.msra.mxu0 0.0
    %1155 = vmatprep.subr.mxu0 0.0
    %1156 = vmatpush2.msra.mxu0 0.0
    %1157 = vmatprep.mubr.f32.mxu0 0.0
    %1158 = vmatmul.mubr.f32.gmra.mxu0 %v1091
    %v1159 = vpop.f32.mrf.mxu0
    %v1160 = vadd.f32 %v1082, %v1159
    %v1161 = vpop.f32.mrf.mxu0
    %1162 = vdwg.mxu0
    %v1163 = vxor.u32 %v1160, 2147483648
    %v1164 = vmul.f32 %v1163, 1.442695
    %v1165 = vpow.pop %v1164
    %v1166 = vadd.f32 %v1165, 1.0
    %v1167 = vrcp.pop %v1166
    %v1168 = vmul.f32 1.0, %v1167
    %v1169 = vmul.f32 %v1168, %v1089
    %v1171 = vsel %vm357, %v1169, 0
    %1173 = vmatprep.subr.mxu0 0.0
    %1174 = vmatpush1.msra.mxu0 0.0
    %1175 = vmatprep.subr.mxu0 0.0
    %1176 = vmatpush1.msra.mxu0 0.0
    %1177 = vmatprep.subr.mxu0 0.0
    %1178 = vmatpush1.msra.mxu0 0.0
    %1179 = vmatprep.subr.mxu0 0.0
    %1180 = vmatpush1.msra.mxu0 0.0
    %1181 = vmatprep.subr.mxu0 0.0
    %1182 = vmatpush1.msra.mxu0 0.0
    %1183 = vmatprep.subr.mxu0 0.0
    %1184 = vmatpush1.msra.mxu0 0.0
    %1185 = vmatprep.subr.mxu0 0.0
    %1186 = vmatpush1.msra.mxu0 0.0
    %1187 = vmatprep.subr.mxu0 0.0
    %1188 = vmatpush1.msra.mxu0 0.0
    %1189 = vmatprep.subr.mxu0 0.0
    %1190 = vmatpush1.msra.mxu0 0.0
    %1191 = vmatprep.subr.mxu0 0.0
    %1192 = vmatpush1.msra.mxu0 0.0
    %1193 = vmatprep.subr.mxu0 0.0
    %1194 = vmatpush1.msra.mxu0 0.0
    %1195 = vmatprep.subr.mxu0 0.0
    %1196 = vmatpush1.msra.mxu0 0.0
    %1197 = vmatprep.subr.mxu0 0.0
    %1198 = vmatpush1.msra.mxu0 %v113
    %1199 = vmatprep.subr.mxu0 0.0
    %1200 = vmatpush1.msra.mxu0 %v112
    %1201 = vmatprep.subr.mxu0 0.0
    %1202 = vmatpush1.msra.mxu0 %v111
    %1203 = vmatprep.subr.mxu0 0.0
    %1204 = vmatpush1.msra.mxu0 %v110
    %1205 = vmatprep.subr.mxu0 0.0
    %1206 = vmatpush2.msra.mxu0 0.0
    %1207 = vmatprep.subr.mxu0 0.0
    %1208 = vmatpush2.msra.mxu0 0.0
    %1209 = vmatprep.subr.mxu0 0.0
    %1210 = vmatpush2.msra.mxu0 0.0
    %1211 = vmatprep.subr.mxu0 0.0
    %1212 = vmatpush2.msra.mxu0 0.0
    %1213 = vmatprep.subr.mxu0 0.0
    %1214 = vmatpush2.msra.mxu0 0.0
    %1215 = vmatprep.subr.mxu0 0.0
    %1216 = vmatpush2.msra.mxu0 0.0
    %1217 = vmatprep.subr.mxu0 0.0
    %1218 = vmatpush2.msra.mxu0 0.0
    %1219 = vmatprep.subr.mxu0 0.0
    %1220 = vmatpush2.msra.mxu0 0.0
    %1221 = vmatprep.subr.mxu0 0.0
    %1222 = vmatpush2.msra.mxu0 0.0
    %1223 = vmatprep.subr.mxu0 0.0
    %1224 = vmatpush2.msra.mxu0 0.0
    %1225 = vmatprep.subr.mxu0 0.0
    %1226 = vmatpush2.msra.mxu0 0.0
    %1227 = vmatprep.subr.mxu0 0.0
    %1228 = vmatpush2.msra.mxu0 0.0
    %1229 = vmatprep.subr.mxu0 0.0
    %1230 = vmatpush2.msra.mxu0 0.0
    %1231 = vmatprep.subr.mxu0 0.0
    %1232 = vmatpush2.msra.mxu0 0.0
    %1233 = vmatprep.subr.mxu0 0.0
    %1234 = vmatpush2.msra.mxu0 0.0
    %1235 = vmatprep.subr.mxu0 0.0
    %1236 = vmatpush2.msra.mxu0 0.0
    %1237 = vmatprep.mubr.f32.mxu0 0.0
    %1238 = vmatmul.mubr.f32.gmra.mxu0 %v1171
    %v1239 = vpop.f32.mrf.mxu0
    %v1240 = vadd.f32 %v1084, %v1239
    %v1241 = vpop.f32.mrf.mxu0
    %1242 = vdwg.mxu0
    %v1243 = vtanh.pop %v1240
    %v1244 = vsub.f32 1.0, %v1168
    %1245 = vrot.lane.b32.xlu0 %v1089, 32
    %v1246 = vpop.permute.xlu0 %1245
    %v1248 = vmul.f32 %v1244, %v1246
    %1250 = vrot.lane.b32.xlu0 %v1243, 32
    %v1251 = vpop.permute.xlu0 %1250
    %v1253 = vmul.f32 %v1168, %v1251
    %v1254 = vadd.f32 %v1248, %v1253
    %s1255 = scalar_lea.vmem [#allocation6], 8
    %v1256 = vld [vmem:[%s1255] sm:$0x3]
    %s1257 = scalar_lea.vmem [#allocation4], 8
    %v1258 = vld [vmem:[%s1257] sm:$0x3]
    %s1259 = scalar_lea.vmem [#allocation5], 8
    %v1260 = vld [vmem:[%s1259] sm:$0x3]
    %1262 = vrot.lane.b32.xlu0 %v1254, 96
    %v1263 = vpop.permute.xlu0 %1262
    %v1265 = vmul.f32 %v1256, %v1263
    %v1267 = vsel %vm357, %v1265, 0
    %1269 = vmatprep.subr.mxu0 0.0
    %1270 = vmatpush1.msra.mxu0 0.0
    %1271 = vmatprep.subr.mxu0 0.0
    %1272 = vmatpush1.msra.mxu0 0.0
    %1273 = vmatprep.subr.mxu0 0.0
    %1274 = vmatpush1.msra.mxu0 0.0
    %1275 = vmatprep.subr.mxu0 0.0
    %1276 = vmatpush1.msra.mxu0 0.0
    %1277 = vmatprep.subr.mxu0 0.0
    %1278 = vmatpush1.msra.mxu0 0.0
    %1279 = vmatprep.subr.mxu0 0.0
    %1280 = vmatpush1.msra.mxu0 0.0
    %1281 = vmatprep.subr.mxu0 0.0
    %1282 = vmatpush1.msra.mxu0 0.0
    %1283 = vmatprep.subr.mxu0 0.0
    %1284 = vmatpush1.msra.mxu0 0.0
    %1285 = vmatprep.subr.mxu0 0.0
    %1286 = vmatpush1.msra.mxu0 0.0
    %1287 = vmatprep.subr.mxu0 0.0
    %1288 = vmatpush1.msra.mxu0 0.0
    %1289 = vmatprep.subr.mxu0 0.0
    %1290 = vmatpush1.msra.mxu0 0.0
    %1291 = vmatprep.subr.mxu0 0.0
    %1292 = vmatpush1.msra.mxu0 0.0
    %1293 = vmatprep.subr.mxu0 0.0
    %1294 = vmatpush1.msra.mxu0 %v109
    %1295 = vmatprep.subr.mxu0 0.0
    %1296 = vmatpush1.msra.mxu0 %v108
    %1297 = vmatprep.subr.mxu0 0.0
    %1298 = vmatpush1.msra.mxu0 %v107
    %1299 = vmatprep.subr.mxu0 0.0
    %1300 = vmatpush1.msra.mxu0 %v106
    %1301 = vmatprep.subr.mxu0 0.0
    %1302 = vmatpush2.msra.mxu0 0.0
    %1303 = vmatprep.subr.mxu0 0.0
    %1304 = vmatpush2.msra.mxu0 0.0
    %1305 = vmatprep.subr.mxu0 0.0
    %1306 = vmatpush2.msra.mxu0 0.0
    %1307 = vmatprep.subr.mxu0 0.0
    %1308 = vmatpush2.msra.mxu0 0.0
    %1309 = vmatprep.subr.mxu0 0.0
    %1310 = vmatpush2.msra.mxu0 0.0
    %1311 = vmatprep.subr.mxu0 0.0
    %1312 = vmatpush2.msra.mxu0 0.0
    %1313 = vmatprep.subr.mxu0 0.0
    %1314 = vmatpush2.msra.mxu0 0.0
    %1315 = vmatprep.subr.mxu0 0.0
    %1316 = vmatpush2.msra.mxu0 0.0
    %1317 = vmatprep.subr.mxu0 0.0
    %1318 = vmatpush2.msra.mxu0 0.0
    %1319 = vmatprep.subr.mxu0 0.0
    %1320 = vmatpush2.msra.mxu0 0.0
    %1321 = vmatprep.subr.mxu0 0.0
    %1322 = vmatpush2.msra.mxu0 0.0
    %1323 = vmatprep.subr.mxu0 0.0
    %1324 = vmatpush2.msra.mxu0 0.0
    %1325 = vmatprep.subr.mxu0 0.0
    %1326 = vmatpush2.msra.mxu0 0.0
    %1327 = vmatprep.subr.mxu0 0.0
    %1328 = vmatpush2.msra.mxu0 0.0
    %1329 = vmatprep.subr.mxu0 0.0
    %1330 = vmatpush2.msra.mxu0 0.0
    %1331 = vmatprep.subr.mxu0 0.0
    %1332 = vmatpush2.msra.mxu0 0.0
    %1333 = vmatprep.mubr.f32.mxu0 0.0
    %1334 = vmatmul.mubr.f32.gmra.mxu0 %v1267
    %v1335 = vpop.f32.mrf.mxu0
    %v1336 = vadd.f32 %v1258, %v1335
    %v1337 = vpop.f32.mrf.mxu0
    %1338 = vdwg.mxu0
    %v1339 = vxor.u32 %v1336, 2147483648
    %v1340 = vmul.f32 %v1339, 1.442695
    %v1341 = vpow.pop %v1340
    %v1342 = vadd.f32 %v1341, 1.0
    %v1343 = vrcp.pop %v1342
    %v1344 = vmul.f32 1.0, %v1343
    %v1345 = vmul.f32 %v1344, %v1265
    %v1347 = vsel %vm357, %v1345, 0
    %1349 = vmatprep.subr.mxu0 0.0
    %1350 = vmatpush1.msra.mxu0 0.0
    %1351 = vmatprep.subr.mxu0 0.0
    %1352 = vmatpush1.msra.mxu0 0.0
    %1353 = vmatprep.subr.mxu0 0.0
    %1354 = vmatpush1.msra.mxu0 0.0
    %1355 = vmatprep.subr.mxu0 0.0
    %1356 = vmatpush1.msra.mxu0 0.0
    %1357 = vmatprep.subr.mxu0 0.0
    %1358 = vmatpush1.msra.mxu0 0.0
    %1359 = vmatprep.subr.mxu0 0.0
    %1360 = vmatpush1.msra.mxu0 0.0
    %1361 = vmatprep.subr.mxu0 0.0
    %1362 = vmatpush1.msra.mxu0 0.0
    %1363 = vmatprep.subr.mxu0 0.0
    %1364 = vmatpush1.msra.mxu0 0.0
    %1365 = vmatprep.subr.mxu0 0.0
    %1366 = vmatpush1.msra.mxu0 0.0
    %1367 = vmatprep.subr.mxu0 0.0
    %1368 = vmatpush1.msra.mxu0 0.0
    %1369 = vmatprep.subr.mxu0 0.0
    %1370 = vmatpush1.msra.mxu0 0.0
    %1371 = vmatprep.subr.mxu0 0.0
    %1372 = vmatpush1.msra.mxu0 0.0
    %1373 = vmatprep.subr.mxu0 0.0
    %1374 = vmatpush1.msra.mxu0 %v113
    %1375 = vmatprep.subr.mxu0 0.0
    %1376 = vmatpush1.msra.mxu0 %v112
    %1377 = vmatprep.subr.mxu0 0.0
    %1378 = vmatpush1.msra.mxu0 %v111
    %1379 = vmatprep.subr.mxu0 0.0
    %1380 = vmatpush1.msra.mxu0 %v110
    %1381 = vmatprep.subr.mxu0 0.0
    %1382 = vmatpush2.msra.mxu0 0.0
    %1383 = vmatprep.subr.mxu0 0.0
    %1384 = vmatpush2.msra.mxu0 0.0
    %1385 = vmatprep.subr.mxu0 0.0
    %1386 = vmatpush2.msra.mxu0 0.0
    %1387 = vmatprep.subr.mxu0 0.0
    %1388 = vmatpush2.msra.mxu0 0.0
    %1389 = vmatprep.subr.mxu0 0.0
    %1390 = vmatpush2.msra.mxu0 0.0
    %1391 = vmatprep.subr.mxu0 0.0
    %1392 = vmatpush2.msra.mxu0 0.0
    %1393 = vmatprep.subr.mxu0 0.0
    %1394 = vmatpush2.msra.mxu0 0.0
    %1395 = vmatprep.subr.mxu0 0.0
    %1396 = vmatpush2.msra.mxu0 0.0
    %1397 = vmatprep.subr.mxu0 0.0
    %1398 = vmatpush2.msra.mxu0 0.0
    %1399 = vmatprep.subr.mxu0 0.0
    %1400 = vmatpush2.msra.mxu0 0.0
    %1401 = vmatprep.subr.mxu0 0.0
    %1402 = vmatpush2.msra.mxu0 0.0
    %1403 = vmatprep.subr.mxu0 0.0
    %1404 = vmatpush2.msra.mxu0 0.0
    %1405 = vmatprep.subr.mxu0 0.0
    %1406 = vmatpush2.msra.mxu0 0.0
    %1407 = vmatprep.subr.mxu0 0.0
    %1408 = vmatpush2.msra.mxu0 0.0
    %1409 = vmatprep.subr.mxu0 0.0
    %1410 = vmatpush2.msra.mxu0 0.0
    %1411 = vmatprep.subr.mxu0 0.0
    %1412 = vmatpush2.msra.mxu0 0.0
    %1413 = vmatprep.mubr.f32.mxu0 0.0
    %1414 = vmatmul.mubr.f32.gmra.mxu0 %v1347
    %v1415 = vpop.f32.mrf.mxu0
    %v1416 = vadd.f32 %v1260, %v1415
    %v1417 = vpop.f32.mrf.mxu0
    %1418 = vdwg.mxu0
    %v1419 = vtanh.pop %v1416
    %v1420 = vsub.f32 1.0, %v1344
    %1421 = vrot.lane.b32.xlu0 %v1265, 32
    %v1422 = vpop.permute.xlu0 %1421
    %v1424 = vmul.f32 %v1420, %v1422
    %1426 = vrot.lane.b32.xlu0 %v1419, 32
    %v1427 = vpop.permute.xlu0 %1426
    %v1429 = vmul.f32 %v1344, %v1427
    %v1430 = vadd.f32 %v1424, %v1429
    %s1431 = scalar_lea.vmem [#allocation6], 10
    %v1432 = vld [vmem:[%s1431] sm:$0x3]
    %s1433 = scalar_lea.vmem [#allocation4], 10
    %v1434 = vld [vmem:[%s1433] sm:$0x3]
    %s1435 = scalar_lea.vmem [#allocation5], 10
    %v1436 = vld [vmem:[%s1435] sm:$0x3]
    %1438 = vrot.lane.b32.xlu0 %v1430, 96
    %v1439 = vpop.permute.xlu0 %1438
    %v1441 = vmul.f32 %v1432, %v1439
    %v1443 = vsel %vm357, %v1441, 0
    %1445 = vmatprep.subr.mxu0 0.0
    %1446 = vmatpush1.msra.mxu0 0.0
    %1447 = vmatprep.subr.mxu0 0.0
    %1448 = vmatpush1.msra.mxu0 0.0
    %1449 = vmatprep.subr.mxu0 0.0
    %1450 = vmatpush1.msra.mxu0 0.0
    %1451 = vmatprep.subr.mxu0 0.0
    %1452 = vmatpush1.msra.mxu0 0.0
    %1453 = vmatprep.subr.mxu0 0.0
    %1454 = vmatpush1.msra.mxu0 0.0
    %1455 = vmatprep.subr.mxu0 0.0
    %1456 = vmatpush1.msra.mxu0 0.0
    %1457 = vmatprep.subr.mxu0 0.0
    %1458 = vmatpush1.msra.mxu0 0.0
    %1459 = vmatprep.subr.mxu0 0.0
    %1460 = vmatpush1.msra.mxu0 0.0
    %1461 = vmatprep.subr.mxu0 0.0
    %1462 = vmatpush1.msra.mxu0 0.0
    %1463 = vmatprep.subr.mxu0 0.0
    %1464 = vmatpush1.msra.mxu0 0.0
    %1465 = vmatprep.subr.mxu0 0.0
    %1466 = vmatpush1.msra.mxu0 0.0
    %1467 = vmatprep.subr.mxu0 0.0
    %1468 = vmatpush1.msra.mxu0 0.0
    %1469 = vmatprep.subr.mxu0 0.0
    %1470 = vmatpush1.msra.mxu0 %v109
    %1471 = vmatprep.subr.mxu0 0.0
    %1472 = vmatpush1.msra.mxu0 %v108
    %1473 = vmatprep.subr.mxu0 0.0
    %1474 = vmatpush1.msra.mxu0 %v107
    %1475 = vmatprep.subr.mxu0 0.0
    %1476 = vmatpush1.msra.mxu0 %v106
    %1477 = vmatprep.subr.mxu0 0.0
    %1478 = vmatpush2.msra.mxu0 0.0
    %1479 = vmatprep.subr.mxu0 0.0
    %1480 = vmatpush2.msra.mxu0 0.0
    %1481 = vmatprep.subr.mxu0 0.0
    %1482 = vmatpush2.msra.mxu0 0.0
    %1483 = vmatprep.subr.mxu0 0.0
    %1484 = vmatpush2.msra.mxu0 0.0
    %1485 = vmatprep.subr.mxu0 0.0
    %1486 = vmatpush2.msra.mxu0 0.0
    %1487 = vmatprep.subr.mxu0 0.0
    %1488 = vmatpush2.msra.mxu0 0.0
    %1489 = vmatprep.subr.mxu0 0.0
    %1490 = vmatpush2.msra.mxu0 0.0
    %1491 = vmatprep.subr.mxu0 0.0
    %1492 = vmatpush2.msra.mxu0 0.0
    %1493 = vmatprep.subr.mxu0 0.0
    %1494 = vmatpush2.msra.mxu0 0.0
    %1495 = vmatprep.subr.mxu0 0.0
    %1496 = vmatpush2.msra.mxu0 0.0
    %1497 = vmatprep.subr.mxu0 0.0
    %1498 = vmatpush2.msra.mxu0 0.0
    %1499 = vmatprep.subr.mxu0 0.0
    %1500 = vmatpush2.msra.mxu0 0.0
    %1501 = vmatprep.subr.mxu0 0.0
    %1502 = vmatpush2.msra.mxu0 0.0
    %1503 = vmatprep.subr.mxu0 0.0
    %1504 = vmatpush2.msra.mxu0 0.0
    %1505 = vmatprep.subr.mxu0 0.0
    %1506 = vmatpush2.msra.mxu0 0.0
    %1507 = vmatprep.subr.mxu0 0.0
    %1508 = vmatpush2.msra.mxu0 0.0
    %1509 = vmatprep.mubr.f32.mxu0 0.0
    %1510 = vmatmul.mubr.f32.gmra.mxu0 %v1443
    %v1511 = vpop.f32.mrf.mxu0
    %v1512 = vadd.f32 %v1434, %v1511
    %v1513 = vpop.f32.mrf.mxu0
    %1514 = vdwg.mxu0
    %v1515 = vxor.u32 %v1512, 2147483648
    %v1516 = vmul.f32 %v1515, 1.442695
    %v1517 = vpow.pop %v1516
    %v1518 = vadd.f32 %v1517, 1.0
    %v1519 = vrcp.pop %v1518
    %v1520 = vmul.f32 1.0, %v1519
    %v1521 = vmul.f32 %v1520, %v1441
    %v1523 = vsel %vm357, %v1521, 0
    %1525 = vmatprep.subr.mxu0 0.0
    %1526 = vmatpush1.msra.mxu0 0.0
    %1527 = vmatprep.subr.mxu0 0.0
    %1528 = vmatpush1.msra.mxu0 0.0
    %1529 = vmatprep.subr.mxu0 0.0
    %1530 = vmatpush1.msra.mxu0 0.0
    %1531 = vmatprep.subr.mxu0 0.0
    %1532 = vmatpush1.msra.mxu0 0.0
    %1533 = vmatprep.subr.mxu0 0.0
    %1534 = vmatpush1.msra.mxu0 0.0
    %1535 = vmatprep.subr.mxu0 0.0
    %1536 = vmatpush1.msra.mxu0 0.0
    %1537 = vmatprep.subr.mxu0 0.0
    %1538 = vmatpush1.msra.mxu0 0.0
    %1539 = vmatprep.subr.mxu0 0.0
    %1540 = vmatpush1.msra.mxu0 0.0
    %1541 = vmatprep.subr.mxu0 0.0
    %1542 = vmatpush1.msra.mxu0 0.0
    %1543 = vmatprep.subr.mxu0 0.0
    %1544 = vmatpush1.msra.mxu0 0.0
    %1545 = vmatprep.subr.mxu0 0.0
    %1546 = vmatpush1.msra.mxu0 0.0
    %1547 = vmatprep.subr.mxu0 0.0
    %1548 = vmatpush1.msra.mxu0 0.0
    %1549 = vmatprep.subr.mxu0 0.0
    %1550 = vmatpush1.msra.mxu0 %v113
    %1551 = vmatprep.subr.mxu0 0.0
    %1552 = vmatpush1.msra.mxu0 %v112
    %1553 = vmatprep.subr.mxu0 0.0
    %1554 = vmatpush1.msra.mxu0 %v111
    %1555 = vmatprep.subr.mxu0 0.0
    %1556 = vmatpush1.msra.mxu0 %v110
    %1557 = vmatprep.subr.mxu0 0.0
    %1558 = vmatpush2.msra.mxu0 0.0
    %1559 = vmatprep.subr.mxu0 0.0
    %1560 = vmatpush2.msra.mxu0 0.0
    %1561 = vmatprep.subr.mxu0 0.0
    %1562 = vmatpush2.msra.mxu0 0.0
    %1563 = vmatprep.subr.mxu0 0.0
    %1564 = vmatpush2.msra.mxu0 0.0
    %1565 = vmatprep.subr.mxu0 0.0
    %1566 = vmatpush2.msra.mxu0 0.0
    %1567 = vmatprep.subr.mxu0 0.0
    %1568 = vmatpush2.msra.mxu0 0.0
    %1569 = vmatprep.subr.mxu0 0.0
    %1570 = vmatpush2.msra.mxu0 0.0
    %1571 = vmatprep.subr.mxu0 0.0
    %1572 = vmatpush2.msra.mxu0 0.0
    %1573 = vmatprep.subr.mxu0 0.0
    %1574 = vmatpush2.msra.mxu0 0.0
    %1575 = vmatprep.subr.mxu0 0.0
    %1576 = vmatpush2.msra.mxu0 0.0
    %1577 = vmatprep.subr.mxu0 0.0
    %1578 = vmatpush2.msra.mxu0 0.0
    %1579 = vmatprep.subr.mxu0 0.0
    %1580 = vmatpush2.msra.mxu0 0.0
    %1581 = vmatprep.subr.mxu0 0.0
    %1582 = vmatpush2.msra.mxu0 0.0
    %1583 = vmatprep.subr.mxu0 0.0
    %1584 = vmatpush2.msra.mxu0 0.0
    %1585 = vmatprep.subr.mxu0 0.0
    %1586 = vmatpush2.msra.mxu0 0.0
    %1587 = vmatprep.subr.mxu0 0.0
    %1588 = vmatpush2.msra.mxu0 0.0
    %1589 = vmatprep.mubr.f32.mxu0 0.0
    %1590 = vmatmul.mubr.f32.gmra.mxu0 %v1523
    %v1591 = vpop.f32.mrf.mxu0
    %v1592 = vadd.f32 %v1436, %v1591
    %v1593 = vpop.f32.mrf.mxu0
    %1594 = vdwg.mxu0
    %v1595 = vtanh.pop %v1592
    %v1596 = vsub.f32 1.0, %v1520
    %1597 = vrot.lane.b32.xlu0 %v1441, 32
    %v1598 = vpop.permute.xlu0 %1597
    %v1600 = vmul.f32 %v1596, %v1598
    %1602 = vrot.lane.b32.xlu0 %v1595, 32
    %v1603 = vpop.permute.xlu0 %1602
    %v1605 = vmul.f32 %v1520, %v1603
    %v1606 = vadd.f32 %v1600, %v1605
    %s1607 = scalar_lea.vmem [#allocation6], 12
    %v1608 = vld [vmem:[%s1607] sm:$0x3]
    %s1609 = scalar_lea.vmem [#allocation4], 12
    %v1610 = vld [vmem:[%s1609] sm:$0x3]
    %s1611 = scalar_lea.vmem [#allocation5], 12
    %v1612 = vld [vmem:[%s1611] sm:$0x3]
    %1614 = vrot.lane.b32.xlu0 %v1606, 96
    %v1615 = vpop.permute.xlu0 %1614
    %v1617 = vmul.f32 %v1608, %v1615
    %v1619 = vsel %vm357, %v1617, 0
    %1621 = vmatprep.subr.mxu0 0.0
    %1622 = vmatpush1.msra.mxu0 0.0
    %1623 = vmatprep.subr.mxu0 0.0
    %1624 = vmatpush1.msra.mxu0 0.0
    %1625 = vmatprep.subr.mxu0 0.0
    %1626 = vmatpush1.msra.mxu0 0.0
    %1627 = vmatprep.subr.mxu0 0.0
    %1628 = vmatpush1.msra.mxu0 0.0
    %1629 = vmatprep.subr.mxu0 0.0
    %1630 = vmatpush1.msra.mxu0 0.0
    %1631 = vmatprep.subr.mxu0 0.0
    %1632 = vmatpush1.msra.mxu0 0.0
    %1633 = vmatprep.subr.mxu0 0.0
    %1634 = vmatpush1.msra.mxu0 0.0
    %1635 = vmatprep.subr.mxu0 0.0
    %1636 = vmatpush1.msra.mxu0 0.0
    %1637 = vmatprep.subr.mxu0 0.0
    %1638 = vmatpush1.msra.mxu0 0.0
    %1639 = vmatprep.subr.mxu0 0.0
    %1640 = vmatpush1.msra.mxu0 0.0
    %1641 = vmatprep.subr.mxu0 0.0
    %1642 = vmatpush1.msra.mxu0 0.0
    %1643 = vmatprep.subr.mxu0 0.0
    %1644 = vmatpush1.msra.mxu0 0.0
    %1645 = vmatprep.subr.mxu0 0.0
    %1646 = vmatpush1.msra.mxu0 %v109
    %1647 = vmatprep.subr.mxu0 0.0
    %1648 = vmatpush1.msra.mxu0 %v108
    %1649 = vmatprep.subr.mxu0 0.0
    %1650 = vmatpush1.msra.mxu0 %v107
    %1651 = vmatprep.subr.mxu0 0.0
    %1652 = vmatpush1.msra.mxu0 %v106
    %1653 = vmatprep.subr.mxu0 0.0
    %1654 = vmatpush2.msra.mxu0 0.0
    %1655 = vmatprep.subr.mxu0 0.0
    %1656 = vmatpush2.msra.mxu0 0.0
    %1657 = vmatprep.subr.mxu0 0.0
    %1658 = vmatpush2.msra.mxu0 0.0
    %1659 = vmatprep.subr.mxu0 0.0
    %1660 = vmatpush2.msra.mxu0 0.0
    %1661 = vmatprep.subr.mxu0 0.0
    %1662 = vmatpush2.msra.mxu0 0.0
    %1663 = vmatprep.subr.mxu0 0.0
    %1664 = vmatpush2.msra.mxu0 0.0
    %1665 = vmatprep.subr.mxu0 0.0
    %1666 = vmatpush2.msra.mxu0 0.0
    %1667 = vmatprep.subr.mxu0 0.0
    %1668 = vmatpush2.msra.mxu0 0.0
    %1669 = vmatprep.subr.mxu0 0.0
    %1670 = vmatpush2.msra.mxu0 0.0
    %1671 = vmatprep.subr.mxu0 0.0
    %1672 = vmatpush2.msra.mxu0 0.0
    %1673 = vmatprep.subr.mxu0 0.0
    %1674 = vmatpush2.msra.mxu0 0.0
    %1675 = vmatprep.subr.mxu0 0.0
    %1676 = vmatpush2.msra.mxu0 0.0
    %1677 = vmatprep.subr.mxu0 0.0
    %1678 = vmatpush2.msra.mxu0 0.0
    %1679 = vmatprep.subr.mxu0 0.0
    %1680 = vmatpush2.msra.mxu0 0.0
    %1681 = vmatprep.subr.mxu0 0.0
    %1682 = vmatpush2.msra.mxu0 0.0
    %1683 = vmatprep.subr.mxu0 0.0
    %1684 = vmatpush2.msra.mxu0 0.0
    %1685 = vmatprep.mubr.f32.mxu0 0.0
    %1686 = vmatmul.mubr.f32.gmra.mxu0 %v1619
    %v1687 = vpop.f32.mrf.mxu0
    %v1688 = vadd.f32 %v1610, %v1687
    %v1689 = vpop.f32.mrf.mxu0
    %1690 = vdwg.mxu0
    %v1691 = vxor.u32 %v1688, 2147483648
    %v1692 = vmul.f32 %v1691, 1.442695
    %v1693 = vpow.pop %v1692
    %v1694 = vadd.f32 %v1693, 1.0
    %v1695 = vrcp.pop %v1694
    %v1696 = vmul.f32 1.0, %v1695
    %v1697 = vmul.f32 %v1696, %v1617
    %v1699 = vsel %vm357, %v1697, 0
    %1701 = vmatprep.subr.mxu0 0.0
    %1702 = vmatpush1.msra.mxu0 0.0
    %1703 = vmatprep.subr.mxu0 0.0
    %1704 = vmatpush1.msra.mxu0 0.0
    %1705 = vmatprep.subr.mxu0 0.0
    %1706 = vmatpush1.msra.mxu0 0.0
    %1707 = vmatprep.subr.mxu0 0.0
    %1708 = vmatpush1.msra.mxu0 0.0
    %1709 = vmatprep.subr.mxu0 0.0
    %1710 = vmatpush1.msra.mxu0 0.0
    %1711 = vmatprep.subr.mxu0 0.0
    %1712 = vmatpush1.msra.mxu0 0.0
    %1713 = vmatprep.subr.mxu0 0.0
    %1714 = vmatpush1.msra.mxu0 0.0
    %1715 = vmatprep.subr.mxu0 0.0
    %1716 = vmatpush1.msra.mxu0 0.0
    %1717 = vmatprep.subr.mxu0 0.0
    %1718 = vmatpush1.msra.mxu0 0.0
    %1719 = vmatprep.subr.mxu0 0.0
    %1720 = vmatpush1.msra.mxu0 0.0
    %1721 = vmatprep.subr.mxu0 0.0
    %1722 = vmatpush1.msra.mxu0 0.0
    %1723 = vmatprep.subr.mxu0 0.0
    %1724 = vmatpush1.msra.mxu0 0.0
    %1725 = vmatprep.subr.mxu0 0.0
    %1726 = vmatpush1.msra.mxu0 %v113
    %1727 = vmatprep.subr.mxu0 0.0
    %1728 = vmatpush1.msra.mxu0 %v112
    %1729 = vmatprep.subr.mxu0 0.0
    %1730 = vmatpush1.msra.mxu0 %v111
    %1731 = vmatprep.subr.mxu0 0.0
    %1732 = vmatpush1.msra.mxu0 %v110
    %1733 = vmatprep.subr.mxu0 0.0
    %1734 = vmatpush2.msra.mxu0 0.0
    %1735 = vmatprep.subr.mxu0 0.0
    %1736 = vmatpush2.msra.mxu0 0.0
    %1737 = vmatprep.subr.mxu0 0.0
    %1738 = vmatpush2.msra.mxu0 0.0
    %1739 = vmatprep.subr.mxu0 0.0
    %1740 = vmatpush2.msra.mxu0 0.0
    %1741 = vmatprep.subr.mxu0 0.0
    %1742 = vmatpush2.msra.mxu0 0.0
    %1743 = vmatprep.subr.mxu0 0.0
    %1744 = vmatpush2.msra.mxu0 0.0
    %1745 = vmatprep.subr.mxu0 0.0
    %1746 = vmatpush2.msra.mxu0 0.0
    %1747 = vmatprep.subr.mxu0 0.0
    %1748 = vmatpush2.msra.mxu0 0.0
    %1749 = vmatprep.subr.mxu0 0.0
    %1750 = vmatpush2.msra.mxu0 0.0
    %1751 = vmatprep.subr.mxu0 0.0
    %1752 = vmatpush2.msra.mxu0 0.0
    %1753 = vmatprep.subr.mxu0 0.0
    %1754 = vmatpush2.msra.mxu0 0.0
    %1755 = vmatprep.subr.mxu0 0.0
    %1756 = vmatpush2.msra.mxu0 0.0
    %1757 = vmatprep.subr.mxu0 0.0
    %1758 = vmatpush2.msra.mxu0 0.0
    %1759 = vmatprep.subr.mxu0 0.0
    %1760 = vmatpush2.msra.mxu0 0.0
    %1761 = vmatprep.subr.mxu0 0.0
    %1762 = vmatpush2.msra.mxu0 0.0
    %1763 = vmatprep.subr.mxu0 0.0
    %1764 = vmatpush2.msra.mxu0 0.0
    %1765 = vmatprep.mubr.f32.mxu0 0.0
    %1766 = vmatmul.mubr.f32.gmra.mxu0 %v1699
    %v1767 = vpop.f32.mrf.mxu0
    %v1768 = vadd.f32 %v1612, %v1767
    %v1769 = vpop.f32.mrf.mxu0
    %1770 = vdwg.mxu0
    %v1771 = vtanh.pop %v1768
    %v1772 = vsub.f32 1.0, %v1696
    %1773 = vrot.lane.b32.xlu0 %v1617, 32
    %v1774 = vpop.permute.xlu0 %1773
    %v1776 = vmul.f32 %v1772, %v1774
    %1778 = vrot.lane.b32.xlu0 %v1771, 32
    %v1779 = vpop.permute.xlu0 %1778
    %v1781 = vmul.f32 %v1696, %v1779
    %v1782 = vadd.f32 %v1776, %v1781
    %s1783 = scalar_lea.vmem [#allocation6], 14
    %v1784 = vld [vmem:[%s1783] sm:$0x3]
    %s1785 = scalar_lea.vmem [#allocation4], 14
    %v1786 = vld [vmem:[%s1785] sm:$0x3]
    %s1787 = scalar_lea.vmem [#allocation5], 14
    %v1788 = vld [vmem:[%s1787] sm:$0x3]
    %1790 = vrot.lane.b32.xlu0 %v1782, 96
    %v1791 = vpop.permute.xlu0 %1790
    %v1793 = vmul.f32 %v1784, %v1791
    %v1795 = vsel %vm357, %v1793, 0
    %1797 = vmatprep.subr.mxu0 0.0
    %1798 = vmatpush1.msra.mxu0 0.0
    %1799 = vmatprep.subr.mxu0 0.0
    %1800 = vmatpush1.msra.mxu0 0.0
    %1801 = vmatprep.subr.mxu0 0.0
    %1802 = vmatpush1.msra.mxu0 0.0
    %1803 = vmatprep.subr.mxu0 0.0
    %1804 = vmatpush1.msra.mxu0 0.0
    %1805 = vmatprep.subr.mxu0 0.0
    %1806 = vmatpush1.msra.mxu0 0.0
    %1807 = vmatprep.subr.mxu0 0.0
    %1808 = vmatpush1.msra.mxu0 0.0
    %1809 = vmatprep.subr.mxu0 0.0
    %1810 = vmatpush1.msra.mxu0 0.0
    %1811 = vmatprep.subr.mxu0 0.0
    %1812 = vmatpush1.msra.mxu0 0.0
    %1813 = vmatprep.subr.mxu0 0.0
    %1814 = vmatpush1.msra.mxu0 0.0
    %1815 = vmatprep.subr.mxu0 0.0
    %1816 = vmatpush1.msra.mxu0 0.0
    %1817 = vmatprep.subr.mxu0 0.0
    %1818 = vmatpush1.msra.mxu0 0.0
    %1819 = vmatprep.subr.mxu0 0.0
    %1820 = vmatpush1.msra.mxu0 0.0
    %1821 = vmatprep.subr.mxu0 0.0
    %1822 = vmatpush1.msra.mxu0 %v109
    %1823 = vmatprep.subr.mxu0 0.0
    %1824 = vmatpush1.msra.mxu0 %v108
    %1825 = vmatprep.subr.mxu0 0.0
    %1826 = vmatpush1.msra.mxu0 %v107
    %1827 = vmatprep.subr.mxu0 0.0
    %1828 = vmatpush1.msra.mxu0 %v106
    %1829 = vmatprep.subr.mxu0 0.0
    %1830 = vmatpush2.msra.mxu0 0.0
    %1831 = vmatprep.subr.mxu0 0.0
    %1832 = vmatpush2.msra.mxu0 0.0
    %1833 = vmatprep.subr.mxu0 0.0
    %1834 = vmatpush2.msra.mxu0 0.0
    %1835 = vmatprep.subr.mxu0 0.0
    %1836 = vmatpush2.msra.mxu0 0.0
    %1837 = vmatprep.subr.mxu0 0.0
    %1838 = vmatpush2.msra.mxu0 0.0
    %1839 = vmatprep.subr.mxu0 0.0
    %1840 = vmatpush2.msra.mxu0 0.0
    %1841 = vmatprep.subr.mxu0 0.0
    %1842 = vmatpush2.msra.mxu0 0.0
    %1843 = vmatprep.subr.mxu0 0.0
    %1844 = vmatpush2.msra.mxu0 0.0
    %1845 = vmatprep.subr.mxu0 0.0
    %1846 = vmatpush2.msra.mxu0 0.0
    %1847 = vmatprep.subr.mxu0 0.0
    %1848 = vmatpush2.msra.mxu0 0.0
    %1849 = vmatprep.subr.mxu0 0.0
    %1850 = vmatpush2.msra.mxu0 0.0
    %1851 = vmatprep.subr.mxu0 0.0
    %1852 = vmatpush2.msra.mxu0 0.0
    %1853 = vmatprep.subr.mxu0 0.0
    %1854 = vmatpush2.msra.mxu0 0.0
    %1855 = vmatprep.subr.mxu0 0.0
    %1856 = vmatpush2.msra.mxu0 0.0
    %1857 = vmatprep.subr.mxu0 0.0
    %1858 = vmatpush2.msra.mxu0 0.0
    %1859 = vmatprep.subr.mxu0 0.0
    %1860 = vmatpush2.msra.mxu0 0.0
    %1861 = vmatprep.mubr.f32.mxu0 0.0
    %1862 = vmatmul.mubr.f32.gmra.mxu0 %v1795
    %v1863 = vpop.f32.mrf.mxu0
    %v1864 = vadd.f32 %v1786, %v1863
    %v1865 = vpop.f32.mrf.mxu0
    %1866 = vdwg.mxu0
    %v1867 = vxor.u32 %v1864, 2147483648
    %v1868 = vmul.f32 %v1867, 1.442695
    %v1869 = vpow.pop %v1868
    %v1870 = vadd.f32 %v1869, 1.0
    %v1871 = vrcp.pop %v1870
    %v1872 = vmul.f32 1.0, %v1871
    %v1873 = vmul.f32 %v1872, %v1793
    %v1875 = vsel %vm357, %v1873, 0
    %1877 = vmatprep.subr.mxu0 0.0
    %1878 = vmatpush1.msra.mxu0 0.0
    %1879 = vmatprep.subr.mxu0 0.0
    %1880 = vmatpush1.msra.mxu0 0.0
    %1881 = vmatprep.subr.mxu0 0.0
    %1882 = vmatpush1.msra.mxu0 0.0
    %1883 = vmatprep.subr.mxu0 0.0
    %1884 = vmatpush1.msra.mxu0 0.0
    %1885 = vmatprep.subr.mxu0 0.0
    %1886 = vmatpush1.msra.mxu0 0.0
    %1887 = vmatprep.subr.mxu0 0.0
    %1888 = vmatpush1.msra.mxu0 0.0
    %1889 = vmatprep.subr.mxu0 0.0
    %1890 = vmatpush1.msra.mxu0 0.0
    %1891 = vmatprep.subr.mxu0 0.0
    %1892 = vmatpush1.msra.mxu0 0.0
    %1893 = vmatprep.subr.mxu0 0.0
    %1894 = vmatpush1.msra.mxu0 0.0
    %1895 = vmatprep.subr.mxu0 0.0
    %1896 = vmatpush1.msra.mxu0 0.0
    %1897 = vmatprep.subr.mxu0 0.0
    %1898 = vmatpush1.msra.mxu0 0.0
    %1899 = vmatprep.subr.mxu0 0.0
    %1900 = vmatpush1.msra.mxu0 0.0
    %1901 = vmatprep.subr.mxu0 0.0
    %1902 = vmatpush1.msra.mxu0 %v113
    %1903 = vmatprep.subr.mxu0 0.0
    %1904 = vmatpush1.msra.mxu0 %v112
    %1905 = vmatprep.subr.mxu0 0.0
    %1906 = vmatpush1.msra.mxu0 %v111
    %1907 = vmatprep.subr.mxu0 0.0
    %1908 = vmatpush1.msra.mxu0 %v110
    %1909 = vmatprep.subr.mxu0 0.0
    %1910 = vmatpush2.msra.mxu0 0.0
    %1911 = vmatprep.subr.mxu0 0.0
    %1912 = vmatpush2.msra.mxu0 0.0
    %1913 = vmatprep.subr.mxu0 0.0
    %1914 = vmatpush2.msra.mxu0 0.0
    %1915 = vmatprep.subr.mxu0 0.0
    %1916 = vmatpush2.msra.mxu0 0.0
    %1917 = vmatprep.subr.mxu0 0.0
    %1918 = vmatpush2.msra.mxu0 0.0
    %1919 = vmatprep.subr.mxu0 0.0
    %1920 = vmatpush2.msra.mxu0 0.0
    %1921 = vmatprep.subr.mxu0 0.0
    %1922 = vmatpush2.msra.mxu0 0.0
    %1923 = vmatprep.subr.mxu0 0.0
    %1924 = vmatpush2.msra.mxu0 0.0
    %1925 = vmatprep.subr.mxu0 0.0
    %1926 = vmatpush2.msra.mxu0 0.0
    %1927 = vmatprep.subr.mxu0 0.0
    %1928 = vmatpush2.msra.mxu0 0.0
    %1929 = vmatprep.subr.mxu0 0.0
    %1930 = vmatpush2.msra.mxu0 0.0
    %1931 = vmatprep.subr.mxu0 0.0
    %1932 = vmatpush2.msra.mxu0 0.0
    %1933 = vmatprep.subr.mxu0 0.0
    %1934 = vmatpush2.msra.mxu0 0.0
    %1935 = vmatprep.subr.mxu0 0.0
    %1936 = vmatpush2.msra.mxu0 0.0
    %1937 = vmatprep.subr.mxu0 0.0
    %1938 = vmatpush2.msra.mxu0 0.0
    %1939 = vmatprep.subr.mxu0 0.0
    %1940 = vmatpush2.msra.mxu0 0.0
    %1941 = vmatprep.mubr.f32.mxu0 0.0
    %1942 = vmatmul.mubr.f32.gmra.mxu0 %v1875
    %v1943 = vpop.f32.mrf.mxu0
    %v1944 = vadd.f32 %v1788, %v1943
    %v1945 = vpop.f32.mrf.mxu0
    %1946 = vdwg.mxu0
    %v1947 = vtanh.pop %v1944
    %v1948 = vsub.f32 1.0, %v1872
    %1949 = vrot.lane.b32.xlu0 %v1793, 32
    %v1950 = vpop.permute.xlu0 %1949
    %v1952 = vmul.f32 %v1948, %v1950
    %1954 = vrot.lane.b32.xlu0 %v1947, 32
    %v1955 = vpop.permute.xlu0 %1954
    %v1957 = vmul.f32 %v1872, %v1955
    %v1958 = vadd.f32 %v1952, %v1957
    %v1959 = vld [vmem:[%s10] sm:$0xff]
    %v1960 = vld [vmem:[%s10 + $0x8] sm:$0xff]
    %v1961 = vld [vmem:[%s10 + $0x10] sm:$0xff]
    %v1962 = vld [vmem:[%s10 + $0x18] sm:$0xff]
    %v1963 = vld [vmem:[#allocation12] sm:$0x1]
    %v1965 = vlaneseq
    %v1966 = vshrl.u32 %v1965, 7
    %v1967 = vsub.s32 0, %v1966
    %v1968 = vrot.slane %v1963, %v1967
    %1971 = vrot.lane.b32.xlu0 %v1958, 96
    %v1972 = vpop.permute.xlu0 %1971
    %v1973 = vsel %vm357, %v1972, 0
    %1975 = vmatprep.subr.mxu0 0.0
    %1976 = vmatpush1.msra.mxu0 0.0
    %1977 = vmatprep.subr.mxu0 0.0
    %1978 = vmatpush1.msra.mxu0 0.0
    %1979 = vmatprep.subr.mxu0 0.0
    %1980 = vmatpush1.msra.mxu0 0.0
    %1981 = vmatprep.subr.mxu0 0.0
    %1982 = vmatpush1.msra.mxu0 0.0
    %1983 = vmatprep.subr.mxu0 0.0
    %1984 = vmatpush1.msra.mxu0 0.0
    %1985 = vmatprep.subr.mxu0 0.0
    %1986 = vmatpush1.msra.mxu0 0.0
    %1987 = vmatprep.subr.mxu0 0.0
    %1988 = vmatpush1.msra.mxu0 0.0
    %1989 = vmatprep.subr.mxu0 0.0
    %1990 = vmatpush1.msra.mxu0 0.0
    %1991 = vmatprep.subr.mxu0 0.0
    %1992 = vmatpush1.msra.mxu0 0.0
    %1993 = vmatprep.subr.mxu0 0.0
    %1994 = vmatpush1.msra.mxu0 0.0
    %1995 = vmatprep.subr.mxu0 0.0
    %1996 = vmatpush1.msra.mxu0 0.0
    %1997 = vmatprep.subr.mxu0 0.0
    %1998 = vmatpush1.msra.mxu0 0.0
    %1999 = vmatprep.subr.mxu0 0.0
    %2000 = vmatpush1.msra.mxu0 %v1962
    %2001 = vmatprep.subr.mxu0 0.0
    %2002 = vmatpush1.msra.mxu0 %v1961
    %2003 = vmatprep.subr.mxu0 0.0
    %2004 = vmatpush1.msra.mxu0 %v1960
    %2005 = vmatprep.subr.mxu0 0.0
    %2006 = vmatpush1.msra.mxu0 %v1959
    %2007 = vmatprep.subr.mxu0 0.0
    %2008 = vmatpush2.msra.mxu0 0.0
    %2009 = vmatprep.subr.mxu0 0.0
    %2010 = vmatpush2.msra.mxu0 0.0
    %2011 = vmatprep.subr.mxu0 0.0
    %2012 = vmatpush2.msra.mxu0 0.0
    %2013 = vmatprep.subr.mxu0 0.0
    %2014 = vmatpush2.msra.mxu0 0.0
    %2015 = vmatprep.subr.mxu0 0.0
    %2016 = vmatpush2.msra.mxu0 0.0
    %2017 = vmatprep.subr.mxu0 0.0
    %2018 = vmatpush2.msra.mxu0 0.0
    %2019 = vmatprep.subr.mxu0 0.0
    %2020 = vmatpush2.msra.mxu0 0.0
    %2021 = vmatprep.subr.mxu0 0.0
    %2022 = vmatpush2.msra.mxu0 0.0
    %2023 = vmatprep.subr.mxu0 0.0
    %2024 = vmatpush2.msra.mxu0 0.0
    %2025 = vmatprep.subr.mxu0 0.0
    %2026 = vmatpush2.msra.mxu0 0.0
    %2027 = vmatprep.subr.mxu0 0.0
    %2028 = vmatpush2.msra.mxu0 0.0
    %2029 = vmatprep.subr.mxu0 0.0
    %2030 = vmatpush2.msra.mxu0 0.0
    %2031 = vmatprep.subr.mxu0 0.0
    %2032 = vmatpush2.msra.mxu0 0.0
    %2033 = vmatprep.subr.mxu0 0.0
    %2034 = vmatpush2.msra.mxu0 0.0
    %2035 = vmatprep.subr.mxu0 0.0
    %2036 = vmatpush2.msra.mxu0 0.0
    %2037 = vmatprep.subr.mxu0 0.0
    %2038 = vmatpush2.msra.mxu0 0.0
    %2039 = vmatprep.mubr.f32.mxu0 0.0
    %2040 = vmatmul.mubr.f32.gmra.mxu0 %v1973
    %v2041 = vpop.f32.mrf.mxu0
    %v2042 = vadd.f32 %v1968, %v2041
    %v2043 = vpop.f32.mrf.mxu0
    %2044 = vdwg.mxu0
    %v2045 = vld [vmem:[%s12] sm:$0xff]
    %v2046 = vld [vmem:[%s12 + $0x8] sm:$0xff]
    %v2047 = vld [vmem:[%s12 + $0x10] sm:$0xff]
    %v2048 = vld [vmem:[%s12 + $0x18] sm:$0xff]
    %v2049 = vld [vmem:[%s13] sm:$0x1]
    %v2051 = vlaneseq
    %v2052 = vshrl.u32 %v2051, 7
    %v2053 = vsub.s32 0, %v2052
    %v2054 = vrot.slane %v2049, %v2053
    %v2057 = vsel %vm357, %v2042, 0
    %2059 = vmatprep.subr.mxu0 0.0
    %2060 = vmatpush1.msra.mxu0 0.0
    %2061 = vmatprep.subr.mxu0 0.0
    %2062 = vmatpush1.msra.mxu0 0.0
    %2063 = vmatprep.subr.mxu0 0.0
    %2064 = vmatpush1.msra.mxu0 0.0
    %2065 = vmatprep.subr.mxu0 0.0
    %2066 = vmatpush1.msra.mxu0 0.0
    %2067 = vmatprep.subr.mxu0 0.0
    %2068 = vmatpush1.msra.mxu0 0.0
    %2069 = vmatprep.subr.mxu0 0.0
    %2070 = vmatpush1.msra.mxu0 0.0
    %2071 = vmatprep.subr.mxu0 0.0
    %2072 = vmatpush1.msra.mxu0 0.0
    %2073 = vmatprep.subr.mxu0 0.0
    %2074 = vmatpush1.msra.mxu0 0.0
    %2075 = vmatprep.subr.mxu0 0.0
    %2076 = vmatpush1.msra.mxu0 0.0
    %2077 = vmatprep.subr.mxu0 0.0
    %2078 = vmatpush1.msra.mxu0 0.0
    %2079 = vmatprep.subr.mxu0 0.0
    %2080 = vmatpush1.msra.mxu0 0.0
    %2081 = vmatprep.subr.mxu0 0.0
    %2082 = vmatpush1.msra.mxu0 0.0
    %2083 = vmatprep.subr.mxu0 0.0
    %2084 = vmatpush1.msra.mxu0 %v2048
    %2085 = vmatprep.subr.mxu0 0.0
    %2086 = vmatpush1.msra.mxu0 %v2047
    %2087 = vmatprep.subr.mxu0 0.0
    %2088 = vmatpush1.msra.mxu0 %v2046
    %2089 = vmatprep.subr.mxu0 0.0
    %2090 = vmatpush1.msra.mxu0 %v2045
    %2091 = vmatprep.subr.mxu0 0.0
    %2092 = vmatpush2.msra.mxu0 0.0
    %2093 = vmatprep.subr.mxu0 0.0
    %2094 = vmatpush2.msra.mxu0 0.0
    %2095 = vmatprep.subr.mxu0 0.0
    %2096 = vmatpush2.msra.mxu0 0.0
    %2097 = vmatprep.subr.mxu0 0.0
    %2098 = vmatpush2.msra.mxu0 0.0
    %2099 = vmatprep.subr.mxu0 0.0
    %2100 = vmatpush2.msra.mxu0 0.0
    %2101 = vmatprep.subr.mxu0 0.0
    %2102 = vmatpush2.msra.mxu0 0.0
    %2103 = vmatprep.subr.mxu0 0.0
    %2104 = vmatpush2.msra.mxu0 0.0
    %2105 = vmatprep.subr.mxu0 0.0
    %2106 = vmatpush2.msra.mxu0 0.0
    %2107 = vmatprep.subr.mxu0 0.0
    %2108 = vmatpush2.msra.mxu0 0.0
    %2109 = vmatprep.subr.mxu0 0.0
    %2110 = vmatpush2.msra.mxu0 0.0
    %2111 = vmatprep.subr.mxu0 0.0
    %2112 = vmatpush2.msra.mxu0 0.0
    %2113 = vmatprep.subr.mxu0 0.0
    %2114 = vmatpush2.msra.mxu0 0.0
    %2115 = vmatprep.subr.mxu0 0.0
    %2116 = vmatpush2.msra.mxu0 0.0
    %2117 = vmatprep.subr.mxu0 0.0
    %2118 = vmatpush2.msra.mxu0 0.0
    %2119 = vmatprep.subr.mxu0 0.0
    %2120 = vmatpush2.msra.mxu0 0.0
    %2121 = vmatprep.subr.mxu0 0.0
    %2122 = vmatpush2.msra.mxu0 0.0
    %2123 = vmatprep.mubr.f32.mxu0 0.0
    %2124 = vmatmul.mubr.f32.gmra.mxu0 %v2057
    %v2125 = vpop.f32.mrf.mxu0
    %v2126 = vadd.f32 %v2054, %v2125
    %v2127 = vpop.f32.mrf.mxu0
    %2128 = vdwg.mxu0
    %v2130 = vsel %vm260, %v2126, 0
    %v2133 = vsel %vm267, %v122, 0
    %2135 = vmatprep.subr.mxu0 0.0
    %2136 = vmatpush1.msra.mxu0 0.0
    %2137 = vmatprep.subr.mxu0 0.0
    %2138 = vmatpush1.msra.mxu0 0.0
    %2139 = vmatprep.subr.mxu0 0.0
    %2140 = vmatpush1.msra.mxu0 0.0
    %2141 = vmatprep.subr.mxu0 0.0
    %2142 = vmatpush1.msra.mxu0 0.0
    %2143 = vmatprep.subr.mxu0 0.0
    %2144 = vmatpush1.msra.mxu0 0.0
    %2145 = vmatprep.subr.mxu0 0.0
    %2146 = vmatpush1.msra.mxu0 0.0
    %2147 = vmatprep.subr.mxu0 0.0
    %2148 = vmatpush1.msra.mxu0 0.0
    %2149 = vmatprep.subr.mxu0 0.0
    %2150 = vmatpush1.msra.mxu0 0.0
    %2151 = vmatprep.subr.mxu0 0.0
    %2152 = vmatpush1.msra.mxu0 0.0
    %2153 = vmatprep.subr.mxu0 0.0
    %2154 = vmatpush1.msra.mxu0 0.0
    %2155 = vmatprep.subr.mxu0 0.0
    %2156 = vmatpush1.msra.mxu0 0.0
    %2157 = vmatprep.subr.mxu0 0.0
    %2158 = vmatpush1.msra.mxu0 0.0
    %2159 = vmatprep.subr.mxu0 0.0
    %2160 = vmatpush1.msra.mxu0 0.0
    %2161 = vmatprep.subr.mxu0 0.0
    %2162 = vmatpush1.msra.mxu0 0.0
    %2163 = vmatprep.subr.mxu0 0.0
    %2164 = vmatpush1.msra.mxu0 0.0
    %2165 = vmatprep.subr.mxu0 0.0
    %2166 = vmatpush1.msra.mxu0 %v2133
    %2167 = vmatprep.subr.mxu0 0.0
    %2168 = vmatpush2.msra.mxu0 0.0
    %2169 = vmatprep.subr.mxu0 0.0
    %2170 = vmatpush2.msra.mxu0 0.0
    %2171 = vmatprep.subr.mxu0 0.0
    %2172 = vmatpush2.msra.mxu0 0.0
    %2173 = vmatprep.subr.mxu0 0.0
    %2174 = vmatpush2.msra.mxu0 0.0
    %2175 = vmatprep.subr.mxu0 0.0
    %2176 = vmatpush2.msra.mxu0 0.0
    %2177 = vmatprep.subr.mxu0 0.0
    %2178 = vmatpush2.msra.mxu0 0.0
    %2179 = vmatprep.subr.mxu0 0.0
    %2180 = vmatpush2.msra.mxu0 0.0
    %2181 = vmatprep.subr.mxu0 0.0
    %2182 = vmatpush2.msra.mxu0 0.0
    %2183 = vmatprep.subr.mxu0 0.0
    %2184 = vmatpush2.msra.mxu0 0.0
    %2185 = vmatprep.subr.mxu0 0.0
    %2186 = vmatpush2.msra.mxu0 0.0
    %2187 = vmatprep.subr.mxu0 0.0
    %2188 = vmatpush2.msra.mxu0 0.0
    %2189 = vmatprep.subr.mxu0 0.0
    %2190 = vmatpush2.msra.mxu0 0.0
    %2191 = vmatprep.subr.mxu0 0.0
    %2192 = vmatpush2.msra.mxu0 0.0
    %2193 = vmatprep.subr.mxu0 0.0
    %2194 = vmatpush2.msra.mxu0 0.0
    %2195 = vmatprep.subr.mxu0 0.0
    %2196 = vmatpush2.msra.mxu0 0.0
    %2197 = vmatprep.subr.mxu0 0.0
    %2198 = vmatpush2.msra.mxu0 0.0
    %2199 = vmatprep.mubr.f32.mxu0 0.0
    %2200 = vmatmul.mubr.f32.gmra.mxu0 %v2130
    %v2201 = vpop.f32.mrf.mxu0
    %v2202 = vadd.f32 %v132, %v2201
    %v2203 = vpop.f32.mrf.mxu0
    %2204 = vdwg.mxu0
    %v2205 = vld [vmem:[#allocation7] sm:$0x3]
    %v2206 = vmul.f32 %v2205, 0.0
    %v2208 = vsel %vm357, %v2206, 0
    %2210 = vmatprep.subr.mxu0 0.0
    %2211 = vmatpush1.msra.mxu0 0.0
    %2212 = vmatprep.subr.mxu0 0.0
    %2213 = vmatpush1.msra.mxu0 0.0
    %2214 = vmatprep.subr.mxu0 0.0
    %2215 = vmatpush1.msra.mxu0 0.0
    %2216 = vmatprep.subr.mxu0 0.0
    %2217 = vmatpush1.msra.mxu0 0.0
    %2218 = vmatprep.subr.mxu0 0.0
    %2219 = vmatpush1.msra.mxu0 0.0
    %2220 = vmatprep.subr.mxu0 0.0
    %2221 = vmatpush1.msra.mxu0 0.0
    %2222 = vmatprep.subr.mxu0 0.0
    %2223 = vmatpush1.msra.mxu0 0.0
    %2224 = vmatprep.subr.mxu0 0.0
    %2225 = vmatpush1.msra.mxu0 0.0
    %2226 = vmatprep.subr.mxu0 0.0
    %2227 = vmatpush1.msra.mxu0 0.0
    %2228 = vmatprep.subr.mxu0 0.0
    %2229 = vmatpush1.msra.mxu0 0.0
    %2230 = vmatprep.subr.mxu0 0.0
    %2231 = vmatpush1.msra.mxu0 0.0
    %2232 = vmatprep.subr.mxu0 0.0
    %2233 = vmatpush1.msra.mxu0 0.0
    %2234 = vmatprep.subr.mxu0 0.0
    %2235 = vmatpush1.msra.mxu0 %v117
    %2236 = vmatprep.subr.mxu0 0.0
    %2237 = vmatpush1.msra.mxu0 %v116
    %2238 = vmatprep.subr.mxu0 0.0
    %2239 = vmatpush1.msra.mxu0 %v115
    %2240 = vmatprep.subr.mxu0 0.0
    %2241 = vmatpush1.msra.mxu0 %v114
    %2242 = vmatprep.subr.mxu0 0.0
    %2243 = vmatpush2.msra.mxu0 0.0
    %2244 = vmatprep.subr.mxu0 0.0
    %2245 = vmatpush2.msra.mxu0 0.0
    %2246 = vmatprep.subr.mxu0 0.0
    %2247 = vmatpush2.msra.mxu0 0.0
    %2248 = vmatprep.subr.mxu0 0.0
    %2249 = vmatpush2.msra.mxu0 0.0
    %2250 = vmatprep.subr.mxu0 0.0
    %2251 = vmatpush2.msra.mxu0 0.0
    %2252 = vmatprep.subr.mxu0 0.0
    %2253 = vmatpush2.msra.mxu0 0.0
    %2254 = vmatprep.subr.mxu0 0.0
    %2255 = vmatpush2.msra.mxu0 0.0
    %2256 = vmatprep.subr.mxu0 0.0
    %2257 = vmatpush2.msra.mxu0 0.0
    %2258 = vmatprep.subr.mxu0 0.0
    %2259 = vmatpush2.msra.mxu0 0.0
    %2260 = vmatprep.subr.mxu0 0.0
    %2261 = vmatpush2.msra.mxu0 0.0
    %2262 = vmatprep.subr.mxu0 0.0
    %2263 = vmatpush2.msra.mxu0 0.0
    %2264 = vmatprep.subr.mxu0 0.0
    %2265 = vmatpush2.msra.mxu0 0.0
    %2266 = vmatprep.subr.mxu0 0.0
    %2267 = vmatpush2.msra.mxu0 0.0
    %2268 = vmatprep.subr.mxu0 0.0
    %2269 = vmatpush2.msra.mxu0 0.0
    %2270 = vmatprep.subr.mxu0 0.0
    %2271 = vmatpush2.msra.mxu0 0.0
    %2272 = vmatprep.subr.mxu0 0.0
    %2273 = vmatpush2.msra.mxu0 0.0
    %2274 = vmatprep.mubr.f32.mxu0 0.0
    %2275 = vmatmul.mubr.f32.gmra.mxu0 %v2208
    %v2276 = vpop.f32.mrf.mxu0
    %v2277 = vadd.f32 %v2202, %v2276
    %v2278 = vpop.f32.mrf.mxu0
    %2279 = vdwg.mxu0
    %v2280 = vxor.u32 %v2277, 2147483648
    %v2281 = vmul.f32 %v2280, 1.442695
    %v2282 = vpow.pop %v2281
    %v2283 = vadd.f32 %v2282, 1.0
    %v2284 = vrcp.pop %v2283
    %v2285 = vmul.f32 1.0, %v2284
    %v2286 = vmul.f32 %v2285, %v2206
    %2288 = vrot.lane.b32.xlu0 %v2202, 64
    %v2289 = vpop.permute.xlu0 %2288
    %v2292 = vsel %vm357, %v2286, 0
    %2294 = vmatprep.subr.mxu0 0.0
    %2295 = vmatpush1.msra.mxu0 0.0
    %2296 = vmatprep.subr.mxu0 0.0
    %2297 = vmatpush1.msra.mxu0 0.0
    %2298 = vmatprep.subr.mxu0 0.0
    %2299 = vmatpush1.msra.mxu0 0.0
    %2300 = vmatprep.subr.mxu0 0.0
    %2301 = vmatpush1.msra.mxu0 0.0
    %2302 = vmatprep.subr.mxu0 0.0
    %2303 = vmatpush1.msra.mxu0 0.0
    %2304 = vmatprep.subr.mxu0 0.0
    %2305 = vmatpush1.msra.mxu0 0.0
    %2306 = vmatprep.subr.mxu0 0.0
    %2307 = vmatpush1.msra.mxu0 0.0
    %2308 = vmatprep.subr.mxu0 0.0
    %2309 = vmatpush1.msra.mxu0 0.0
    %2310 = vmatprep.subr.mxu0 0.0
    %2311 = vmatpush1.msra.mxu0 0.0
    %2312 = vmatprep.subr.mxu0 0.0
    %2313 = vmatpush1.msra.mxu0 0.0
    %2314 = vmatprep.subr.mxu0 0.0
    %2315 = vmatpush1.msra.mxu0 0.0
    %2316 = vmatprep.subr.mxu0 0.0
    %2317 = vmatpush1.msra.mxu0 0.0
    %2318 = vmatprep.subr.mxu0 0.0
    %2319 = vmatpush1.msra.mxu0 %v121
    %2320 = vmatprep.subr.mxu0 0.0
    %2321 = vmatpush1.msra.mxu0 %v120
    %2322 = vmatprep.subr.mxu0 0.0
    %2323 = vmatpush1.msra.mxu0 %v119
    %2324 = vmatprep.subr.mxu0 0.0
    %2325 = vmatpush1.msra.mxu0 %v118
    %2326 = vmatprep.subr.mxu0 0.0
    %2327 = vmatpush2.msra.mxu0 0.0
    %2328 = vmatprep.subr.mxu0 0.0
    %2329 = vmatpush2.msra.mxu0 0.0
    %2330 = vmatprep.subr.mxu0 0.0
    %2331 = vmatpush2.msra.mxu0 0.0
    %2332 = vmatprep.subr.mxu0 0.0
    %2333 = vmatpush2.msra.mxu0 0.0
    %2334 = vmatprep.subr.mxu0 0.0
    %2335 = vmatpush2.msra.mxu0 0.0
    %2336 = vmatprep.subr.mxu0 0.0
    %2337 = vmatpush2.msra.mxu0 0.0
    %2338 = vmatprep.subr.mxu0 0.0
    %2339 = vmatpush2.msra.mxu0 0.0
    %2340 = vmatprep.subr.mxu0 0.0
    %2341 = vmatpush2.msra.mxu0 0.0
    %2342 = vmatprep.subr.mxu0 0.0
    %2343 = vmatpush2.msra.mxu0 0.0
    %2344 = vmatprep.subr.mxu0 0.0
    %2345 = vmatpush2.msra.mxu0 0.0
    %2346 = vmatprep.subr.mxu0 0.0
    %2347 = vmatpush2.msra.mxu0 0.0
    %2348 = vmatprep.subr.mxu0 0.0
    %2349 = vmatpush2.msra.mxu0 0.0
    %2350 = vmatprep.subr.mxu0 0.0
    %2351 = vmatpush2.msra.mxu0 0.0
    %2352 = vmatprep.subr.mxu0 0.0
    %2353 = vmatpush2.msra.mxu0 0.0
    %2354 = vmatprep.subr.mxu0 0.0
    %2355 = vmatpush2.msra.mxu0 0.0
    %2356 = vmatprep.subr.mxu0 0.0
    %2357 = vmatpush2.msra.mxu0 0.0
    %2358 = vmatprep.mubr.f32.mxu0 0.0
    %2359 = vmatmul.mubr.f32.gmra.mxu0 %v2292
    %v2360 = vpop.f32.mrf.mxu0
    %v2361 = vadd.f32 %v2289, %v2360
    %v2362 = vpop.f32.mrf.mxu0
    %2363 = vdwg.mxu0
    %v2364 = vtanh.pop %v2361
    %v2365 = vsub.f32 1.0, %v2285
    %2366 = vrot.lane.b32.xlu0 %v2206, 32
    %v2367 = vpop.permute.xlu0 %2366
    %v2369 = vmul.f32 %v2365, %v2367
    %2371 = vrot.lane.b32.xlu0 %v2364, 32
    %v2372 = vpop.permute.xlu0 %2371
    %v2374 = vmul.f32 %v2285, %v2372
    %v2375 = vadd.f32 %v2369, %v2374
    %2377 = vrot.lane.b32.xlu0 %v2375, 96
    %v2378 = vpop.permute.xlu0 %2377
    %v2379 = vsel %vm357, %v2378, 0
    %2381 = vmatprep.subr.mxu0 0.0
    %2382 = vmatpush1.msra.mxu0 0.0
    %2383 = vmatprep.subr.mxu0 0.0
    %2384 = vmatpush1.msra.mxu0 0.0
    %2385 = vmatprep.subr.mxu0 0.0
    %2386 = vmatpush1.msra.mxu0 0.0
    %2387 = vmatprep.subr.mxu0 0.0
    %2388 = vmatpush1.msra.mxu0 0.0
    %2389 = vmatprep.subr.mxu0 0.0
    %2390 = vmatpush1.msra.mxu0 0.0
    %2391 = vmatprep.subr.mxu0 0.0
    %2392 = vmatpush1.msra.mxu0 0.0
    %2393 = vmatprep.subr.mxu0 0.0
    %2394 = vmatpush1.msra.mxu0 0.0
    %2395 = vmatprep.subr.mxu0 0.0
    %2396 = vmatpush1.msra.mxu0 0.0
    %2397 = vmatprep.subr.mxu0 0.0
    %2398 = vmatpush1.msra.mxu0 0.0
    %2399 = vmatprep.subr.mxu0 0.0
    %2400 = vmatpush1.msra.mxu0 0.0
    %2401 = vmatprep.subr.mxu0 0.0
    %2402 = vmatpush1.msra.mxu0 0.0
    %2403 = vmatprep.subr.mxu0 0.0
    %2404 = vmatpush1.msra.mxu0 0.0
    %2405 = vmatprep.subr.mxu0 0.0
    %2406 = vmatpush1.msra.mxu0 %v126
    %2407 = vmatprep.subr.mxu0 0.0
    %2408 = vmatpush1.msra.mxu0 %v125
    %2409 = vmatprep.subr.mxu0 0.0
    %2410 = vmatpush1.msra.mxu0 %v124
    %2411 = vmatprep.subr.mxu0 0.0
    %2412 = vmatpush1.msra.mxu0 %v123
    %2413 = vmatprep.subr.mxu0 0.0
    %2414 = vmatpush2.msra.mxu0 0.0
    %2415 = vmatprep.subr.mxu0 0.0
    %2416 = vmatpush2.msra.mxu0 0.0
    %2417 = vmatprep.subr.mxu0 0.0
    %2418 = vmatpush2.msra.mxu0 0.0
    %2419 = vmatprep.subr.mxu0 0.0
    %2420 = vmatpush2.msra.mxu0 0.0
    %2421 = vmatprep.subr.mxu0 0.0
    %2422 = vmatpush2.msra.mxu0 0.0
    %2423 = vmatprep.subr.mxu0 0.0
    %2424 = vmatpush2.msra.mxu0 0.0
    %2425 = vmatprep.subr.mxu0 0.0
    %2426 = vmatpush2.msra.mxu0 0.0
    %2427 = vmatprep.subr.mxu0 0.0
    %2428 = vmatpush2.msra.mxu0 0.0
    %2429 = vmatprep.subr.mxu0 0.0
    %2430 = vmatpush2.msra.mxu0 0.0
    %2431 = vmatprep.subr.mxu0 0.0
    %2432 = vmatpush2.msra.mxu0 0.0
    %2433 = vmatprep.subr.mxu0 0.0
    %2434 = vmatpush2.msra.mxu0 0.0
    %2435 = vmatprep.subr.mxu0 0.0
    %2436 = vmatpush2.msra.mxu0 0.0
    %2437 = vmatprep.subr.mxu0 0.0
    %2438 = vmatpush2.msra.mxu0 0.0
    %2439 = vmatprep.subr.mxu0 0.0
    %2440 = vmatpush2.msra.mxu0 0.0
    %2441 = vmatprep.subr.mxu0 0.0
    %2442 = vmatpush2.msra.mxu0 0.0
    %2443 = vmatprep.subr.mxu0 0.0
    %2444 = vmatpush2.msra.mxu0 0.0
    %2445 = vmatprep.mubr.f32.mxu0 0.0
    %2446 = vmatmul.mubr.f32.gmra.mxu0 %v2379
    %v2447 = vpop.f32.mrf.mxu0
    %v2448 = vadd.f32 %v139, %v2447
    %v2449 = vpop.f32.mrf.mxu0
    %2450 = vdwg.mxu0
    %v2451 = vtanh.pop %v2448
    %2452 = vst.msk [vmem:[%s22] sm:$0x3] %vm146, %v2451
    %v2454 = vsel %vm260, %v2451, 0
    %2456 = vmatprep.subr.mxu0 0.0
    %2457 = vmatpush1.msra.mxu0 0.0
    %2458 = vmatprep.subr.mxu0 0.0
    %2459 = vmatpush1.msra.mxu0 0.0
    %2460 = vmatprep.subr.mxu0 0.0
    %2461 = vmatpush1.msra.mxu0 0.0
    %2462 = vmatprep.subr.mxu0 0.0
    %2463 = vmatpush1.msra.mxu0 0.0
    %2464 = vmatprep.subr.mxu0 0.0
    %2465 = vmatpush1.msra.mxu0 0.0
    %2466 = vmatprep.subr.mxu0 0.0
    %2467 = vmatpush1.msra.mxu0 0.0
    %2468 = vmatprep.subr.mxu0 0.0
    %2469 = vmatpush1.msra.mxu0 0.0
    %2470 = vmatprep.subr.mxu0 0.0
    %2471 = vmatpush1.msra.mxu0 0.0
    %2472 = vmatprep.subr.mxu0 0.0
    %2473 = vmatpush1.msra.mxu0 0.0
    %2474 = vmatprep.subr.mxu0 0.0
    %2475 = vmatpush1.msra.mxu0 0.0
    %2476 = vmatprep.subr.mxu0 0.0
    %2477 = vmatpush1.msra.mxu0 0.0
    %2478 = vmatprep.subr.mxu0 0.0
    %2479 = vmatpush1.msra.mxu0 0.0
    %2480 = vmatprep.subr.mxu0 0.0
    %2481 = vmatpush1.msra.mxu0 0.0
    %2482 = vmatprep.subr.mxu0 0.0
    %2483 = vmatpush1.msra.mxu0 0.0
    %2484 = vmatprep.subr.mxu0 0.0
    %2485 = vmatpush1.msra.mxu0 0.0
    %2486 = vmatprep.subr.mxu0 0.0
    %2487 = vmatpush1.msra.mxu0 %v2133
    %2488 = vmatprep.subr.mxu0 0.0
    %2489 = vmatpush2.msra.mxu0 0.0
    %2490 = vmatprep.subr.mxu0 0.0
    %2491 = vmatpush2.msra.mxu0 0.0
    %2492 = vmatprep.subr.mxu0 0.0
    %2493 = vmatpush2.msra.mxu0 0.0
    %2494 = vmatprep.subr.mxu0 0.0
    %2495 = vmatpush2.msra.mxu0 0.0
    %2496 = vmatprep.subr.mxu0 0.0
    %2497 = vmatpush2.msra.mxu0 0.0
    %2498 = vmatprep.subr.mxu0 0.0
    %2499 = vmatpush2.msra.mxu0 0.0
    %2500 = vmatprep.subr.mxu0 0.0
    %2501 = vmatpush2.msra.mxu0 0.0
    %2502 = vmatprep.subr.mxu0 0.0
    %2503 = vmatpush2.msra.mxu0 0.0
    %2504 = vmatprep.subr.mxu0 0.0
    %2505 = vmatpush2.msra.mxu0 0.0
    %2506 = vmatprep.subr.mxu0 0.0
    %2507 = vmatpush2.msra.mxu0 0.0
    %2508 = vmatprep.subr.mxu0 0.0
    %2509 = vmatpush2.msra.mxu0 0.0
    %2510 = vmatprep.subr.mxu0 0.0
    %2511 = vmatpush2.msra.mxu0 0.0
    %2512 = vmatprep.subr.mxu0 0.0
    %2513 = vmatpush2.msra.mxu0 0.0
    %2514 = vmatprep.subr.mxu0 0.0
    %2515 = vmatpush2.msra.mxu0 0.0
    %2516 = vmatprep.subr.mxu0 0.0
    %2517 = vmatpush2.msra.mxu0 0.0
    %2518 = vmatprep.subr.mxu0 0.0
    %2519 = vmatpush2.msra.mxu0 0.0
    %2520 = vmatprep.mubr.f32.mxu0 0.0
    %2521 = vmatmul.mubr.f32.gmra.mxu0 %v2454
    %v2522 = vpop.f32.mrf.mxu0
    %v2523 = vadd.f32 %v132, %v2522
    %v2524 = vpop.f32.mrf.mxu0
    %2525 = vdwg.mxu0
    %s2526 = scalar_lea.vmem [#allocation7], 2
    %v2527 = vld [vmem:[%s2526] sm:$0x3]
    %v2529 = vmul.f32 %v2527, %v2378
    %v2531 = vsel %vm357, %v2529, 0
    %2533 = vmatprep.subr.mxu0 0.0
    %2534 = vmatpush1.msra.mxu0 0.0
    %2535 = vmatprep.subr.mxu0 0.0
    %2536 = vmatpush1.msra.mxu0 0.0
    %2537 = vmatprep.subr.mxu0 0.0
    %2538 = vmatpush1.msra.mxu0 0.0
    %2539 = vmatprep.subr.mxu0 0.0
    %2540 = vmatpush1.msra.mxu0 0.0
    %2541 = vmatprep.subr.mxu0 0.0
    %2542 = vmatpush1.msra.mxu0 0.0
    %2543 = vmatprep.subr.mxu0 0.0
    %2544 = vmatpush1.msra.mxu0 0.0
    %2545 = vmatprep.subr.mxu0 0.0
    %2546 = vmatpush1.msra.mxu0 0.0
    %2547 = vmatprep.subr.mxu0 0.0
    %2548 = vmatpush1.msra.mxu0 0.0
    %2549 = vmatprep.subr.mxu0 0.0
    %2550 = vmatpush1.msra.mxu0 0.0
    %2551 = vmatprep.subr.mxu0 0.0
    %2552 = vmatpush1.msra.mxu0 0.0
    %2553 = vmatprep.subr.mxu0 0.0
    %2554 = vmatpush1.msra.mxu0 0.0
    %2555 = vmatprep.subr.mxu0 0.0
    %2556 = vmatpush1.msra.mxu0 0.0
    %2557 = vmatprep.subr.mxu0 0.0
    %2558 = vmatpush1.msra.mxu0 %v117
    %2559 = vmatprep.subr.mxu0 0.0
    %2560 = vmatpush1.msra.mxu0 %v116
    %2561 = vmatprep.subr.mxu0 0.0
    %2562 = vmatpush1.msra.mxu0 %v115
    %2563 = vmatprep.subr.mxu0 0.0
    %2564 = vmatpush1.msra.mxu0 %v114
    %2565 = vmatprep.subr.mxu0 0.0
    %2566 = vmatpush2.msra.mxu0 0.0
    %2567 = vmatprep.subr.mxu0 0.0
    %2568 = vmatpush2.msra.mxu0 0.0
    %2569 = vmatprep.subr.mxu0 0.0
    %2570 = vmatpush2.msra.mxu0 0.0
    %2571 = vmatprep.subr.mxu0 0.0
    %2572 = vmatpush2.msra.mxu0 0.0
    %2573 = vmatprep.subr.mxu0 0.0
    %2574 = vmatpush2.msra.mxu0 0.0
    %2575 = vmatprep.subr.mxu0 0.0
    %2576 = vmatpush2.msra.mxu0 0.0
    %2577 = vmatprep.subr.mxu0 0.0
    %2578 = vmatpush2.msra.mxu0 0.0
    %2579 = vmatprep.subr.mxu0 0.0
    %2580 = vmatpush2.msra.mxu0 0.0
    %2581 = vmatprep.subr.mxu0 0.0
    %2582 = vmatpush2.msra.mxu0 0.0
    %2583 = vmatprep.subr.mxu0 0.0
    %2584 = vmatpush2.msra.mxu0 0.0
    %2585 = vmatprep.subr.mxu0 0.0
    %2586 = vmatpush2.msra.mxu0 0.0
    %2587 = vmatprep.subr.mxu0 0.0
    %2588 = vmatpush2.msra.mxu0 0.0
    %2589 = vmatprep.subr.mxu0 0.0
    %2590 = vmatpush2.msra.mxu0 0.0
    %2591 = vmatprep.subr.mxu0 0.0
    %2592 = vmatpush2.msra.mxu0 0.0
    %2593 = vmatprep.subr.mxu0 0.0
    %2594 = vmatpush2.msra.mxu0 0.0
    %2595 = vmatprep.subr.mxu0 0.0
    %2596 = vmatpush2.msra.mxu0 0.0
    %2597 = vmatprep.mubr.f32.mxu0 0.0
    %2598 = vmatmul.mubr.f32.gmra.mxu0 %v2531
    %v2599 = vpop.f32.mrf.mxu0
    %v2600 = vadd.f32 %v2523, %v2599
    %v2601 = vpop.f32.mrf.mxu0
    %2602 = vdwg.mxu0
    %v2603 = vxor.u32 %v2600, 2147483648
    %v2604 = vmul.f32 %v2603, 1.442695
    %v2605 = vpow.pop %v2604
    %v2606 = vadd.f32 %v2605, 1.0
    %v2607 = vrcp.pop %v2606
    %v2608 = vmul.f32 1.0, %v2607
    %v2609 = vmul.f32 %v2608, %v2529
    %2611 = vrot.lane.b32.xlu0 %v2523, 64
    %v2612 = vpop.permute.xlu0 %2611
    %v2615 = vsel %vm357, %v2609, 0
    %2617 = vmatprep.subr.mxu0 0.0
    %2618 = vmatpush1.msra.mxu0 0.0
    %2619 = vmatprep.subr.mxu0 0.0
    %2620 = vmatpush1.msra.mxu0 0.0
    %2621 = vmatprep.subr.mxu0 0.0
    %2622 = vmatpush1.msra.mxu0 0.0
    %2623 = vmatprep.subr.mxu0 0.0
    %2624 = vmatpush1.msra.mxu0 0.0
    %2625 = vmatprep.subr.mxu0 0.0
    %2626 = vmatpush1.msra.mxu0 0.0
    %2627 = vmatprep.subr.mxu0 0.0
    %2628 = vmatpush1.msra.mxu0 0.0
    %2629 = vmatprep.subr.mxu0 0.0
    %2630 = vmatpush1.msra.mxu0 0.0
    %2631 = vmatprep.subr.mxu0 0.0
    %2632 = vmatpush1.msra.mxu0 0.0
    %2633 = vmatprep.subr.mxu0 0.0
    %2634 = vmatpush1.msra.mxu0 0.0
    %2635 = vmatprep.subr.mxu0 0.0
    %2636 = vmatpush1.msra.mxu0 0.0
    %2637 = vmatprep.subr.mxu0 0.0
    %2638 = vmatpush1.msra.mxu0 0.0
    %2639 = vmatprep.subr.mxu0 0.0
    %2640 = vmatpush1.msra.mxu0 0.0
    %2641 = vmatprep.subr.mxu0 0.0
    %2642 = vmatpush1.msra.mxu0 %v121
    %2643 = vmatprep.subr.mxu0 0.0
    %2644 = vmatpush1.msra.mxu0 %v120
    %2645 = vmatprep.subr.mxu0 0.0
    %2646 = vmatpush1.msra.mxu0 %v119
    %2647 = vmatprep.subr.mxu0 0.0
    %2648 = vmatpush1.msra.mxu0 %v118
    %2649 = vmatprep.subr.mxu0 0.0
    %2650 = vmatpush2.msra.mxu0 0.0
    %2651 = vmatprep.subr.mxu0 0.0
    %2652 = vmatpush2.msra.mxu0 0.0
    %2653 = vmatprep.subr.mxu0 0.0
    %2654 = vmatpush2.msra.mxu0 0.0
    %2655 = vmatprep.subr.mxu0 0.0
    %2656 = vmatpush2.msra.mxu0 0.0
    %2657 = vmatprep.subr.mxu0 0.0
    %2658 = vmatpush2.msra.mxu0 0.0
    %2659 = vmatprep.subr.mxu0 0.0
    %2660 = vmatpush2.msra.mxu0 0.0
    %2661 = vmatprep.subr.mxu0 0.0
    %2662 = vmatpush2.msra.mxu0 0.0
    %2663 = vmatprep.subr.mxu0 0.0
    %2664 = vmatpush2.msra.mxu0 0.0
    %2665 = vmatprep.subr.mxu0 0.0
    %2666 = vmatpush2.msra.mxu0 0.0
    %2667 = vmatprep.subr.mxu0 0.0
    %2668 = vmatpush2.msra.mxu0 0.0
    %2669 = vmatprep.subr.mxu0 0.0
    %2670 = vmatpush2.msra.mxu0 0.0
    %2671 = vmatprep.subr.mxu0 0.0
    %2672 = vmatpush2.msra.mxu0 0.0
    %2673 = vmatprep.subr.mxu0 0.0
    %2674 = vmatpush2.msra.mxu0 0.0
    %2675 = vmatprep.subr.mxu0 0.0
    %2676 = vmatpush2.msra.mxu0 0.0
    %2677 = vmatprep.subr.mxu0 0.0
    %2678 = vmatpush2.msra.mxu0 0.0
    %2679 = vmatprep.subr.mxu0 0.0
    %2680 = vmatpush2.msra.mxu0 0.0
    %2681 = vmatprep.mubr.f32.mxu0 0.0
    %2682 = vmatmul.mubr.f32.gmra.mxu0 %v2615
    %v2683 = vpop.f32.mrf.mxu0
    %v2684 = vadd.f32 %v2612, %v2683
    %v2685 = vpop.f32.mrf.mxu0
    %2686 = vdwg.mxu0
    %v2687 = vtanh.pop %v2684
    %v2688 = vsub.f32 1.0, %v2608
    %2689 = vrot.lane.b32.xlu0 %v2529, 32
    %v2690 = vpop.permute.xlu0 %2689
    %v2692 = vmul.f32 %v2688, %v2690
    %2694 = vrot.lane.b32.xlu0 %v2687, 32
    %v2695 = vpop.permute.xlu0 %2694
    %v2697 = vmul.f32 %v2608, %v2695
    %v2698 = vadd.f32 %v2692, %v2697
    %2700 = vrot.lane.b32.xlu0 %v2698, 96
    %v2701 = vpop.permute.xlu0 %2700
    %v2702 = vsel %vm357, %v2701, 0
    %2704 = vmatprep.subr.mxu0 0.0
    %2705 = vmatpush1.msra.mxu0 0.0
    %2706 = vmatprep.subr.mxu0 0.0
    %2707 = vmatpush1.msra.mxu0 0.0
    %2708 = vmatprep.subr.mxu0 0.0
    %2709 = vmatpush1.msra.mxu0 0.0
    %2710 = vmatprep.subr.mxu0 0.0
    %2711 = vmatpush1.msra.mxu0 0.0
    %2712 = vmatprep.subr.mxu0 0.0
    %2713 = vmatpush1.msra.mxu0 0.0
    %2714 = vmatprep.subr.mxu0 0.0
    %2715 = vmatpush1.msra.mxu0 0.0
    %2716 = vmatprep.subr.mxu0 0.0
    %2717 = vmatpush1.msra.mxu0 0.0
    %2718 = vmatprep.subr.mxu0 0.0
    %2719 = vmatpush1.msra.mxu0 0.0
    %2720 = vmatprep.subr.mxu0 0.0
    %2721 = vmatpush1.msra.mxu0 0.0
    %2722 = vmatprep.subr.mxu0 0.0
    %2723 = vmatpush1.msra.mxu0 0.0
    %2724 = vmatprep.subr.mxu0 0.0
    %2725 = vmatpush1.msra.mxu0 0.0
    %2726 = vmatprep.subr.mxu0 0.0
    %2727 = vmatpush1.msra.mxu0 0.0
    %2728 = vmatprep.subr.mxu0 0.0
    %2729 = vmatpush1.msra.mxu0 %v126
    %2730 = vmatprep.subr.mxu0 0.0
    %2731 = vmatpush1.msra.mxu0 %v125
    %2732 = vmatprep.subr.mxu0 0.0
    %2733 = vmatpush1.msra.mxu0 %v124
    %2734 = vmatprep.subr.mxu0 0.0
    %2735 = vmatpush1.msra.mxu0 %v123
    %2736 = vmatprep.subr.mxu0 0.0
    %2737 = vmatpush2.msra.mxu0 0.0
    %2738 = vmatprep.subr.mxu0 0.0
    %2739 = vmatpush2.msra.mxu0 0.0
    %2740 = vmatprep.subr.mxu0 0.0
    %2741 = vmatpush2.msra.mxu0 0.0
    %2742 = vmatprep.subr.mxu0 0.0
    %2743 = vmatpush2.msra.mxu0 0.0
    %2744 = vmatprep.subr.mxu0 0.0
    %2745 = vmatpush2.msra.mxu0 0.0
    %2746 = vmatprep.subr.mxu0 0.0
    %2747 = vmatpush2.msra.mxu0 0.0
    %2748 = vmatprep.subr.mxu0 0.0
    %2749 = vmatpush2.msra.mxu0 0.0
    %2750 = vmatprep.subr.mxu0 0.0
    %2751 = vmatpush2.msra.mxu0 0.0
    %2752 = vmatprep.subr.mxu0 0.0
    %2753 = vmatpush2.msra.mxu0 0.0
    %2754 = vmatprep.subr.mxu0 0.0
    %2755 = vmatpush2.msra.mxu0 0.0
    %2756 = vmatprep.subr.mxu0 0.0
    %2757 = vmatpush2.msra.mxu0 0.0
    %2758 = vmatprep.subr.mxu0 0.0
    %2759 = vmatpush2.msra.mxu0 0.0
    %2760 = vmatprep.subr.mxu0 0.0
    %2761 = vmatpush2.msra.mxu0 0.0
    %2762 = vmatprep.subr.mxu0 0.0
    %2763 = vmatpush2.msra.mxu0 0.0
    %2764 = vmatprep.subr.mxu0 0.0
    %2765 = vmatpush2.msra.mxu0 0.0
    %2766 = vmatprep.subr.mxu0 0.0
    %2767 = vmatpush2.msra.mxu0 0.0
    %2768 = vmatprep.mubr.f32.mxu0 0.0
    %2769 = vmatmul.mubr.f32.gmra.mxu0 %v2702
    %v2770 = vpop.f32.mrf.mxu0
    %v2771 = vadd.f32 %v139, %v2770
    %v2772 = vpop.f32.mrf.mxu0
    %2773 = vdwg.mxu0
    %v2774 = vtanh.pop %v2771
    %s2775 = scalar_lea.vmem %s22, 2
    %2776 = vst.msk [vmem:[%s2775] sm:$0x3] %vm146, %v2774
    %v2778 = vsel %vm260, %v2774, 0
    %2780 = vmatprep.subr.mxu0 0.0
    %2781 = vmatpush1.msra.mxu0 0.0
    %2782 = vmatprep.subr.mxu0 0.0
    %2783 = vmatpush1.msra.mxu0 0.0
    %2784 = vmatprep.subr.mxu0 0.0
    %2785 = vmatpush1.msra.mxu0 0.0
    %2786 = vmatprep.subr.mxu0 0.0
    %2787 = vmatpush1.msra.mxu0 0.0
    %2788 = vmatprep.subr.mxu0 0.0
    %2789 = vmatpush1.msra.mxu0 0.0
    %2790 = vmatprep.subr.mxu0 0.0
    %2791 = vmatpush1.msra.mxu0 0.0
    %2792 = vmatprep.subr.mxu0 0.0
    %2793 = vmatpush1.msra.mxu0 0.0
    %2794 = vmatprep.subr.mxu0 0.0
    %2795 = vmatpush1.msra.mxu0 0.0
    %2796 = vmatprep.subr.mxu0 0.0
    %2797 = vmatpush1.msra.mxu0 0.0
    %2798 = vmatprep.subr.mxu0 0.0
    %2799 = vmatpush1.msra.mxu0 0.0
    %2800 = vmatprep.subr.mxu0 0.0
    %2801 = vmatpush1.msra.mxu0 0.0
    %2802 = vmatprep.subr.mxu0 0.0
    %2803 = vmatpush1.msra.mxu0 0.0
    %2804 = vmatprep.subr.mxu0 0.0
    %2805 = vmatpush1.msra.mxu0 0.0
    %2806 = vmatprep.subr.mxu0 0.0
    %2807 = vmatpush1.msra.mxu0 0.0
    %2808 = vmatprep.subr.mxu0 0.0
    %2809 = vmatpush1.msra.mxu0 0.0
    %2810 = vmatprep.subr.mxu0 0.0
    %2811 = vmatpush1.msra.mxu0 %v2133
    %2812 = vmatprep.subr.mxu0 0.0
    %2813 = vmatpush2.msra.mxu0 0.0
    %2814 = vmatprep.subr.mxu0 0.0
    %2815 = vmatpush2.msra.mxu0 0.0
    %2816 = vmatprep.subr.mxu0 0.0
    %2817 = vmatpush2.msra.mxu0 0.0
    %2818 = vmatprep.subr.mxu0 0.0
    %2819 = vmatpush2.msra.mxu0 0.0
    %2820 = vmatprep.subr.mxu0 0.0
    %2821 = vmatpush2.msra.mxu0 0.0
    %2822 = vmatprep.subr.mxu0 0.0
    %2823 = vmatpush2.msra.mxu0 0.0
    %2824 = vmatprep.subr.mxu0 0.0
    %2825 = vmatpush2.msra.mxu0 0.0
    %2826 = vmatprep.subr.mxu0 0.0
    %2827 = vmatpush2.msra.mxu0 0.0
    %2828 = vmatprep.subr.mxu0 0.0
    %2829 = vmatpush2.msra.mxu0 0.0
    %2830 = vmatprep.subr.mxu0 0.0
    %2831 = vmatpush2.msra.mxu0 0.0
    %2832 = vmatprep.subr.mxu0 0.0
    %2833 = vmatpush2.msra.mxu0 0.0
    %2834 = vmatprep.subr.mxu0 0.0
    %2835 = vmatpush2.msra.mxu0 0.0
    %2836 = vmatprep.subr.mxu0 0.0
    %2837 = vmatpush2.msra.mxu0 0.0
    %2838 = vmatprep.subr.mxu0 0.0
    %2839 = vmatpush2.msra.mxu0 0.0
    %2840 = vmatprep.subr.mxu0 0.0
    %2841 = vmatpush2.msra.mxu0 0.0
    %2842 = vmatprep.subr.mxu0 0.0
    %2843 = vmatpush2.msra.mxu0 0.0
    %2844 = vmatprep.mubr.f32.mxu0 0.0
    %2845 = vmatmul.mubr.f32.gmra.mxu0 %v2778
    %v2846 = vpop.f32.mrf.mxu0
    %v2847 = vadd.f32 %v132, %v2846
    %v2848 = vpop.f32.mrf.mxu0
    %2849 = vdwg.mxu0
    %s2850 = scalar_lea.vmem [#allocation7], 4
    %v2851 = vld [vmem:[%s2850] sm:$0x3]
    %v2853 = vmul.f32 %v2851, %v2701
    %v2855 = vsel %vm357, %v2853, 0
    %2857 = vmatprep.subr.mxu0 0.0
    %2858 = vmatpush1.msra.mxu0 0.0
    %2859 = vmatprep.subr.mxu0 0.0
    %2860 = vmatpush1.msra.mxu0 0.0
    %2861 = vmatprep.subr.mxu0 0.0
    %2862 = vmatpush1.msra.mxu0 0.0
    %2863 = vmatprep.subr.mxu0 0.0
    %2864 = vmatpush1.msra.mxu0 0.0
    %2865 = vmatprep.subr.mxu0 0.0
    %2866 = vmatpush1.msra.mxu0 0.0
    %2867 = vmatprep.subr.mxu0 0.0
    %2868 = vmatpush1.msra.mxu0 0.0
    %2869 = vmatprep.subr.mxu0 0.0
    %2870 = vmatpush1.msra.mxu0 0.0
    %2871 = vmatprep.subr.mxu0 0.0
    %2872 = vmatpush1.msra.mxu0 0.0
    %2873 = vmatprep.subr.mxu0 0.0
    %2874 = vmatpush1.msra.mxu0 0.0
    %2875 = vmatprep.subr.mxu0 0.0
    %2876 = vmatpush1.msra.mxu0 0.0
    %2877 = vmatprep.subr.mxu0 0.0
    %2878 = vmatpush1.msra.mxu0 0.0
    %2879 = vmatprep.subr.mxu0 0.0
    %2880 = vmatpush1.msra.mxu0 0.0
    %2881 = vmatprep.subr.mxu0 0.0
    %2882 = vmatpush1.msra.mxu0 %v117
    %2883 = vmatprep.subr.mxu0 0.0
    %2884 = vmatpush1.msra.mxu0 %v116
    %2885 = vmatprep.subr.mxu0 0.0
    %2886 = vmatpush1.msra.mxu0 %v115
    %2887 = vmatprep.subr.mxu0 0.0
    %2888 = vmatpush1.msra.mxu0 %v114
    %2889 = vmatprep.subr.mxu0 0.0
    %2890 = vmatpush2.msra.mxu0 0.0
    %2891 = vmatprep.subr.mxu0 0.0
    %2892 = vmatpush2.msra.mxu0 0.0
    %2893 = vmatprep.subr.mxu0 0.0
    %2894 = vmatpush2.msra.mxu0 0.0
    %2895 = vmatprep.subr.mxu0 0.0
    %2896 = vmatpush2.msra.mxu0 0.0
    %2897 = vmatprep.subr.mxu0 0.0
    %2898 = vmatpush2.msra.mxu0 0.0
    %2899 = vmatprep.subr.mxu0 0.0
    %2900 = vmatpush2.msra.mxu0 0.0
    %2901 = vmatprep.subr.mxu0 0.0
    %2902 = vmatpush2.msra.mxu0 0.0
    %2903 = vmatprep.subr.mxu0 0.0
    %2904 = vmatpush2.msra.mxu0 0.0
    %2905 = vmatprep.subr.mxu0 0.0
    %2906 = vmatpush2.msra.mxu0 0.0
    %2907 = vmatprep.subr.mxu0 0.0
    %2908 = vmatpush2.msra.mxu0 0.0
    %2909 = vmatprep.subr.mxu0 0.0
    %2910 = vmatpush2.msra.mxu0 0.0
    %2911 = vmatprep.subr.mxu0 0.0
    %2912 = vmatpush2.msra.mxu0 0.0
    %2913 = vmatprep.subr.mxu0 0.0
    %2914 = vmatpush2.msra.mxu0 0.0
    %2915 = vmatprep.subr.mxu0 0.0
    %2916 = vmatpush2.msra.mxu0 0.0
    %2917 = vmatprep.subr.mxu0 0.0
    %2918 = vmatpush2.msra.mxu0 0.0
    %2919 = vmatprep.subr.mxu0 0.0
    %2920 = vmatpush2.msra.mxu0 0.0
    %2921 = vmatprep.mubr.f32.mxu0 0.0
    %2922 = vmatmul.mubr.f32.gmra.mxu0 %v2855
    %v2923 = vpop.f32.mrf.mxu0
    %v2924 = vadd.f32 %v2847, %v2923
    %v2925 = vpop.f32.mrf.mxu0
    %2926 = vdwg.mxu0
    %v2927 = vxor.u32 %v2924, 2147483648
    %v2928 = vmul.f32 %v2927, 1.442695
    %v2929 = vpow.pop %v2928
    %v2930 = vadd.f32 %v2929, 1.0
    %v2931 = vrcp.pop %v2930
    %v2932 = vmul.f32 1.0, %v2931
    %v2933 = vmul.f32 %v2932, %v2853
    %2935 = vrot.lane.b32.xlu0 %v2847, 64
    %v2936 = vpop.permute.xlu0 %2935
    %v2939 = vsel %vm357, %v2933, 0
    %2941 = vmatprep.subr.mxu0 0.0
    %2942 = vmatpush1.msra.mxu0 0.0
    %2943 = vmatprep.subr.mxu0 0.0
    %2944 = vmatpush1.msra.mxu0 0.0
    %2945 = vmatprep.subr.mxu0 0.0
    %2946 = vmatpush1.msra.mxu0 0.0
    %2947 = vmatprep.subr.mxu0 0.0
    %2948 = vmatpush1.msra.mxu0 0.0
    %2949 = vmatprep.subr.mxu0 0.0
    %2950 = vmatpush1.msra.mxu0 0.0
    %2951 = vmatprep.subr.mxu0 0.0
    %2952 = vmatpush1.msra.mxu0 0.0
    %2953 = vmatprep.subr.mxu0 0.0
    %2954 = vmatpush1.msra.mxu0 0.0
    %2955 = vmatprep.subr.mxu0 0.0
    %2956 = vmatpush1.msra.mxu0 0.0
    %2957 = vmatprep.subr.mxu0 0.0
    %2958 = vmatpush1.msra.mxu0 0.0
    %2959 = vmatprep.subr.mxu0 0.0
    %2960 = vmatpush1.msra.mxu0 0.0
    %2961 = vmatprep.subr.mxu0 0.0
    %2962 = vmatpush1.msra.mxu0 0.0
    %2963 = vmatprep.subr.mxu0 0.0
    %2964 = vmatpush1.msra.mxu0 0.0
    %2965 = vmatprep.subr.mxu0 0.0
    %2966 = vmatpush1.msra.mxu0 %v121
    %2967 = vmatprep.subr.mxu0 0.0
    %2968 = vmatpush1.msra.mxu0 %v120
    %2969 = vmatprep.subr.mxu0 0.0
    %2970 = vmatpush1.msra.mxu0 %v119
    %2971 = vmatprep.subr.mxu0 0.0
    %2972 = vmatpush1.msra.mxu0 %v118
    %2973 = vmatprep.subr.mxu0 0.0
    %2974 = vmatpush2.msra.mxu0 0.0
    %2975 = vmatprep.subr.mxu0 0.0
    %2976 = vmatpush2.msra.mxu0 0.0
    %2977 = vmatprep.subr.mxu0 0.0
    %2978 = vmatpush2.msra.mxu0 0.0
    %2979 = vmatprep.subr.mxu0 0.0
    %2980 = vmatpush2.msra.mxu0 0.0
    %2981 = vmatprep.subr.mxu0 0.0
    %2982 = vmatpush2.msra.mxu0 0.0
    %2983 = vmatprep.subr.mxu0 0.0
    %2984 = vmatpush2.msra.mxu0 0.0
    %2985 = vmatprep.subr.mxu0 0.0
    %2986 = vmatpush2.msra.mxu0 0.0
    %2987 = vmatprep.subr.mxu0 0.0
    %2988 = vmatpush2.msra.mxu0 0.0
    %2989 = vmatprep.subr.mxu0 0.0
    %2990 = vmatpush2.msra.mxu0 0.0
    %2991 = vmatprep.subr.mxu0 0.0
    %2992 = vmatpush2.msra.mxu0 0.0
    %2993 = vmatprep.subr.mxu0 0.0
    %2994 = vmatpush2.msra.mxu0 0.0
    %2995 = vmatprep.subr.mxu0 0.0
    %2996 = vmatpush2.msra.mxu0 0.0
    %2997 = vmatprep.subr.mxu0 0.0
    %2998 = vmatpush2.msra.mxu0 0.0
    %2999 = vmatprep.subr.mxu0 0.0
    %3000 = vmatpush2.msra.mxu0 0.0
    %3001 = vmatprep.subr.mxu0 0.0
    %3002 = vmatpush2.msra.mxu0 0.0
    %3003 = vmatprep.subr.mxu0 0.0
    %3004 = vmatpush2.msra.mxu0 0.0
    %3005 = vmatprep.mubr.f32.mxu0 0.0
    %3006 = vmatmul.mubr.f32.gmra.mxu0 %v2939
    %v3007 = vpop.f32.mrf.mxu0
    %v3008 = vadd.f32 %v2936, %v3007
    %v3009 = vpop.f32.mrf.mxu0
    %3010 = vdwg.mxu0
    %v3011 = vtanh.pop %v3008
    %v3012 = vsub.f32 1.0, %v2932
    %3013 = vrot.lane.b32.xlu0 %v2853, 32
    %v3014 = vpop.permute.xlu0 %3013
    %v3016 = vmul.f32 %v3012, %v3014
    %3018 = vrot.lane.b32.xlu0 %v3011, 32
    %v3019 = vpop.permute.xlu0 %3018
    %v3021 = vmul.f32 %v2932, %v3019
    %v3022 = vadd.f32 %v3016, %v3021
    %3024 = vrot.lane.b32.xlu0 %v3022, 96
    %v3025 = vpop.permute.xlu0 %3024
    %v3026 = vsel %vm357, %v3025, 0
    %3028 = vmatprep.subr.mxu0 0.0
    %3029 = vmatpush1.msra.mxu0 0.0
    %3030 = vmatprep.subr.mxu0 0.0
    %3031 = vmatpush1.msra.mxu0 0.0
    %3032 = vmatprep.subr.mxu0 0.0
    %3033 = vmatpush1.msra.mxu0 0.0
    %3034 = vmatprep.subr.mxu0 0.0
    %3035 = vmatpush1.msra.mxu0 0.0
    %3036 = vmatprep.subr.mxu0 0.0
    %3037 = vmatpush1.msra.mxu0 0.0
    %3038 = vmatprep.subr.mxu0 0.0
    %3039 = vmatpush1.msra.mxu0 0.0
    %3040 = vmatprep.subr.mxu0 0.0
    %3041 = vmatpush1.msra.mxu0 0.0
    %3042 = vmatprep.subr.mxu0 0.0
    %3043 = vmatpush1.msra.mxu0 0.0
    %3044 = vmatprep.subr.mxu0 0.0
    %3045 = vmatpush1.msra.mxu0 0.0
    %3046 = vmatprep.subr.mxu0 0.0
    %3047 = vmatpush1.msra.mxu0 0.0
    %3048 = vmatprep.subr.mxu0 0.0
    %3049 = vmatpush1.msra.mxu0 0.0
    %3050 = vmatprep.subr.mxu0 0.0
    %3051 = vmatpush1.msra.mxu0 0.0
    %3052 = vmatprep.subr.mxu0 0.0
    %3053 = vmatpush1.msra.mxu0 %v126
    %3054 = vmatprep.subr.mxu0 0.0
    %3055 = vmatpush1.msra.mxu0 %v125
    %3056 = vmatprep.subr.mxu0 0.0
    %3057 = vmatpush1.msra.mxu0 %v124
    %3058 = vmatprep.subr.mxu0 0.0
    %3059 = vmatpush1.msra.mxu0 %v123
    %3060 = vmatprep.subr.mxu0 0.0
    %3061 = vmatpush2.msra.mxu0 0.0
    %3062 = vmatprep.subr.mxu0 0.0
    %3063 = vmatpush2.msra.mxu0 0.0
    %3064 = vmatprep.subr.mxu0 0.0
    %3065 = vmatpush2.msra.mxu0 0.0
    %3066 = vmatprep.subr.mxu0 0.0
    %3067 = vmatpush2.msra.mxu0 0.0
    %3068 = vmatprep.subr.mxu0 0.0
    %3069 = vmatpush2.msra.mxu0 0.0
    %3070 = vmatprep.subr.mxu0 0.0
    %3071 = vmatpush2.msra.mxu0 0.0
    %3072 = vmatprep.subr.mxu0 0.0
    %3073 = vmatpush2.msra.mxu0 0.0
    %3074 = vmatprep.subr.mxu0 0.0
    %3075 = vmatpush2.msra.mxu0 0.0
    %3076 = vmatprep.subr.mxu0 0.0
    %3077 = vmatpush2.msra.mxu0 0.0
    %3078 = vmatprep.subr.mxu0 0.0
    %3079 = vmatpush2.msra.mxu0 0.0
    %3080 = vmatprep.subr.mxu0 0.0
    %3081 = vmatpush2.msra.mxu0 0.0
    %3082 = vmatprep.subr.mxu0 0.0
    %3083 = vmatpush2.msra.mxu0 0.0
    %3084 = vmatprep.subr.mxu0 0.0
    %3085 = vmatpush2.msra.mxu0 0.0
    %3086 = vmatprep.subr.mxu0 0.0
    %3087 = vmatpush2.msra.mxu0 0.0
    %3088 = vmatprep.subr.mxu0 0.0
    %3089 = vmatpush2.msra.mxu0 0.0
    %3090 = vmatprep.subr.mxu0 0.0
    %3091 = vmatpush2.msra.mxu0 0.0
    %3092 = vmatprep.mubr.f32.mxu0 0.0
    %3093 = vmatmul.mubr.f32.gmra.mxu0 %v3026
    %v3094 = vpop.f32.mrf.mxu0
    %v3095 = vadd.f32 %v139, %v3094
    %v3096 = vpop.f32.mrf.mxu0
    %3097 = vdwg.mxu0
    %v3098 = vtanh.pop %v3095
    %s3099 = scalar_lea.vmem %s22, 4
    %3100 = vst.msk [vmem:[%s3099] sm:$0x3] %vm146, %v3098
    %v3102 = vsel %vm260, %v3098, 0
    %3104 = vmatprep.subr.mxu0 0.0
    %3105 = vmatpush1.msra.mxu0 0.0
    %3106 = vmatprep.subr.mxu0 0.0
    %3107 = vmatpush1.msra.mxu0 0.0
    %3108 = vmatprep.subr.mxu0 0.0
    %3109 = vmatpush1.msra.mxu0 0.0
    %3110 = vmatprep.subr.mxu0 0.0
    %3111 = vmatpush1.msra.mxu0 0.0
    %3112 = vmatprep.subr.mxu0 0.0
    %3113 = vmatpush1.msra.mxu0 0.0
    %3114 = vmatprep.subr.mxu0 0.0
    %3115 = vmatpush1.msra.mxu0 0.0
    %3116 = vmatprep.subr.mxu0 0.0
    %3117 = vmatpush1.msra.mxu0 0.0
    %3118 = vmatprep.subr.mxu0 0.0
    %3119 = vmatpush1.msra.mxu0 0.0
    %3120 = vmatprep.subr.mxu0 0.0
    %3121 = vmatpush1.msra.mxu0 0.0
    %3122 = vmatprep.subr.mxu0 0.0
    %3123 = vmatpush1.msra.mxu0 0.0
    %3124 = vmatprep.subr.mxu0 0.0
    %3125 = vmatpush1.msra.mxu0 0.0
    %3126 = vmatprep.subr.mxu0 0.0
    %3127 = vmatpush1.msra.mxu0 0.0
    %3128 = vmatprep.subr.mxu0 0.0
    %3129 = vmatpush1.msra.mxu0 0.0
    %3130 = vmatprep.subr.mxu0 0.0
    %3131 = vmatpush1.msra.mxu0 0.0
    %3132 = vmatprep.subr.mxu0 0.0
    %3133 = vmatpush1.msra.mxu0 0.0
    %3134 = vmatprep.subr.mxu0 0.0
    %3135 = vmatpush1.msra.mxu0 %v2133
    %3136 = vmatprep.subr.mxu0 0.0
    %3137 = vmatpush2.msra.mxu0 0.0
    %3138 = vmatprep.subr.mxu0 0.0
    %3139 = vmatpush2.msra.mxu0 0.0
    %3140 = vmatprep.subr.mxu0 0.0
    %3141 = vmatpush2.msra.mxu0 0.0
    %3142 = vmatprep.subr.mxu0 0.0
    %3143 = vmatpush2.msra.mxu0 0.0
    %3144 = vmatprep.subr.mxu0 0.0
    %3145 = vmatpush2.msra.mxu0 0.0
    %3146 = vmatprep.subr.mxu0 0.0
    %3147 = vmatpush2.msra.mxu0 0.0
    %3148 = vmatprep.subr.mxu0 0.0
    %3149 = vmatpush2.msra.mxu0 0.0
    %3150 = vmatprep.subr.mxu0 0.0
    %3151 = vmatpush2.msra.mxu0 0.0
    %3152 = vmatprep.subr.mxu0 0.0
    %3153 = vmatpush2.msra.mxu0 0.0
    %3154 = vmatprep.subr.mxu0 0.0
    %3155 = vmatpush2.msra.mxu0 0.0
    %3156 = vmatprep.subr.mxu0 0.0
    %3157 = vmatpush2.msra.mxu0 0.0
    %3158 = vmatprep.subr.mxu0 0.0
    %3159 = vmatpush2.msra.mxu0 0.0
    %3160 = vmatprep.subr.mxu0 0.0
    %3161 = vmatpush2.msra.mxu0 0.0
    %3162 = vmatprep.subr.mxu0 0.0
    %3163 = vmatpush2.msra.mxu0 0.0
    %3164 = vmatprep.subr.mxu0 0.0
    %3165 = vmatpush2.msra.mxu0 0.0
    %3166 = vmatprep.subr.mxu0 0.0
    %3167 = vmatpush2.msra.mxu0 0.0
    %3168 = vmatprep.mubr.f32.mxu0 0.0
    %3169 = vmatmul.mubr.f32.gmra.mxu0 %v3102
    %v3170 = vpop.f32.mrf.mxu0
    %v3171 = vadd.f32 %v132, %v3170
    %v3172 = vpop.f32.mrf.mxu0
    %3173 = vdwg.mxu0
    %s3174 = scalar_lea.vmem [#allocation7], 6
    %v3175 = vld [vmem:[%s3174] sm:$0x3]
    %v3177 = vmul.f32 %v3175, %v3025
    %v3179 = vsel %vm357, %v3177, 0
    %3181 = vmatprep.subr.mxu0 0.0
    %3182 = vmatpush1.msra.mxu0 0.0
    %3183 = vmatprep.subr.mxu0 0.0
    %3184 = vmatpush1.msra.mxu0 0.0
    %3185 = vmatprep.subr.mxu0 0.0
    %3186 = vmatpush1.msra.mxu0 0.0
    %3187 = vmatprep.subr.mxu0 0.0
    %3188 = vmatpush1.msra.mxu0 0.0
    %3189 = vmatprep.subr.mxu0 0.0
    %3190 = vmatpush1.msra.mxu0 0.0
    %3191 = vmatprep.subr.mxu0 0.0
    %3192 = vmatpush1.msra.mxu0 0.0
    %3193 = vmatprep.subr.mxu0 0.0
    %3194 = vmatpush1.msra.mxu0 0.0
    %3195 = vmatprep.subr.mxu0 0.0
    %3196 = vmatpush1.msra.mxu0 0.0
    %3197 = vmatprep.subr.mxu0 0.0
    %3198 = vmatpush1.msra.mxu0 0.0
    %3199 = vmatprep.subr.mxu0 0.0
    %3200 = vmatpush1.msra.mxu0 0.0
    %3201 = vmatprep.subr.mxu0 0.0
    %3202 = vmatpush1.msra.mxu0 0.0
    %3203 = vmatprep.subr.mxu0 0.0
    %3204 = vmatpush1.msra.mxu0 0.0
    %3205 = vmatprep.subr.mxu0 0.0
    %3206 = vmatpush1.msra.mxu0 %v117
    %3207 = vmatprep.subr.mxu0 0.0
    %3208 = vmatpush1.msra.mxu0 %v116
    %3209 = vmatprep.subr.mxu0 0.0
    %3210 = vmatpush1.msra.mxu0 %v115
    %3211 = vmatprep.subr.mxu0 0.0
    %3212 = vmatpush1.msra.mxu0 %v114
    %3213 = vmatprep.subr.mxu0 0.0
    %3214 = vmatpush2.msra.mxu0 0.0
    %3215 = vmatprep.subr.mxu0 0.0
    %3216 = vmatpush2.msra.mxu0 0.0
    %3217 = vmatprep.subr.mxu0 0.0
    %3218 = vmatpush2.msra.mxu0 0.0
    %3219 = vmatprep.subr.mxu0 0.0
    %3220 = vmatpush2.msra.mxu0 0.0
    %3221 = vmatprep.subr.mxu0 0.0
    %3222 = vmatpush2.msra.mxu0 0.0
    %3223 = vmatprep.subr.mxu0 0.0
    %3224 = vmatpush2.msra.mxu0 0.0
    %3225 = vmatprep.subr.mxu0 0.0
    %3226 = vmatpush2.msra.mxu0 0.0
    %3227 = vmatprep.subr.mxu0 0.0
    %3228 = vmatpush2.msra.mxu0 0.0
    %3229 = vmatprep.subr.mxu0 0.0
    %3230 = vmatpush2.msra.mxu0 0.0
    %3231 = vmatprep.subr.mxu0 0.0
    %3232 = vmatpush2.msra.mxu0 0.0
    %3233 = vmatprep.subr.mxu0 0.0
    %3234 = vmatpush2.msra.mxu0 0.0
    %3235 = vmatprep.subr.mxu0 0.0
    %3236 = vmatpush2.msra.mxu0 0.0
    %3237 = vmatprep.subr.mxu0 0.0
    %3238 = vmatpush2.msra.mxu0 0.0
    %3239 = vmatprep.subr.mxu0 0.0
    %3240 = vmatpush2.msra.mxu0 0.0
    %3241 = vmatprep.subr.mxu0 0.0
    %3242 = vmatpush2.msra.mxu0 0.0
    %3243 = vmatprep.subr.mxu0 0.0
    %3244 = vmatpush2.msra.mxu0 0.0
    %3245 = vmatprep.mubr.f32.mxu0 0.0
    %3246 = vmatmul.mubr.f32.gmra.mxu0 %v3179
    %v3247 = vpop.f32.mrf.mxu0
    %v3248 = vadd.f32 %v3171, %v3247
    %v3249 = vpop.f32.mrf.mxu0
    %3250 = vdwg.mxu0
    %v3251 = vxor.u32 %v3248, 2147483648
    %v3252 = vmul.f32 %v3251, 1.442695
    %v3253 = vpow.pop %v3252
    %v3254 = vadd.f32 %v3253, 1.0
    %v3255 = vrcp.pop %v3254
    %v3256 = vmul.f32 1.0, %v3255
    %v3257 = vmul.f32 %v3256, %v3177
    %3259 = vrot.lane.b32.xlu0 %v3171, 64
    %v3260 = vpop.permute.xlu0 %3259
    %v3263 = vsel %vm357, %v3257, 0
    %3265 = vmatprep.subr.mxu0 0.0
    %3266 = vmatpush1.msra.mxu0 0.0
    %3267 = vmatprep.subr.mxu0 0.0
    %3268 = vmatpush1.msra.mxu0 0.0
    %3269 = vmatprep.subr.mxu0 0.0
    %3270 = vmatpush1.msra.mxu0 0.0
    %3271 = vmatprep.subr.mxu0 0.0
    %3272 = vmatpush1.msra.mxu0 0.0
    %3273 = vmatprep.subr.mxu0 0.0
    %3274 = vmatpush1.msra.mxu0 0.0
    %3275 = vmatprep.subr.mxu0 0.0
    %3276 = vmatpush1.msra.mxu0 0.0
    %3277 = vmatprep.subr.mxu0 0.0
    %3278 = vmatpush1.msra.mxu0 0.0
    %3279 = vmatprep.subr.mxu0 0.0
    %3280 = vmatpush1.msra.mxu0 0.0
    %3281 = vmatprep.subr.mxu0 0.0
    %3282 = vmatpush1.msra.mxu0 0.0
    %3283 = vmatprep.subr.mxu0 0.0
    %3284 = vmatpush1.msra.mxu0 0.0
    %3285 = vmatprep.subr.mxu0 0.0
    %3286 = vmatpush1.msra.mxu0 0.0
    %3287 = vmatprep.subr.mxu0 0.0
    %3288 = vmatpush1.msra.mxu0 0.0
    %3289 = vmatprep.subr.mxu0 0.0
    %3290 = vmatpush1.msra.mxu0 %v121
    %3291 = vmatprep.subr.mxu0 0.0
    %3292 = vmatpush1.msra.mxu0 %v120
    %3293 = vmatprep.subr.mxu0 0.0
    %3294 = vmatpush1.msra.mxu0 %v119
    %3295 = vmatprep.subr.mxu0 0.0
    %3296 = vmatpush1.msra.mxu0 %v118
    %3297 = vmatprep.subr.mxu0 0.0
    %3298 = vmatpush2.msra.mxu0 0.0
    %3299 = vmatprep.subr.mxu0 0.0
    %3300 = vmatpush2.msra.mxu0 0.0
    %3301 = vmatprep.subr.mxu0 0.0
    %3302 = vmatpush2.msra.mxu0 0.0
    %3303 = vmatprep.subr.mxu0 0.0
    %3304 = vmatpush2.msra.mxu0 0.0
    %3305 = vmatprep.subr.mxu0 0.0
    %3306 = vmatpush2.msra.mxu0 0.0
    %3307 = vmatprep.subr.mxu0 0.0
    %3308 = vmatpush2.msra.mxu0 0.0
    %3309 = vmatprep.subr.mxu0 0.0
    %3310 = vmatpush2.msra.mxu0 0.0
    %3311 = vmatprep.subr.mxu0 0.0
    %3312 = vmatpush2.msra.mxu0 0.0
    %3313 = vmatprep.subr.mxu0 0.0
    %3314 = vmatpush2.msra.mxu0 0.0
    %3315 = vmatprep.subr.mxu0 0.0
    %3316 = vmatpush2.msra.mxu0 0.0
    %3317 = vmatprep.subr.mxu0 0.0
    %3318 = vmatpush2.msra.mxu0 0.0
    %3319 = vmatprep.subr.mxu0 0.0
    %3320 = vmatpush2.msra.mxu0 0.0
    %3321 = vmatprep.subr.mxu0 0.0
    %3322 = vmatpush2.msra.mxu0 0.0
    %3323 = vmatprep.subr.mxu0 0.0
    %3324 = vmatpush2.msra.mxu0 0.0
    %3325 = vmatprep.subr.mxu0 0.0
    %3326 = vmatpush2.msra.mxu0 0.0
    %3327 = vmatprep.subr.mxu0 0.0
    %3328 = vmatpush2.msra.mxu0 0.0
    %3329 = vmatprep.mubr.f32.mxu0 0.0
    %3330 = vmatmul.mubr.f32.gmra.mxu0 %v3263
    %v3331 = vpop.f32.mrf.mxu0
    %v3332 = vadd.f32 %v3260, %v3331
    %v3333 = vpop.f32.mrf.mxu0
    %3334 = vdwg.mxu0
    %v3335 = vtanh.pop %v3332
    %v3336 = vsub.f32 1.0, %v3256
    %3337 = vrot.lane.b32.xlu0 %v3177, 32
    %v3338 = vpop.permute.xlu0 %3337
    %v3340 = vmul.f32 %v3336, %v3338
    %3342 = vrot.lane.b32.xlu0 %v3335, 32
    %v3343 = vpop.permute.xlu0 %3342
    %v3345 = vmul.f32 %v3256, %v3343
    %v3346 = vadd.f32 %v3340, %v3345
    %3348 = vrot.lane.b32.xlu0 %v3346, 96
    %v3349 = vpop.permute.xlu0 %3348
    %v3350 = vsel %vm357, %v3349, 0
    %3352 = vmatprep.subr.mxu0 0.0
    %3353 = vmatpush1.msra.mxu0 0.0
    %3354 = vmatprep.subr.mxu0 0.0
    %3355 = vmatpush1.msra.mxu0 0.0
    %3356 = vmatprep.subr.mxu0 0.0
    %3357 = vmatpush1.msra.mxu0 0.0
    %3358 = vmatprep.subr.mxu0 0.0
    %3359 = vmatpush1.msra.mxu0 0.0
    %3360 = vmatprep.subr.mxu0 0.0
    %3361 = vmatpush1.msra.mxu0 0.0
    %3362 = vmatprep.subr.mxu0 0.0
    %3363 = vmatpush1.msra.mxu0 0.0
    %3364 = vmatprep.subr.mxu0 0.0
    %3365 = vmatpush1.msra.mxu0 0.0
    %3366 = vmatprep.subr.mxu0 0.0
    %3367 = vmatpush1.msra.mxu0 0.0
    %3368 = vmatprep.subr.mxu0 0.0
    %3369 = vmatpush1.msra.mxu0 0.0
    %3370 = vmatprep.subr.mxu0 0.0
    %3371 = vmatpush1.msra.mxu0 0.0
    %3372 = vmatprep.subr.mxu0 0.0
    %3373 = vmatpush1.msra.mxu0 0.0
    %3374 = vmatprep.subr.mxu0 0.0
    %3375 = vmatpush1.msra.mxu0 0.0
    %3376 = vmatprep.subr.mxu0 0.0
    %3377 = vmatpush1.msra.mxu0 %v126
    %3378 = vmatprep.subr.mxu0 0.0
    %3379 = vmatpush1.msra.mxu0 %v125
    %3380 = vmatprep.subr.mxu0 0.0
    %3381 = vmatpush1.msra.mxu0 %v124
    %3382 = vmatprep.subr.mxu0 0.0
    %3383 = vmatpush1.msra.mxu0 %v123
    %3384 = vmatprep.subr.mxu0 0.0
    %3385 = vmatpush2.msra.mxu0 0.0
    %3386 = vmatprep.subr.mxu0 0.0
    %3387 = vmatpush2.msra.mxu0 0.0
    %3388 = vmatprep.subr.mxu0 0.0
    %3389 = vmatpush2.msra.mxu0 0.0
    %3390 = vmatprep.subr.mxu0 0.0
    %3391 = vmatpush2.msra.mxu0 0.0
    %3392 = vmatprep.subr.mxu0 0.0
    %3393 = vmatpush2.msra.mxu0 0.0
    %3394 = vmatprep.subr.mxu0 0.0
    %3395 = vmatpush2.msra.mxu0 0.0
    %3396 = vmatprep.subr.mxu0 0.0
    %3397 = vmatpush2.msra.mxu0 0.0
    %3398 = vmatprep.subr.mxu0 0.0
    %3399 = vmatpush2.msra.mxu0 0.0
    %3400 = vmatprep.subr.mxu0 0.0
    %3401 = vmatpush2.msra.mxu0 0.0
    %3402 = vmatprep.subr.mxu0 0.0
    %3403 = vmatpush2.msra.mxu0 0.0
    %3404 = vmatprep.subr.mxu0 0.0
    %3405 = vmatpush2.msra.mxu0 0.0
    %3406 = vmatprep.subr.mxu0 0.0
    %3407 = vmatpush2.msra.mxu0 0.0
    %3408 = vmatprep.subr.mxu0 0.0
    %3409 = vmatpush2.msra.mxu0 0.0
    %3410 = vmatprep.subr.mxu0 0.0
    %3411 = vmatpush2.msra.mxu0 0.0
    %3412 = vmatprep.subr.mxu0 0.0
    %3413 = vmatpush2.msra.mxu0 0.0
    %3414 = vmatprep.subr.mxu0 0.0
    %3415 = vmatpush2.msra.mxu0 0.0
    %3416 = vmatprep.mubr.f32.mxu0 0.0
    %3417 = vmatmul.mubr.f32.gmra.mxu0 %v3350
    %v3418 = vpop.f32.mrf.mxu0
    %v3419 = vadd.f32 %v139, %v3418
    %v3420 = vpop.f32.mrf.mxu0
    %3421 = vdwg.mxu0
    %v3422 = vtanh.pop %v3419
    %s3423 = scalar_lea.vmem %s22, 6
    %3424 = vst.msk [vmem:[%s3423] sm:$0x3] %vm146, %v3422
    %v3426 = vsel %vm260, %v3422, 0
    %3428 = vmatprep.subr.mxu0 0.0
    %3429 = vmatpush1.msra.mxu0 0.0
    %3430 = vmatprep.subr.mxu0 0.0
    %3431 = vmatpush1.msra.mxu0 0.0
    %3432 = vmatprep.subr.mxu0 0.0
    %3433 = vmatpush1.msra.mxu0 0.0
    %3434 = vmatprep.subr.mxu0 0.0
    %3435 = vmatpush1.msra.mxu0 0.0
    %3436 = vmatprep.subr.mxu0 0.0
    %3437 = vmatpush1.msra.mxu0 0.0
    %3438 = vmatprep.subr.mxu0 0.0
    %3439 = vmatpush1.msra.mxu0 0.0
    %3440 = vmatprep.subr.mxu0 0.0
    %3441 = vmatpush1.msra.mxu0 0.0
    %3442 = vmatprep.subr.mxu0 0.0
    %3443 = vmatpush1.msra.mxu0 0.0
    %3444 = vmatprep.subr.mxu0 0.0
    %3445 = vmatpush1.msra.mxu0 0.0
    %3446 = vmatprep.subr.mxu0 0.0
    %3447 = vmatpush1.msra.mxu0 0.0
    %3448 = vmatprep.subr.mxu0 0.0
    %3449 = vmatpush1.msra.mxu0 0.0
    %3450 = vmatprep.subr.mxu0 0.0
    %3451 = vmatpush1.msra.mxu0 0.0
    %3452 = vmatprep.subr.mxu0 0.0
    %3453 = vmatpush1.msra.mxu0 0.0
    %3454 = vmatprep.subr.mxu0 0.0
    %3455 = vmatpush1.msra.mxu0 0.0
    %3456 = vmatprep.subr.mxu0 0.0
    %3457 = vmatpush1.msra.mxu0 0.0
    %3458 = vmatprep.subr.mxu0 0.0
    %3459 = vmatpush1.msra.mxu0 %v2133
    %3460 = vmatprep.subr.mxu0 0.0
    %3461 = vmatpush2.msra.mxu0 0.0
    %3462 = vmatprep.subr.mxu0 0.0
    %3463 = vmatpush2.msra.mxu0 0.0
    %3464 = vmatprep.subr.mxu0 0.0
    %3465 = vmatpush2.msra.mxu0 0.0
    %3466 = vmatprep.subr.mxu0 0.0
    %3467 = vmatpush2.msra.mxu0 0.0
    %3468 = vmatprep.subr.mxu0 0.0
    %3469 = vmatpush2.msra.mxu0 0.0
    %3470 = vmatprep.subr.mxu0 0.0
    %3471 = vmatpush2.msra.mxu0 0.0
    %3472 = vmatprep.subr.mxu0 0.0
    %3473 = vmatpush2.msra.mxu0 0.0
    %3474 = vmatprep.subr.mxu0 0.0
    %3475 = vmatpush2.msra.mxu0 0.0
    %3476 = vmatprep.subr.mxu0 0.0
    %3477 = vmatpush2.msra.mxu0 0.0
    %3478 = vmatprep.subr.mxu0 0.0
    %3479 = vmatpush2.msra.mxu0 0.0
    %3480 = vmatprep.subr.mxu0 0.0
    %3481 = vmatpush2.msra.mxu0 0.0
    %3482 = vmatprep.subr.mxu0 0.0
    %3483 = vmatpush2.msra.mxu0 0.0
    %3484 = vmatprep.subr.mxu0 0.0
    %3485 = vmatpush2.msra.mxu0 0.0
    %3486 = vmatprep.subr.mxu0 0.0
    %3487 = vmatpush2.msra.mxu0 0.0
    %3488 = vmatprep.subr.mxu0 0.0
    %3489 = vmatpush2.msra.mxu0 0.0
    %3490 = vmatprep.subr.mxu0 0.0
    %3491 = vmatpush2.msra.mxu0 0.0
    %3492 = vmatprep.mubr.f32.mxu0 0.0
    %3493 = vmatmul.mubr.f32.gmra.mxu0 %v3426
    %v3494 = vpop.f32.mrf.mxu0
    %v3495 = vadd.f32 %v132, %v3494
    %v3496 = vpop.f32.mrf.mxu0
    %3497 = vdwg.mxu0
    %s3498 = scalar_lea.vmem [#allocation7], 8
    %v3499 = vld [vmem:[%s3498] sm:$0x3]
    %v3501 = vmul.f32 %v3499, %v3349
    %v3503 = vsel %vm357, %v3501, 0
    %3505 = vmatprep.subr.mxu0 0.0
    %3506 = vmatpush1.msra.mxu0 0.0
    %3507 = vmatprep.subr.mxu0 0.0
    %3508 = vmatpush1.msra.mxu0 0.0
    %3509 = vmatprep.subr.mxu0 0.0
    %3510 = vmatpush1.msra.mxu0 0.0
    %3511 = vmatprep.subr.mxu0 0.0
    %3512 = vmatpush1.msra.mxu0 0.0
    %3513 = vmatprep.subr.mxu0 0.0
    %3514 = vmatpush1.msra.mxu0 0.0
    %3515 = vmatprep.subr.mxu0 0.0
    %3516 = vmatpush1.msra.mxu0 0.0
    %3517 = vmatprep.subr.mxu0 0.0
    %3518 = vmatpush1.msra.mxu0 0.0
    %3519 = vmatprep.subr.mxu0 0.0
    %3520 = vmatpush1.msra.mxu0 0.0
    %3521 = vmatprep.subr.mxu0 0.0
    %3522 = vmatpush1.msra.mxu0 0.0
    %3523 = vmatprep.subr.mxu0 0.0
    %3524 = vmatpush1.msra.mxu0 0.0
    %3525 = vmatprep.subr.mxu0 0.0
    %3526 = vmatpush1.msra.mxu0 0.0
    %3527 = vmatprep.subr.mxu0 0.0
    %3528 = vmatpush1.msra.mxu0 0.0
    %3529 = vmatprep.subr.mxu0 0.0
    %3530 = vmatpush1.msra.mxu0 %v117
    %3531 = vmatprep.subr.mxu0 0.0
    %3532 = vmatpush1.msra.mxu0 %v116
    %3533 = vmatprep.subr.mxu0 0.0
    %3534 = vmatpush1.msra.mxu0 %v115
    %3535 = vmatprep.subr.mxu0 0.0
    %3536 = vmatpush1.msra.mxu0 %v114
    %3537 = vmatprep.subr.mxu0 0.0
    %3538 = vmatpush2.msra.mxu0 0.0
    %3539 = vmatprep.subr.mxu0 0.0
    %3540 = vmatpush2.msra.mxu0 0.0
    %3541 = vmatprep.subr.mxu0 0.0
    %3542 = vmatpush2.msra.mxu0 0.0
    %3543 = vmatprep.subr.mxu0 0.0
    %3544 = vmatpush2.msra.mxu0 0.0
    %3545 = vmatprep.subr.mxu0 0.0
    %3546 = vmatpush2.msra.mxu0 0.0
    %3547 = vmatprep.subr.mxu0 0.0
    %3548 = vmatpush2.msra.mxu0 0.0
    %3549 = vmatprep.subr.mxu0 0.0
    %3550 = vmatpush2.msra.mxu0 0.0
    %3551 = vmatprep.subr.mxu0 0.0
    %3552 = vmatpush2.msra.mxu0 0.0
    %3553 = vmatprep.subr.mxu0 0.0
    %3554 = vmatpush2.msra.mxu0 0.0
    %3555 = vmatprep.subr.mxu0 0.0
    %3556 = vmatpush2.msra.mxu0 0.0
    %3557 = vmatprep.subr.mxu0 0.0
    %3558 = vmatpush2.msra.mxu0 0.0
    %3559 = vmatprep.subr.mxu0 0.0
    %3560 = vmatpush2.msra.mxu0 0.0
    %3561 = vmatprep.subr.mxu0 0.0
    %3562 = vmatpush2.msra.mxu0 0.0
    %3563 = vmatprep.subr.mxu0 0.0
    %3564 = vmatpush2.msra.mxu0 0.0
    %3565 = vmatprep.subr.mxu0 0.0
    %3566 = vmatpush2.msra.mxu0 0.0
    %3567 = vmatprep.subr.mxu0 0.0
    %3568 = vmatpush2.msra.mxu0 0.0
    %3569 = vmatprep.mubr.f32.mxu0 0.0
    %3570 = vmatmul.mubr.f32.gmra.mxu0 %v3503
    %v3571 = vpop.f32.mrf.mxu0
    %v3572 = vadd.f32 %v3495, %v3571
    %v3573 = vpop.f32.mrf.mxu0
    %3574 = vdwg.mxu0
    %v3575 = vxor.u32 %v3572, 2147483648
    %v3576 = vmul.f32 %v3575, 1.442695
    %v3577 = vpow.pop %v3576
    %v3578 = vadd.f32 %v3577, 1.0
    %v3579 = vrcp.pop %v3578
    %v3580 = vmul.f32 1.0, %v3579
    %v3581 = vmul.f32 %v3580, %v3501
    %3583 = vrot.lane.b32.xlu0 %v3495, 64
    %v3584 = vpop.permute.xlu0 %3583
    %v3587 = vsel %vm357, %v3581, 0
    %3589 = vmatprep.subr.mxu0 0.0
    %3590 = vmatpush1.msra.mxu0 0.0
    %3591 = vmatprep.subr.mxu0 0.0
    %3592 = vmatpush1.msra.mxu0 0.0
    %3593 = vmatprep.subr.mxu0 0.0
    %3594 = vmatpush1.msra.mxu0 0.0
    %3595 = vmatprep.subr.mxu0 0.0
    %3596 = vmatpush1.msra.mxu0 0.0
    %3597 = vmatprep.subr.mxu0 0.0
    %3598 = vmatpush1.msra.mxu0 0.0
    %3599 = vmatprep.subr.mxu0 0.0
    %3600 = vmatpush1.msra.mxu0 0.0
    %3601 = vmatprep.subr.mxu0 0.0
    %3602 = vmatpush1.msra.mxu0 0.0
    %3603 = vmatprep.subr.mxu0 0.0
    %3604 = vmatpush1.msra.mxu0 0.0
    %3605 = vmatprep.subr.mxu0 0.0
    %3606 = vmatpush1.msra.mxu0 0.0
    %3607 = vmatprep.subr.mxu0 0.0
    %3608 = vmatpush1.msra.mxu0 0.0
    %3609 = vmatprep.subr.mxu0 0.0
    %3610 = vmatpush1.msra.mxu0 0.0
    %3611 = vmatprep.subr.mxu0 0.0
    %3612 = vmatpush1.msra.mxu0 0.0
    %3613 = vmatprep.subr.mxu0 0.0
    %3614 = vmatpush1.msra.mxu0 %v121
    %3615 = vmatprep.subr.mxu0 0.0
    %3616 = vmatpush1.msra.mxu0 %v120
    %3617 = vmatprep.subr.mxu0 0.0
    %3618 = vmatpush1.msra.mxu0 %v119
    %3619 = vmatprep.subr.mxu0 0.0
    %3620 = vmatpush1.msra.mxu0 %v118
    %3621 = vmatprep.subr.mxu0 0.0
    %3622 = vmatpush2.msra.mxu0 0.0
    %3623 = vmatprep.subr.mxu0 0.0
    %3624 = vmatpush2.msra.mxu0 0.0
    %3625 = vmatprep.subr.mxu0 0.0
    %3626 = vmatpush2.msra.mxu0 0.0
    %3627 = vmatprep.subr.mxu0 0.0
    %3628 = vmatpush2.msra.mxu0 0.0
    %3629 = vmatprep.subr.mxu0 0.0
    %3630 = vmatpush2.msra.mxu0 0.0
    %3631 = vmatprep.subr.mxu0 0.0
    %3632 = vmatpush2.msra.mxu0 0.0
    %3633 = vmatprep.subr.mxu0 0.0
    %3634 = vmatpush2.msra.mxu0 0.0
    %3635 = vmatprep.subr.mxu0 0.0
    %3636 = vmatpush2.msra.mxu0 0.0
    %3637 = vmatprep.subr.mxu0 0.0
    %3638 = vmatpush2.msra.mxu0 0.0
    %3639 = vmatprep.subr.mxu0 0.0
    %3640 = vmatpush2.msra.mxu0 0.0
    %3641 = vmatprep.subr.mxu0 0.0
    %3642 = vmatpush2.msra.mxu0 0.0
    %3643 = vmatprep.subr.mxu0 0.0
    %3644 = vmatpush2.msra.mxu0 0.0
    %3645 = vmatprep.subr.mxu0 0.0
    %3646 = vmatpush2.msra.mxu0 0.0
    %3647 = vmatprep.subr.mxu0 0.0
    %3648 = vmatpush2.msra.mxu0 0.0
    %3649 = vmatprep.subr.mxu0 0.0
    %3650 = vmatpush2.msra.mxu0 0.0
    %3651 = vmatprep.subr.mxu0 0.0
    %3652 = vmatpush2.msra.mxu0 0.0
    %3653 = vmatprep.mubr.f32.mxu0 0.0
    %3654 = vmatmul.mubr.f32.gmra.mxu0 %v3587
    %v3655 = vpop.f32.mrf.mxu0
    %v3656 = vadd.f32 %v3584, %v3655
    %v3657 = vpop.f32.mrf.mxu0
    %3658 = vdwg.mxu0
    %v3659 = vtanh.pop %v3656
    %v3660 = vsub.f32 1.0, %v3580
    %3661 = vrot.lane.b32.xlu0 %v3501, 32
    %v3662 = vpop.permute.xlu0 %3661
    %v3664 = vmul.f32 %v3660, %v3662
    %3666 = vrot.lane.b32.xlu0 %v3659, 32
    %v3667 = vpop.permute.xlu0 %3666
    %v3669 = vmul.f32 %v3580, %v3667
    %v3670 = vadd.f32 %v3664, %v3669
    %3672 = vrot.lane.b32.xlu0 %v3670, 96
    %v3673 = vpop.permute.xlu0 %3672
    %v3674 = vsel %vm357, %v3673, 0
    %3676 = vmatprep.subr.mxu0 0.0
    %3677 = vmatpush1.msra.mxu0 0.0
    %3678 = vmatprep.subr.mxu0 0.0
    %3679 = vmatpush1.msra.mxu0 0.0
    %3680 = vmatprep.subr.mxu0 0.0
    %3681 = vmatpush1.msra.mxu0 0.0
    %3682 = vmatprep.subr.mxu0 0.0
    %3683 = vmatpush1.msra.mxu0 0.0
    %3684 = vmatprep.subr.mxu0 0.0
    %3685 = vmatpush1.msra.mxu0 0.0
    %3686 = vmatprep.subr.mxu0 0.0
    %3687 = vmatpush1.msra.mxu0 0.0
    %3688 = vmatprep.subr.mxu0 0.0
    %3689 = vmatpush1.msra.mxu0 0.0
    %3690 = vmatprep.subr.mxu0 0.0
    %3691 = vmatpush1.msra.mxu0 0.0
    %3692 = vmatprep.subr.mxu0 0.0
    %3693 = vmatpush1.msra.mxu0 0.0
    %3694 = vmatprep.subr.mxu0 0.0
    %3695 = vmatpush1.msra.mxu0 0.0
    %3696 = vmatprep.subr.mxu0 0.0
    %3697 = vmatpush1.msra.mxu0 0.0
    %3698 = vmatprep.subr.mxu0 0.0
    %3699 = vmatpush1.msra.mxu0 0.0
    %3700 = vmatprep.subr.mxu0 0.0
    %3701 = vmatpush1.msra.mxu0 %v126
    %3702 = vmatprep.subr.mxu0 0.0
    %3703 = vmatpush1.msra.mxu0 %v125
    %3704 = vmatprep.subr.mxu0 0.0
    %3705 = vmatpush1.msra.mxu0 %v124
    %3706 = vmatprep.subr.mxu0 0.0
    %3707 = vmatpush1.msra.mxu0 %v123
    %3708 = vmatprep.subr.mxu0 0.0
    %3709 = vmatpush2.msra.mxu0 0.0
    %3710 = vmatprep.subr.mxu0 0.0
    %3711 = vmatpush2.msra.mxu0 0.0
    %3712 = vmatprep.subr.mxu0 0.0
    %3713 = vmatpush2.msra.mxu0 0.0
    %3714 = vmatprep.subr.mxu0 0.0
    %3715 = vmatpush2.msra.mxu0 0.0
    %3716 = vmatprep.subr.mxu0 0.0
    %3717 = vmatpush2.msra.mxu0 0.0
    %3718 = vmatprep.subr.mxu0 0.0
    %3719 = vmatpush2.msra.mxu0 0.0
    %3720 = vmatprep.subr.mxu0 0.0
    %3721 = vmatpush2.msra.mxu0 0.0
    %3722 = vmatprep.subr.mxu0 0.0
    %3723 = vmatpush2.msra.mxu0 0.0
    %3724 = vmatprep.subr.mxu0 0.0
    %3725 = vmatpush2.msra.mxu0 0.0
    %3726 = vmatprep.subr.mxu0 0.0
    %3727 = vmatpush2.msra.mxu0 0.0
    %3728 = vmatprep.subr.mxu0 0.0
    %3729 = vmatpush2.msra.mxu0 0.0
    %3730 = vmatprep.subr.mxu0 0.0
    %3731 = vmatpush2.msra.mxu0 0.0
    %3732 = vmatprep.subr.mxu0 0.0
    %3733 = vmatpush2.msra.mxu0 0.0
    %3734 = vmatprep.subr.mxu0 0.0
    %3735 = vmatpush2.msra.mxu0 0.0
    %3736 = vmatprep.subr.mxu0 0.0
    %3737 = vmatpush2.msra.mxu0 0.0
    %3738 = vmatprep.subr.mxu0 0.0
    %3739 = vmatpush2.msra.mxu0 0.0
    %3740 = vmatprep.mubr.f32.mxu0 0.0
    %3741 = vmatmul.mubr.f32.gmra.mxu0 %v3674
    %v3742 = vpop.f32.mrf.mxu0
    %v3743 = vadd.f32 %v139, %v3742
    %v3744 = vpop.f32.mrf.mxu0
    %3745 = vdwg.mxu0
    %v3746 = vtanh.pop %v3743
    %s3747 = scalar_lea.vmem %s22, 8
    %3748 = vst.msk [vmem:[%s3747] sm:$0x3] %vm146, %v3746
    %v3750 = vsel %vm260, %v3746, 0
    %3752 = vmatprep.subr.mxu0 0.0
    %3753 = vmatpush1.msra.mxu0 0.0
    %3754 = vmatprep.subr.mxu0 0.0
    %3755 = vmatpush1.msra.mxu0 0.0
    %3756 = vmatprep.subr.mxu0 0.0
    %3757 = vmatpush1.msra.mxu0 0.0
    %3758 = vmatprep.subr.mxu0 0.0
    %3759 = vmatpush1.msra.mxu0 0.0
    %3760 = vmatprep.subr.mxu0 0.0
    %3761 = vmatpush1.msra.mxu0 0.0
    %3762 = vmatprep.subr.mxu0 0.0
    %3763 = vmatpush1.msra.mxu0 0.0
    %3764 = vmatprep.subr.mxu0 0.0
    %3765 = vmatpush1.msra.mxu0 0.0
    %3766 = vmatprep.subr.mxu0 0.0
    %3767 = vmatpush1.msra.mxu0 0.0
    %3768 = vmatprep.subr.mxu0 0.0
    %3769 = vmatpush1.msra.mxu0 0.0
    %3770 = vmatprep.subr.mxu0 0.0
    %3771 = vmatpush1.msra.mxu0 0.0
    %3772 = vmatprep.subr.mxu0 0.0
    %3773 = vmatpush1.msra.mxu0 0.0
    %3774 = vmatprep.subr.mxu0 0.0
    %3775 = vmatpush1.msra.mxu0 0.0
    %3776 = vmatprep.subr.mxu0 0.0
    %3777 = vmatpush1.msra.mxu0 0.0
    %3778 = vmatprep.subr.mxu0 0.0
    %3779 = vmatpush1.msra.mxu0 0.0
    %3780 = vmatprep.subr.mxu0 0.0
    %3781 = vmatpush1.msra.mxu0 0.0
    %3782 = vmatprep.subr.mxu0 0.0
    %3783 = vmatpush1.msra.mxu0 %v2133
    %3784 = vmatprep.subr.mxu0 0.0
    %3785 = vmatpush2.msra.mxu0 0.0
    %3786 = vmatprep.subr.mxu0 0.0
    %3787 = vmatpush2.msra.mxu0 0.0
    %3788 = vmatprep.subr.mxu0 0.0
    %3789 = vmatpush2.msra.mxu0 0.0
    %3790 = vmatprep.subr.mxu0 0.0
    %3791 = vmatpush2.msra.mxu0 0.0
    %3792 = vmatprep.subr.mxu0 0.0
    %3793 = vmatpush2.msra.mxu0 0.0
    %3794 = vmatprep.subr.mxu0 0.0
    %3795 = vmatpush2.msra.mxu0 0.0
    %3796 = vmatprep.subr.mxu0 0.0
    %3797 = vmatpush2.msra.mxu0 0.0
    %3798 = vmatprep.subr.mxu0 0.0
    %3799 = vmatpush2.msra.mxu0 0.0
    %3800 = vmatprep.subr.mxu0 0.0
    %3801 = vmatpush2.msra.mxu0 0.0
    %3802 = vmatprep.subr.mxu0 0.0
    %3803 = vmatpush2.msra.mxu0 0.0
    %3804 = vmatprep.subr.mxu0 0.0
    %3805 = vmatpush2.msra.mxu0 0.0
    %3806 = vmatprep.subr.mxu0 0.0
    %3807 = vmatpush2.msra.mxu0 0.0
    %3808 = vmatprep.subr.mxu0 0.0
    %3809 = vmatpush2.msra.mxu0 0.0
    %3810 = vmatprep.subr.mxu0 0.0
    %3811 = vmatpush2.msra.mxu0 0.0
    %3812 = vmatprep.subr.mxu0 0.0
    %3813 = vmatpush2.msra.mxu0 0.0
    %3814 = vmatprep.subr.mxu0 0.0
    %3815 = vmatpush2.msra.mxu0 0.0
    %3816 = vmatprep.mubr.f32.mxu0 0.0
    %3817 = vmatmul.mubr.f32.gmra.mxu0 %v3750
    %v3818 = vpop.f32.mrf.mxu0
    %v3819 = vadd.f32 %v132, %v3818
    %v3820 = vpop.f32.mrf.mxu0
    %3821 = vdwg.mxu0
    %s3822 = scalar_lea.vmem [#allocation7], 10
    %v3823 = vld [vmem:[%s3822] sm:$0x3]
    %v3825 = vmul.f32 %v3823, %v3673
    %v3827 = vsel %vm357, %v3825, 0
    %3829 = vmatprep.subr.mxu0 0.0
    %3830 = vmatpush1.msra.mxu0 0.0
    %3831 = vmatprep.subr.mxu0 0.0
    %3832 = vmatpush1.msra.mxu0 0.0
    %3833 = vmatprep.subr.mxu0 0.0
    %3834 = vmatpush1.msra.mxu0 0.0
    %3835 = vmatprep.subr.mxu0 0.0
    %3836 = vmatpush1.msra.mxu0 0.0
    %3837 = vmatprep.subr.mxu0 0.0
    %3838 = vmatpush1.msra.mxu0 0.0
    %3839 = vmatprep.subr.mxu0 0.0
    %3840 = vmatpush1.msra.mxu0 0.0
    %3841 = vmatprep.subr.mxu0 0.0
    %3842 = vmatpush1.msra.mxu0 0.0
    %3843 = vmatprep.subr.mxu0 0.0
    %3844 = vmatpush1.msra.mxu0 0.0
    %3845 = vmatprep.subr.mxu0 0.0
    %3846 = vmatpush1.msra.mxu0 0.0
    %3847 = vmatprep.subr.mxu0 0.0
    %3848 = vmatpush1.msra.mxu0 0.0
    %3849 = vmatprep.subr.mxu0 0.0
    %3850 = vmatpush1.msra.mxu0 0.0
    %3851 = vmatprep.subr.mxu0 0.0
    %3852 = vmatpush1.msra.mxu0 0.0
    %3853 = vmatprep.subr.mxu0 0.0
    %3854 = vmatpush1.msra.mxu0 %v117
    %3855 = vmatprep.subr.mxu0 0.0
    %3856 = vmatpush1.msra.mxu0 %v116
    %3857 = vmatprep.subr.mxu0 0.0
    %3858 = vmatpush1.msra.mxu0 %v115
    %3859 = vmatprep.subr.mxu0 0.0
    %3860 = vmatpush1.msra.mxu0 %v114
    %3861 = vmatprep.subr.mxu0 0.0
    %3862 = vmatpush2.msra.mxu0 0.0
    %3863 = vmatprep.subr.mxu0 0.0
    %3864 = vmatpush2.msra.mxu0 0.0
    %3865 = vmatprep.subr.mxu0 0.0
    %3866 = vmatpush2.msra.mxu0 0.0
    %3867 = vmatprep.subr.mxu0 0.0
    %3868 = vmatpush2.msra.mxu0 0.0
    %3869 = vmatprep.subr.mxu0 0.0
    %3870 = vmatpush2.msra.mxu0 0.0
    %3871 = vmatprep.subr.mxu0 0.0
    %3872 = vmatpush2.msra.mxu0 0.0
    %3873 = vmatprep.subr.mxu0 0.0
    %3874 = vmatpush2.msra.mxu0 0.0
    %3875 = vmatprep.subr.mxu0 0.0
    %3876 = vmatpush2.msra.mxu0 0.0
    %3877 = vmatprep.subr.mxu0 0.0
    %3878 = vmatpush2.msra.mxu0 0.0
    %3879 = vmatprep.subr.mxu0 0.0
    %3880 = vmatpush2.msra.mxu0 0.0
    %3881 = vmatprep.subr.mxu0 0.0
    %3882 = vmatpush2.msra.mxu0 0.0
    %3883 = vmatprep.subr.mxu0 0.0
    %3884 = vmatpush2.msra.mxu0 0.0
    %3885 = vmatprep.subr.mxu0 0.0
    %3886 = vmatpush2.msra.mxu0 0.0
    %3887 = vmatprep.subr.mxu0 0.0
    %3888 = vmatpush2.msra.mxu0 0.0
    %3889 = vmatprep.subr.mxu0 0.0
    %3890 = vmatpush2.msra.mxu0 0.0
    %3891 = vmatprep.subr.mxu0 0.0
    %3892 = vmatpush2.msra.mxu0 0.0
    %3893 = vmatprep.mubr.f32.mxu0 0.0
    %3894 = vmatmul.mubr.f32.gmra.mxu0 %v3827
    %v3895 = vpop.f32.mrf.mxu0
    %v3896 = vadd.f32 %v3819, %v3895
    %v3897 = vpop.f32.mrf.mxu0
    %3898 = vdwg.mxu0
    %v3899 = vxor.u32 %v3896, 2147483648
    %v3900 = vmul.f32 %v3899, 1.442695
    %v3901 = vpow.pop %v3900
    %v3902 = vadd.f32 %v3901, 1.0
    %v3903 = vrcp.pop %v3902
    %v3904 = vmul.f32 1.0, %v3903
    %v3905 = vmul.f32 %v3904, %v3825
    %3907 = vrot.lane.b32.xlu0 %v3819, 64
    %v3908 = vpop.permute.xlu0 %3907
    %v3911 = vsel %vm357, %v3905, 0
    %3913 = vmatprep.subr.mxu0 0.0
    %3914 = vmatpush1.msra.mxu0 0.0
    %3915 = vmatprep.subr.mxu0 0.0
    %3916 = vmatpush1.msra.mxu0 0.0
    %3917 = vmatprep.subr.mxu0 0.0
    %3918 = vmatpush1.msra.mxu0 0.0
    %3919 = vmatprep.subr.mxu0 0.0
    %3920 = vmatpush1.msra.mxu0 0.0
    %3921 = vmatprep.subr.mxu0 0.0
    %3922 = vmatpush1.msra.mxu0 0.0
    %3923 = vmatprep.subr.mxu0 0.0
    %3924 = vmatpush1.msra.mxu0 0.0
    %3925 = vmatprep.subr.mxu0 0.0
    %3926 = vmatpush1.msra.mxu0 0.0
    %3927 = vmatprep.subr.mxu0 0.0
    %3928 = vmatpush1.msra.mxu0 0.0
    %3929 = vmatprep.subr.mxu0 0.0
    %3930 = vmatpush1.msra.mxu0 0.0
    %3931 = vmatprep.subr.mxu0 0.0
    %3932 = vmatpush1.msra.mxu0 0.0
    %3933 = vmatprep.subr.mxu0 0.0
    %3934 = vmatpush1.msra.mxu0 0.0
    %3935 = vmatprep.subr.mxu0 0.0
    %3936 = vmatpush1.msra.mxu0 0.0
    %3937 = vmatprep.subr.mxu0 0.0
    %3938 = vmatpush1.msra.mxu0 %v121
    %3939 = vmatprep.subr.mxu0 0.0
    %3940 = vmatpush1.msra.mxu0 %v120
    %3941 = vmatprep.subr.mxu0 0.0
    %3942 = vmatpush1.msra.mxu0 %v119
    %3943 = vmatprep.subr.mxu0 0.0
    %3944 = vmatpush1.msra.mxu0 %v118
    %3945 = vmatprep.subr.mxu0 0.0
    %3946 = vmatpush2.msra.mxu0 0.0
    %3947 = vmatprep.subr.mxu0 0.0
    %3948 = vmatpush2.msra.mxu0 0.0
    %3949 = vmatprep.subr.mxu0 0.0
    %3950 = vmatpush2.msra.mxu0 0.0
    %3951 = vmatprep.subr.mxu0 0.0
    %3952 = vmatpush2.msra.mxu0 0.0
    %3953 = vmatprep.subr.mxu0 0.0
    %3954 = vmatpush2.msra.mxu0 0.0
    %3955 = vmatprep.subr.mxu0 0.0
    %3956 = vmatpush2.msra.mxu0 0.0
    %3957 = vmatprep.subr.mxu0 0.0
    %3958 = vmatpush2.msra.mxu0 0.0
    %3959 = vmatprep.subr.mxu0 0.0
    %3960 = vmatpush2.msra.mxu0 0.0
    %3961 = vmatprep.subr.mxu0 0.0
    %3962 = vmatpush2.msra.mxu0 0.0
    %3963 = vmatprep.subr.mxu0 0.0
    %3964 = vmatpush2.msra.mxu0 0.0
    %3965 = vmatprep.subr.mxu0 0.0
    %3966 = vmatpush2.msra.mxu0 0.0
    %3967 = vmatprep.subr.mxu0 0.0
    %3968 = vmatpush2.msra.mxu0 0.0
    %3969 = vmatprep.subr.mxu0 0.0
    %3970 = vmatpush2.msra.mxu0 0.0
    %3971 = vmatprep.subr.mxu0 0.0
    %3972 = vmatpush2.msra.mxu0 0.0
    %3973 = vmatprep.subr.mxu0 0.0
    %3974 = vmatpush2.msra.mxu0 0.0
    %3975 = vmatprep.subr.mxu0 0.0
    %3976 = vmatpush2.msra.mxu0 0.0
    %3977 = vmatprep.mubr.f32.mxu0 0.0
    %3978 = vmatmul.mubr.f32.gmra.mxu0 %v3911
    %v3979 = vpop.f32.mrf.mxu0
    %v3980 = vadd.f32 %v3908, %v3979
    %v3981 = vpop.f32.mrf.mxu0
    %3982 = vdwg.mxu0
    %v3983 = vtanh.pop %v3980
    %v3984 = vsub.f32 1.0, %v3904
    %3985 = vrot.lane.b32.xlu0 %v3825, 32
    %v3986 = vpop.permute.xlu0 %3985
    %v3988 = vmul.f32 %v3984, %v3986
    %3990 = vrot.lane.b32.xlu0 %v3983, 32
    %v3991 = vpop.permute.xlu0 %3990
    %v3993 = vmul.f32 %v3904, %v3991
    %v3994 = vadd.f32 %v3988, %v3993
    %3996 = vrot.lane.b32.xlu0 %v3994, 96
    %v3997 = vpop.permute.xlu0 %3996
    %v3998 = vsel %vm357, %v3997, 0
    %4000 = vmatprep.subr.mxu0 0.0
    %4001 = vmatpush1.msra.mxu0 0.0
    %4002 = vmatprep.subr.mxu0 0.0
    %4003 = vmatpush1.msra.mxu0 0.0
    %4004 = vmatprep.subr.mxu0 0.0
    %4005 = vmatpush1.msra.mxu0 0.0
    %4006 = vmatprep.subr.mxu0 0.0
    %4007 = vmatpush1.msra.mxu0 0.0
    %4008 = vmatprep.subr.mxu0 0.0
    %4009 = vmatpush1.msra.mxu0 0.0
    %4010 = vmatprep.subr.mxu0 0.0
    %4011 = vmatpush1.msra.mxu0 0.0
    %4012 = vmatprep.subr.mxu0 0.0
    %4013 = vmatpush1.msra.mxu0 0.0
    %4014 = vmatprep.subr.mxu0 0.0
    %4015 = vmatpush1.msra.mxu0 0.0
    %4016 = vmatprep.subr.mxu0 0.0
    %4017 = vmatpush1.msra.mxu0 0.0
    %4018 = vmatprep.subr.mxu0 0.0
    %4019 = vmatpush1.msra.mxu0 0.0
    %4020 = vmatprep.subr.mxu0 0.0
    %4021 = vmatpush1.msra.mxu0 0.0
    %4022 = vmatprep.subr.mxu0 0.0
    %4023 = vmatpush1.msra.mxu0 0.0
    %4024 = vmatprep.subr.mxu0 0.0
    %4025 = vmatpush1.msra.mxu0 %v126
    %4026 = vmatprep.subr.mxu0 0.0
    %4027 = vmatpush1.msra.mxu0 %v125
    %4028 = vmatprep.subr.mxu0 0.0
    %4029 = vmatpush1.msra.mxu0 %v124
    %4030 = vmatprep.subr.mxu0 0.0
    %4031 = vmatpush1.msra.mxu0 %v123
    %4032 = vmatprep.subr.mxu0 0.0
    %4033 = vmatpush2.msra.mxu0 0.0
    %4034 = vmatprep.subr.mxu0 0.0
    %4035 = vmatpush2.msra.mxu0 0.0
    %4036 = vmatprep.subr.mxu0 0.0
    %4037 = vmatpush2.msra.mxu0 0.0
    %4038 = vmatprep.subr.mxu0 0.0
    %4039 = vmatpush2.msra.mxu0 0.0
    %4040 = vmatprep.subr.mxu0 0.0
    %4041 = vmatpush2.msra.mxu0 0.0
    %4042 = vmatprep.subr.mxu0 0.0
    %4043 = vmatpush2.msra.mxu0 0.0
    %4044 = vmatprep.subr.mxu0 0.0
    %4045 = vmatpush2.msra.mxu0 0.0
    %4046 = vmatprep.subr.mxu0 0.0
    %4047 = vmatpush2.msra.mxu0 0.0
    %4048 = vmatprep.subr.mxu0 0.0
    %4049 = vmatpush2.msra.mxu0 0.0
    %4050 = vmatprep.subr.mxu0 0.0
    %4051 = vmatpush2.msra.mxu0 0.0
    %4052 = vmatprep.subr.mxu0 0.0
    %4053 = vmatpush2.msra.mxu0 0.0
    %4054 = vmatprep.subr.mxu0 0.0
    %4055 = vmatpush2.msra.mxu0 0.0
    %4056 = vmatprep.subr.mxu0 0.0
    %4057 = vmatpush2.msra.mxu0 0.0
    %4058 = vmatprep.subr.mxu0 0.0
    %4059 = vmatpush2.msra.mxu0 0.0
    %4060 = vmatprep.subr.mxu0 0.0
    %4061 = vmatpush2.msra.mxu0 0.0
    %4062 = vmatprep.subr.mxu0 0.0
    %4063 = vmatpush2.msra.mxu0 0.0
    %4064 = vmatprep.mubr.f32.mxu0 0.0
    %4065 = vmatmul.mubr.f32.gmra.mxu0 %v3998
    %v4066 = vpop.f32.mrf.mxu0
    %v4067 = vadd.f32 %v139, %v4066
    %v4068 = vpop.f32.mrf.mxu0
    %4069 = vdwg.mxu0
    %v4070 = vtanh.pop %v4067
    %s4071 = scalar_lea.vmem %s22, 10
    %4072 = vst.msk [vmem:[%s4071] sm:$0x3] %vm146, %v4070
    %v4074 = vsel %vm260, %v4070, 0
    %4076 = vmatprep.subr.mxu0 0.0
    %4077 = vmatpush1.msra.mxu0 0.0
    %4078 = vmatprep.subr.mxu0 0.0
    %4079 = vmatpush1.msra.mxu0 0.0
    %4080 = vmatprep.subr.mxu0 0.0
    %4081 = vmatpush1.msra.mxu0 0.0
    %4082 = vmatprep.subr.mxu0 0.0
    %4083 = vmatpush1.msra.mxu0 0.0
    %4084 = vmatprep.subr.mxu0 0.0
    %4085 = vmatpush1.msra.mxu0 0.0
    %4086 = vmatprep.subr.mxu0 0.0
    %4087 = vmatpush1.msra.mxu0 0.0
    %4088 = vmatprep.subr.mxu0 0.0
    %4089 = vmatpush1.msra.mxu0 0.0
    %4090 = vmatprep.subr.mxu0 0.0
    %4091 = vmatpush1.msra.mxu0 0.0
    %4092 = vmatprep.subr.mxu0 0.0
    %4093 = vmatpush1.msra.mxu0 0.0
    %4094 = vmatprep.subr.mxu0 0.0
    %4095 = vmatpush1.msra.mxu0 0.0
    %4096 = vmatprep.subr.mxu0 0.0
    %4097 = vmatpush1.msra.mxu0 0.0
    %4098 = vmatprep.subr.mxu0 0.0
    %4099 = vmatpush1.msra.mxu0 0.0
    %4100 = vmatprep.subr.mxu0 0.0
    %4101 = vmatpush1.msra.mxu0 0.0
    %4102 = vmatprep.subr.mxu0 0.0
    %4103 = vmatpush1.msra.mxu0 0.0
    %4104 = vmatprep.subr.mxu0 0.0
    %4105 = vmatpush1.msra.mxu0 0.0
    %4106 = vmatprep.subr.mxu0 0.0
    %4107 = vmatpush1.msra.mxu0 %v2133
    %4108 = vmatprep.subr.mxu0 0.0
    %4109 = vmatpush2.msra.mxu0 0.0
    %4110 = vmatprep.subr.mxu0 0.0
    %4111 = vmatpush2.msra.mxu0 0.0
    %4112 = vmatprep.subr.mxu0 0.0
    %4113 = vmatpush2.msra.mxu0 0.0
    %4114 = vmatprep.subr.mxu0 0.0
    %4115 = vmatpush2.msra.mxu0 0.0
    %4116 = vmatprep.subr.mxu0 0.0
    %4117 = vmatpush2.msra.mxu0 0.0
    %4118 = vmatprep.subr.mxu0 0.0
    %4119 = vmatpush2.msra.mxu0 0.0
    %4120 = vmatprep.subr.mxu0 0.0
    %4121 = vmatpush2.msra.mxu0 0.0
    %4122 = vmatprep.subr.mxu0 0.0
    %4123 = vmatpush2.msra.mxu0 0.0
    %4124 = vmatprep.subr.mxu0 0.0
    %4125 = vmatpush2.msra.mxu0 0.0
    %4126 = vmatprep.subr.mxu0 0.0
    %4127 = vmatpush2.msra.mxu0 0.0
    %4128 = vmatprep.subr.mxu0 0.0
    %4129 = vmatpush2.msra.mxu0 0.0
    %4130 = vmatprep.subr.mxu0 0.0
    %4131 = vmatpush2.msra.mxu0 0.0
    %4132 = vmatprep.subr.mxu0 0.0
    %4133 = vmatpush2.msra.mxu0 0.0
    %4134 = vmatprep.subr.mxu0 0.0
    %4135 = vmatpush2.msra.mxu0 0.0
    %4136 = vmatprep.subr.mxu0 0.0
    %4137 = vmatpush2.msra.mxu0 0.0
    %4138 = vmatprep.subr.mxu0 0.0
    %4139 = vmatpush2.msra.mxu0 0.0
    %4140 = vmatprep.mubr.f32.mxu0 0.0
    %4141 = vmatmul.mubr.f32.gmra.mxu0 %v4074
    %v4142 = vpop.f32.mrf.mxu0
    %v4143 = vadd.f32 %v132, %v4142
    %v4144 = vpop.f32.mrf.mxu0
    %4145 = vdwg.mxu0
    %s4146 = scalar_lea.vmem [#allocation7], 12
    %v4147 = vld [vmem:[%s4146] sm:$0x3]
    %v4149 = vmul.f32 %v4147, %v3997
    %v4151 = vsel %vm357, %v4149, 0
    %4153 = vmatprep.subr.mxu0 0.0
    %4154 = vmatpush1.msra.mxu0 0.0
    %4155 = vmatprep.subr.mxu0 0.0
    %4156 = vmatpush1.msra.mxu0 0.0
    %4157 = vmatprep.subr.mxu0 0.0
    %4158 = vmatpush1.msra.mxu0 0.0
    %4159 = vmatprep.subr.mxu0 0.0
    %4160 = vmatpush1.msra.mxu0 0.0
    %4161 = vmatprep.subr.mxu0 0.0
    %4162 = vmatpush1.msra.mxu0 0.0
    %4163 = vmatprep.subr.mxu0 0.0
    %4164 = vmatpush1.msra.mxu0 0.0
    %4165 = vmatprep.subr.mxu0 0.0
    %4166 = vmatpush1.msra.mxu0 0.0
    %4167 = vmatprep.subr.mxu0 0.0
    %4168 = vmatpush1.msra.mxu0 0.0
    %4169 = vmatprep.subr.mxu0 0.0
    %4170 = vmatpush1.msra.mxu0 0.0
    %4171 = vmatprep.subr.mxu0 0.0
    %4172 = vmatpush1.msra.mxu0 0.0
    %4173 = vmatprep.subr.mxu0 0.0
    %4174 = vmatpush1.msra.mxu0 0.0
    %4175 = vmatprep.subr.mxu0 0.0
    %4176 = vmatpush1.msra.mxu0 0.0
    %4177 = vmatprep.subr.mxu0 0.0
    %4178 = vmatpush1.msra.mxu0 %v117
    %4179 = vmatprep.subr.mxu0 0.0
    %4180 = vmatpush1.msra.mxu0 %v116
    %4181 = vmatprep.subr.mxu0 0.0
    %4182 = vmatpush1.msra.mxu0 %v115
    %4183 = vmatprep.subr.mxu0 0.0
    %4184 = vmatpush1.msra.mxu0 %v114
    %4185 = vmatprep.subr.mxu0 0.0
    %4186 = vmatpush2.msra.mxu0 0.0
    %4187 = vmatprep.subr.mxu0 0.0
    %4188 = vmatpush2.msra.mxu0 0.0
    %4189 = vmatprep.subr.mxu0 0.0
    %4190 = vmatpush2.msra.mxu0 0.0
    %4191 = vmatprep.subr.mxu0 0.0
    %4192 = vmatpush2.msra.mxu0 0.0
    %4193 = vmatprep.subr.mxu0 0.0
    %4194 = vmatpush2.msra.mxu0 0.0
    %4195 = vmatprep.subr.mxu0 0.0
    %4196 = vmatpush2.msra.mxu0 0.0
    %4197 = vmatprep.subr.mxu0 0.0
    %4198 = vmatpush2.msra.mxu0 0.0
    %4199 = vmatprep.subr.mxu0 0.0
    %4200 = vmatpush2.msra.mxu0 0.0
    %4201 = vmatprep.subr.mxu0 0.0
    %4202 = vmatpush2.msra.mxu0 0.0
    %4203 = vmatprep.subr.mxu0 0.0
    %4204 = vmatpush2.msra.mxu0 0.0
    %4205 = vmatprep.subr.mxu0 0.0
    %4206 = vmatpush2.msra.mxu0 0.0
    %4207 = vmatprep.subr.mxu0 0.0
    %4208 = vmatpush2.msra.mxu0 0.0
    %4209 = vmatprep.subr.mxu0 0.0
    %4210 = vmatpush2.msra.mxu0 0.0
    %4211 = vmatprep.subr.mxu0 0.0
    %4212 = vmatpush2.msra.mxu0 0.0
    %4213 = vmatprep.subr.mxu0 0.0
    %4214 = vmatpush2.msra.mxu0 0.0
    %4215 = vmatprep.subr.mxu0 0.0
    %4216 = vmatpush2.msra.mxu0 0.0
    %4217 = vmatprep.mubr.f32.mxu0 0.0
    %4218 = vmatmul.mubr.f32.gmra.mxu0 %v4151
    %v4219 = vpop.f32.mrf.mxu0
    %v4220 = vadd.f32 %v4143, %v4219
    %v4221 = vpop.f32.mrf.mxu0
    %4222 = vdwg.mxu0
    %v4223 = vxor.u32 %v4220, 2147483648
    %v4224 = vmul.f32 %v4223, 1.442695
    %v4225 = vpow.pop %v4224
    %v4226 = vadd.f32 %v4225, 1.0
    %v4227 = vrcp.pop %v4226
    %v4228 = vmul.f32 1.0, %v4227
    %v4229 = vmul.f32 %v4228, %v4149
    %4231 = vrot.lane.b32.xlu0 %v4143, 64
    %v4232 = vpop.permute.xlu0 %4231
    %v4235 = vsel %vm357, %v4229, 0
    %4237 = vmatprep.subr.mxu0 0.0
    %4238 = vmatpush1.msra.mxu0 0.0
    %4239 = vmatprep.subr.mxu0 0.0
    %4240 = vmatpush1.msra.mxu0 0.0
    %4241 = vmatprep.subr.mxu0 0.0
    %4242 = vmatpush1.msra.mxu0 0.0
    %4243 = vmatprep.subr.mxu0 0.0
    %4244 = vmatpush1.msra.mxu0 0.0
    %4245 = vmatprep.subr.mxu0 0.0
    %4246 = vmatpush1.msra.mxu0 0.0
    %4247 = vmatprep.subr.mxu0 0.0
    %4248 = vmatpush1.msra.mxu0 0.0
    %4249 = vmatprep.subr.mxu0 0.0
    %4250 = vmatpush1.msra.mxu0 0.0
    %4251 = vmatprep.subr.mxu0 0.0
    %4252 = vmatpush1.msra.mxu0 0.0
    %4253 = vmatprep.subr.mxu0 0.0
    %4254 = vmatpush1.msra.mxu0 0.0
    %4255 = vmatprep.subr.mxu0 0.0
    %4256 = vmatpush1.msra.mxu0 0.0
    %4257 = vmatprep.subr.mxu0 0.0
    %4258 = vmatpush1.msra.mxu0 0.0
    %4259 = vmatprep.subr.mxu0 0.0
    %4260 = vmatpush1.msra.mxu0 0.0
    %4261 = vmatprep.subr.mxu0 0.0
    %4262 = vmatpush1.msra.mxu0 %v121
    %4263 = vmatprep.subr.mxu0 0.0
    %4264 = vmatpush1.msra.mxu0 %v120
    %4265 = vmatprep.subr.mxu0 0.0
    %4266 = vmatpush1.msra.mxu0 %v119
    %4267 = vmatprep.subr.mxu0 0.0
    %4268 = vmatpush1.msra.mxu0 %v118
    %4269 = vmatprep.subr.mxu0 0.0
    %4270 = vmatpush2.msra.mxu0 0.0
    %4271 = vmatprep.subr.mxu0 0.0
    %4272 = vmatpush2.msra.mxu0 0.0
    %4273 = vmatprep.subr.mxu0 0.0
    %4274 = vmatpush2.msra.mxu0 0.0
    %4275 = vmatprep.subr.mxu0 0.0
    %4276 = vmatpush2.msra.mxu0 0.0
    %4277 = vmatprep.subr.mxu0 0.0
    %4278 = vmatpush2.msra.mxu0 0.0
    %4279 = vmatprep.subr.mxu0 0.0
    %4280 = vmatpush2.msra.mxu0 0.0
    %4281 = vmatprep.subr.mxu0 0.0
    %4282 = vmatpush2.msra.mxu0 0.0
    %4283 = vmatprep.subr.mxu0 0.0
    %4284 = vmatpush2.msra.mxu0 0.0
    %4285 = vmatprep.subr.mxu0 0.0
    %4286 = vmatpush2.msra.mxu0 0.0
    %4287 = vmatprep.subr.mxu0 0.0
    %4288 = vmatpush2.msra.mxu0 0.0
    %4289 = vmatprep.subr.mxu0 0.0
    %4290 = vmatpush2.msra.mxu0 0.0
    %4291 = vmatprep.subr.mxu0 0.0
    %4292 = vmatpush2.msra.mxu0 0.0
    %4293 = vmatprep.subr.mxu0 0.0
    %4294 = vmatpush2.msra.mxu0 0.0
    %4295 = vmatprep.subr.mxu0 0.0
    %4296 = vmatpush2.msra.mxu0 0.0
    %4297 = vmatprep.subr.mxu0 0.0
    %4298 = vmatpush2.msra.mxu0 0.0
    %4299 = vmatprep.subr.mxu0 0.0
    %4300 = vmatpush2.msra.mxu0 0.0
    %4301 = vmatprep.mubr.f32.mxu0 0.0
    %4302 = vmatmul.mubr.f32.gmra.mxu0 %v4235
    %v4303 = vpop.f32.mrf.mxu0
    %v4304 = vadd.f32 %v4232, %v4303
    %v4305 = vpop.f32.mrf.mxu0
    %4306 = vdwg.mxu0
    %v4307 = vtanh.pop %v4304
    %v4308 = vsub.f32 1.0, %v4228
    %4309 = vrot.lane.b32.xlu0 %v4149, 32
    %v4310 = vpop.permute.xlu0 %4309
    %v4312 = vmul.f32 %v4308, %v4310
    %4314 = vrot.lane.b32.xlu0 %v4307, 32
    %v4315 = vpop.permute.xlu0 %4314
    %v4317 = vmul.f32 %v4228, %v4315
    %v4318 = vadd.f32 %v4312, %v4317
    %4320 = vrot.lane.b32.xlu0 %v4318, 96
    %v4321 = vpop.permute.xlu0 %4320
    %v4322 = vsel %vm357, %v4321, 0
    %4324 = vmatprep.subr.mxu0 0.0
    %4325 = vmatpush1.msra.mxu0 0.0
    %4326 = vmatprep.subr.mxu0 0.0
    %4327 = vmatpush1.msra.mxu0 0.0
    %4328 = vmatprep.subr.mxu0 0.0
    %4329 = vmatpush1.msra.mxu0 0.0
    %4330 = vmatprep.subr.mxu0 0.0
    %4331 = vmatpush1.msra.mxu0 0.0
    %4332 = vmatprep.subr.mxu0 0.0
    %4333 = vmatpush1.msra.mxu0 0.0
    %4334 = vmatprep.subr.mxu0 0.0
    %4335 = vmatpush1.msra.mxu0 0.0
    %4336 = vmatprep.subr.mxu0 0.0
    %4337 = vmatpush1.msra.mxu0 0.0
    %4338 = vmatprep.subr.mxu0 0.0
    %4339 = vmatpush1.msra.mxu0 0.0
    %4340 = vmatprep.subr.mxu0 0.0
    %4341 = vmatpush1.msra.mxu0 0.0
    %4342 = vmatprep.subr.mxu0 0.0
    %4343 = vmatpush1.msra.mxu0 0.0
    %4344 = vmatprep.subr.mxu0 0.0
    %4345 = vmatpush1.msra.mxu0 0.0
    %4346 = vmatprep.subr.mxu0 0.0
    %4347 = vmatpush1.msra.mxu0 0.0
    %4348 = vmatprep.subr.mxu0 0.0
    %4349 = vmatpush1.msra.mxu0 %v126
    %4350 = vmatprep.subr.mxu0 0.0
    %4351 = vmatpush1.msra.mxu0 %v125
    %4352 = vmatprep.subr.mxu0 0.0
    %4353 = vmatpush1.msra.mxu0 %v124
    %4354 = vmatprep.subr.mxu0 0.0
    %4355 = vmatpush1.msra.mxu0 %v123
    %4356 = vmatprep.subr.mxu0 0.0
    %4357 = vmatpush2.msra.mxu0 0.0
    %4358 = vmatprep.subr.mxu0 0.0
    %4359 = vmatpush2.msra.mxu0 0.0
    %4360 = vmatprep.subr.mxu0 0.0
    %4361 = vmatpush2.msra.mxu0 0.0
    %4362 = vmatprep.subr.mxu0 0.0
    %4363 = vmatpush2.msra.mxu0 0.0
    %4364 = vmatprep.subr.mxu0 0.0
    %4365 = vmatpush2.msra.mxu0 0.0
    %4366 = vmatprep.subr.mxu0 0.0
    %4367 = vmatpush2.msra.mxu0 0.0
    %4368 = vmatprep.subr.mxu0 0.0
    %4369 = vmatpush2.msra.mxu0 0.0
    %4370 = vmatprep.subr.mxu0 0.0
    %4371 = vmatpush2.msra.mxu0 0.0
    %4372 = vmatprep.subr.mxu0 0.0
    %4373 = vmatpush2.msra.mxu0 0.0
    %4374 = vmatprep.subr.mxu0 0.0
    %4375 = vmatpush2.msra.mxu0 0.0
    %4376 = vmatprep.subr.mxu0 0.0
    %4377 = vmatpush2.msra.mxu0 0.0
    %4378 = vmatprep.subr.mxu0 0.0
    %4379 = vmatpush2.msra.mxu0 0.0
    %4380 = vmatprep.subr.mxu0 0.0
    %4381 = vmatpush2.msra.mxu0 0.0
    %4382 = vmatprep.subr.mxu0 0.0
    %4383 = vmatpush2.msra.mxu0 0.0
    %4384 = vmatprep.subr.mxu0 0.0
    %4385 = vmatpush2.msra.mxu0 0.0
    %4386 = vmatprep.subr.mxu0 0.0
    %4387 = vmatpush2.msra.mxu0 0.0
    %4388 = vmatprep.mubr.f32.mxu0 0.0
    %4389 = vmatmul.mubr.f32.gmra.mxu0 %v4322
    %v4390 = vpop.f32.mrf.mxu0
    %v4391 = vadd.f32 %v139, %v4390
    %v4392 = vpop.f32.mrf.mxu0
    %4393 = vdwg.mxu0
    %v4394 = vtanh.pop %v4391
    %s4395 = scalar_lea.vmem %s22, 12
    %4396 = vst.msk [vmem:[%s4395] sm:$0x3] %vm146, %v4394
    %v4398 = vsel %vm260, %v4394, 0
    %4400 = vmatprep.subr.mxu0 0.0
    %4401 = vmatpush1.msra.mxu0 0.0
    %4402 = vmatprep.subr.mxu0 0.0
    %4403 = vmatpush1.msra.mxu0 0.0
    %4404 = vmatprep.subr.mxu0 0.0
    %4405 = vmatpush1.msra.mxu0 0.0
    %4406 = vmatprep.subr.mxu0 0.0
    %4407 = vmatpush1.msra.mxu0 0.0
    %4408 = vmatprep.subr.mxu0 0.0
    %4409 = vmatpush1.msra.mxu0 0.0
    %4410 = vmatprep.subr.mxu0 0.0
    %4411 = vmatpush1.msra.mxu0 0.0
    %4412 = vmatprep.subr.mxu0 0.0
    %4413 = vmatpush1.msra.mxu0 0.0
    %4414 = vmatprep.subr.mxu0 0.0
    %4415 = vmatpush1.msra.mxu0 0.0
    %4416 = vmatprep.subr.mxu0 0.0
    %4417 = vmatpush1.msra.mxu0 0.0
    %4418 = vmatprep.subr.mxu0 0.0
    %4419 = vmatpush1.msra.mxu0 0.0
    %4420 = vmatprep.subr.mxu0 0.0
    %4421 = vmatpush1.msra.mxu0 0.0
    %4422 = vmatprep.subr.mxu0 0.0
    %4423 = vmatpush1.msra.mxu0 0.0
    %4424 = vmatprep.subr.mxu0 0.0
    %4425 = vmatpush1.msra.mxu0 0.0
    %4426 = vmatprep.subr.mxu0 0.0
    %4427 = vmatpush1.msra.mxu0 0.0
    %4428 = vmatprep.subr.mxu0 0.0
    %4429 = vmatpush1.msra.mxu0 0.0
    %4430 = vmatprep.subr.mxu0 0.0
    %4431 = vmatpush1.msra.mxu0 %v2133
    %4432 = vmatprep.subr.mxu0 0.0
    %4433 = vmatpush2.msra.mxu0 0.0
    %4434 = vmatprep.subr.mxu0 0.0
    %4435 = vmatpush2.msra.mxu0 0.0
    %4436 = vmatprep.subr.mxu0 0.0
    %4437 = vmatpush2.msra.mxu0 0.0
    %4438 = vmatprep.subr.mxu0 0.0
    %4439 = vmatpush2.msra.mxu0 0.0
    %4440 = vmatprep.subr.mxu0 0.0
    %4441 = vmatpush2.msra.mxu0 0.0
    %4442 = vmatprep.subr.mxu0 0.0
    %4443 = vmatpush2.msra.mxu0 0.0
    %4444 = vmatprep.subr.mxu0 0.0
    %4445 = vmatpush2.msra.mxu0 0.0
    %4446 = vmatprep.subr.mxu0 0.0
    %4447 = vmatpush2.msra.mxu0 0.0
    %4448 = vmatprep.subr.mxu0 0.0
    %4449 = vmatpush2.msra.mxu0 0.0
    %4450 = vmatprep.subr.mxu0 0.0
    %4451 = vmatpush2.msra.mxu0 0.0
    %4452 = vmatprep.subr.mxu0 0.0
    %4453 = vmatpush2.msra.mxu0 0.0
    %4454 = vmatprep.subr.mxu0 0.0
    %4455 = vmatpush2.msra.mxu0 0.0
    %4456 = vmatprep.subr.mxu0 0.0
    %4457 = vmatpush2.msra.mxu0 0.0
    %4458 = vmatprep.subr.mxu0 0.0
    %4459 = vmatpush2.msra.mxu0 0.0
    %4460 = vmatprep.subr.mxu0 0.0
    %4461 = vmatpush2.msra.mxu0 0.0
    %4462 = vmatprep.subr.mxu0 0.0
    %4463 = vmatpush2.msra.mxu0 0.0
    %4464 = vmatprep.mubr.f32.mxu0 0.0
    %4465 = vmatmul.mubr.f32.gmra.mxu0 %v4398
    %v4466 = vpop.f32.mrf.mxu0
    %v4467 = vadd.f32 %v132, %v4466
    %v4468 = vpop.f32.mrf.mxu0
    %4469 = vdwg.mxu0
    %s4470 = scalar_lea.vmem [#allocation7], 14
    %v4471 = vld [vmem:[%s4470] sm:$0x3]
    %v4473 = vmul.f32 %v4471, %v4321
    %v4475 = vsel %vm357, %v4473, 0
    %4477 = vmatprep.subr.mxu0 0.0
    %4478 = vmatpush1.msra.mxu0 0.0
    %4479 = vmatprep.subr.mxu0 0.0
    %4480 = vmatpush1.msra.mxu0 0.0
    %4481 = vmatprep.subr.mxu0 0.0
    %4482 = vmatpush1.msra.mxu0 0.0
    %4483 = vmatprep.subr.mxu0 0.0
    %4484 = vmatpush1.msra.mxu0 0.0
    %4485 = vmatprep.subr.mxu0 0.0
    %4486 = vmatpush1.msra.mxu0 0.0
    %4487 = vmatprep.subr.mxu0 0.0
    %4488 = vmatpush1.msra.mxu0 0.0
    %4489 = vmatprep.subr.mxu0 0.0
    %4490 = vmatpush1.msra.mxu0 0.0
    %4491 = vmatprep.subr.mxu0 0.0
    %4492 = vmatpush1.msra.mxu0 0.0
    %4493 = vmatprep.subr.mxu0 0.0
    %4494 = vmatpush1.msra.mxu0 0.0
    %4495 = vmatprep.subr.mxu0 0.0
    %4496 = vmatpush1.msra.mxu0 0.0
    %4497 = vmatprep.subr.mxu0 0.0
    %4498 = vmatpush1.msra.mxu0 0.0
    %4499 = vmatprep.subr.mxu0 0.0
    %4500 = vmatpush1.msra.mxu0 0.0
    %4501 = vmatprep.subr.mxu0 0.0
    %4502 = vmatpush1.msra.mxu0 %v117
    %4503 = vmatprep.subr.mxu0 0.0
    %4504 = vmatpush1.msra.mxu0 %v116
    %4505 = vmatprep.subr.mxu0 0.0
    %4506 = vmatpush1.msra.mxu0 %v115
    %4507 = vmatprep.subr.mxu0 0.0
    %4508 = vmatpush1.msra.mxu0 %v114
    %4509 = vmatprep.subr.mxu0 0.0
    %4510 = vmatpush2.msra.mxu0 0.0
    %4511 = vmatprep.subr.mxu0 0.0
    %4512 = vmatpush2.msra.mxu0 0.0
    %4513 = vmatprep.subr.mxu0 0.0
    %4514 = vmatpush2.msra.mxu0 0.0
    %4515 = vmatprep.subr.mxu0 0.0
    %4516 = vmatpush2.msra.mxu0 0.0
    %4517 = vmatprep.subr.mxu0 0.0
    %4518 = vmatpush2.msra.mxu0 0.0
    %4519 = vmatprep.subr.mxu0 0.0
    %4520 = vmatpush2.msra.mxu0 0.0
    %4521 = vmatprep.subr.mxu0 0.0
    %4522 = vmatpush2.msra.mxu0 0.0
    %4523 = vmatprep.subr.mxu0 0.0
    %4524 = vmatpush2.msra.mxu0 0.0
    %4525 = vmatprep.subr.mxu0 0.0
    %4526 = vmatpush2.msra.mxu0 0.0
    %4527 = vmatprep.subr.mxu0 0.0
    %4528 = vmatpush2.msra.mxu0 0.0
    %4529 = vmatprep.subr.mxu0 0.0
    %4530 = vmatpush2.msra.mxu0 0.0
    %4531 = vmatprep.subr.mxu0 0.0
    %4532 = vmatpush2.msra.mxu0 0.0
    %4533 = vmatprep.subr.mxu0 0.0
    %4534 = vmatpush2.msra.mxu0 0.0
    %4535 = vmatprep.subr.mxu0 0.0
    %4536 = vmatpush2.msra.mxu0 0.0
    %4537 = vmatprep.subr.mxu0 0.0
    %4538 = vmatpush2.msra.mxu0 0.0
    %4539 = vmatprep.subr.mxu0 0.0
    %4540 = vmatpush2.msra.mxu0 0.0
    %4541 = vmatprep.mubr.f32.mxu0 0.0
    %4542 = vmatmul.mubr.f32.gmra.mxu0 %v4475
    %v4543 = vpop.f32.mrf.mxu0
    %v4544 = vadd.f32 %v4467, %v4543
    %v4545 = vpop.f32.mrf.mxu0
    %4546 = vdwg.mxu0
    %v4547 = vxor.u32 %v4544, 2147483648
    %v4548 = vmul.f32 %v4547, 1.442695
    %v4549 = vpow.pop %v4548
    %v4550 = vadd.f32 %v4549, 1.0
    %v4551 = vrcp.pop %v4550
    %v4552 = vmul.f32 1.0, %v4551
    %v4553 = vmul.f32 %v4552, %v4473
    %4555 = vrot.lane.b32.xlu0 %v4467, 64
    %v4556 = vpop.permute.xlu0 %4555
    %v4559 = vsel %vm357, %v4553, 0
    %4561 = vmatprep.subr.mxu0 0.0
    %4562 = vmatpush1.msra.mxu0 0.0
    %4563 = vmatprep.subr.mxu0 0.0
    %4564 = vmatpush1.msra.mxu0 0.0
    %4565 = vmatprep.subr.mxu0 0.0
    %4566 = vmatpush1.msra.mxu0 0.0
    %4567 = vmatprep.subr.mxu0 0.0
    %4568 = vmatpush1.msra.mxu0 0.0
    %4569 = vmatprep.subr.mxu0 0.0
    %4570 = vmatpush1.msra.mxu0 0.0
    %4571 = vmatprep.subr.mxu0 0.0
    %4572 = vmatpush1.msra.mxu0 0.0
    %4573 = vmatprep.subr.mxu0 0.0
    %4574 = vmatpush1.msra.mxu0 0.0
    %4575 = vmatprep.subr.mxu0 0.0
    %4576 = vmatpush1.msra.mxu0 0.0
    %4577 = vmatprep.subr.mxu0 0.0
    %4578 = vmatpush1.msra.mxu0 0.0
    %4579 = vmatprep.subr.mxu0 0.0
    %4580 = vmatpush1.msra.mxu0 0.0
    %4581 = vmatprep.subr.mxu0 0.0
    %4582 = vmatpush1.msra.mxu0 0.0
    %4583 = vmatprep.subr.mxu0 0.0
    %4584 = vmatpush1.msra.mxu0 0.0
    %4585 = vmatprep.subr.mxu0 0.0
    %4586 = vmatpush1.msra.mxu0 %v121
    %4587 = vmatprep.subr.mxu0 0.0
    %4588 = vmatpush1.msra.mxu0 %v120
    %4589 = vmatprep.subr.mxu0 0.0
    %4590 = vmatpush1.msra.mxu0 %v119
    %4591 = vmatprep.subr.mxu0 0.0
    %4592 = vmatpush1.msra.mxu0 %v118
    %4593 = vmatprep.subr.mxu0 0.0
    %4594 = vmatpush2.msra.mxu0 0.0
    %4595 = vmatprep.subr.mxu0 0.0
    %4596 = vmatpush2.msra.mxu0 0.0
    %4597 = vmatprep.subr.mxu0 0.0
    %4598 = vmatpush2.msra.mxu0 0.0
    %4599 = vmatprep.subr.mxu0 0.0
    %4600 = vmatpush2.msra.mxu0 0.0
    %4601 = vmatprep.subr.mxu0 0.0
    %4602 = vmatpush2.msra.mxu0 0.0
    %4603 = vmatprep.subr.mxu0 0.0
    %4604 = vmatpush2.msra.mxu0 0.0
    %4605 = vmatprep.subr.mxu0 0.0
    %4606 = vmatpush2.msra.mxu0 0.0
    %4607 = vmatprep.subr.mxu0 0.0
    %4608 = vmatpush2.msra.mxu0 0.0
    %4609 = vmatprep.subr.mxu0 0.0
    %4610 = vmatpush2.msra.mxu0 0.0
    %4611 = vmatprep.subr.mxu0 0.0
    %4612 = vmatpush2.msra.mxu0 0.0
    %4613 = vmatprep.subr.mxu0 0.0
    %4614 = vmatpush2.msra.mxu0 0.0
    %4615 = vmatprep.subr.mxu0 0.0
    %4616 = vmatpush2.msra.mxu0 0.0
    %4617 = vmatprep.subr.mxu0 0.0
    %4618 = vmatpush2.msra.mxu0 0.0
    %4619 = vmatprep.subr.mxu0 0.0
    %4620 = vmatpush2.msra.mxu0 0.0
    %4621 = vmatprep.subr.mxu0 0.0
    %4622 = vmatpush2.msra.mxu0 0.0
    %4623 = vmatprep.subr.mxu0 0.0
    %4624 = vmatpush2.msra.mxu0 0.0
    %4625 = vmatprep.mubr.f32.mxu0 0.0
    %4626 = vmatmul.mubr.f32.gmra.mxu0 %v4559
    %v4627 = vpop.f32.mrf.mxu0
    %v4628 = vadd.f32 %v4556, %v4627
    %v4629 = vpop.f32.mrf.mxu0
    %4630 = vdwg.mxu0
    %v4631 = vtanh.pop %v4628
    %v4632 = vsub.f32 1.0, %v4552
    %4633 = vrot.lane.b32.xlu0 %v4473, 32
    %v4634 = vpop.permute.xlu0 %4633
    %v4636 = vmul.f32 %v4632, %v4634
    %4638 = vrot.lane.b32.xlu0 %v4631, 32
    %v4639 = vpop.permute.xlu0 %4638
    %v4641 = vmul.f32 %v4552, %v4639
    %v4642 = vadd.f32 %v4636, %v4641
    %4644 = vrot.lane.b32.xlu0 %v4642, 96
    %v4645 = vpop.permute.xlu0 %4644
    %v4646 = vsel %vm357, %v4645, 0
    %4648 = vmatprep.subr.mxu0 0.0
    %4649 = vmatpush1.msra.mxu0 0.0
    %4650 = vmatprep.subr.mxu0 0.0
    %4651 = vmatpush1.msra.mxu0 0.0
    %4652 = vmatprep.subr.mxu0 0.0
    %4653 = vmatpush1.msra.mxu0 0.0
    %4654 = vmatprep.subr.mxu0 0.0
    %4655 = vmatpush1.msra.mxu0 0.0
    %4656 = vmatprep.subr.mxu0 0.0
    %4657 = vmatpush1.msra.mxu0 0.0
    %4658 = vmatprep.subr.mxu0 0.0
    %4659 = vmatpush1.msra.mxu0 0.0
    %4660 = vmatprep.subr.mxu0 0.0
    %4661 = vmatpush1.msra.mxu0 0.0
    %4662 = vmatprep.subr.mxu0 0.0
    %4663 = vmatpush1.msra.mxu0 0.0
    %4664 = vmatprep.subr.mxu0 0.0
    %4665 = vmatpush1.msra.mxu0 0.0
    %4666 = vmatprep.subr.mxu0 0.0
    %4667 = vmatpush1.msra.mxu0 0.0
    %4668 = vmatprep.subr.mxu0 0.0
    %4669 = vmatpush1.msra.mxu0 0.0
    %4670 = vmatprep.subr.mxu0 0.0
    %4671 = vmatpush1.msra.mxu0 0.0
    %4672 = vmatprep.subr.mxu0 0.0
    %4673 = vmatpush1.msra.mxu0 %v126
    %4674 = vmatprep.subr.mxu0 0.0
    %4675 = vmatpush1.msra.mxu0 %v125
    %4676 = vmatprep.subr.mxu0 0.0
    %4677 = vmatpush1.msra.mxu0 %v124
    %4678 = vmatprep.subr.mxu0 0.0
    %4679 = vmatpush1.msra.mxu0 %v123
    %4680 = vmatprep.subr.mxu0 0.0
    %4681 = vmatpush2.msra.mxu0 0.0
    %4682 = vmatprep.subr.mxu0 0.0
    %4683 = vmatpush2.msra.mxu0 0.0
    %4684 = vmatprep.subr.mxu0 0.0
    %4685 = vmatpush2.msra.mxu0 0.0
    %4686 = vmatprep.subr.mxu0 0.0
    %4687 = vmatpush2.msra.mxu0 0.0
    %4688 = vmatprep.subr.mxu0 0.0
    %4689 = vmatpush2.msra.mxu0 0.0
    %4690 = vmatprep.subr.mxu0 0.0
    %4691 = vmatpush2.msra.mxu0 0.0
    %4692 = vmatprep.subr.mxu0 0.0
    %4693 = vmatpush2.msra.mxu0 0.0
    %4694 = vmatprep.subr.mxu0 0.0
    %4695 = vmatpush2.msra.mxu0 0.0
    %4696 = vmatprep.subr.mxu0 0.0
    %4697 = vmatpush2.msra.mxu0 0.0
    %4698 = vmatprep.subr.mxu0 0.0
    %4699 = vmatpush2.msra.mxu0 0.0
    %4700 = vmatprep.subr.mxu0 0.0
    %4701 = vmatpush2.msra.mxu0 0.0
    %4702 = vmatprep.subr.mxu0 0.0
    %4703 = vmatpush2.msra.mxu0 0.0
    %4704 = vmatprep.subr.mxu0 0.0
    %4705 = vmatpush2.msra.mxu0 0.0
    %4706 = vmatprep.subr.mxu0 0.0
    %4707 = vmatpush2.msra.mxu0 0.0
    %4708 = vmatprep.subr.mxu0 0.0
    %4709 = vmatpush2.msra.mxu0 0.0
    %4710 = vmatprep.subr.mxu0 0.0
    %4711 = vmatpush2.msra.mxu0 0.0
    %4712 = vmatprep.mubr.f32.mxu0 0.0
    %4713 = vmatmul.mubr.f32.gmra.mxu0 %v4646
    %v4714 = vpop.f32.mrf.mxu0
    %v4715 = vadd.f32 %v139, %v4714
    %v4716 = vpop.f32.mrf.mxu0
    %4717 = vdwg.mxu0
    %v4718 = vtanh.pop %v4715
    %s4719 = scalar_lea.vmem %s22, 14
    %4720 = vst.msk [vmem:[%s4719] sm:$0x3] %vm146, %v4718
    // Predicated region
    $region102: #{tpu_custom_call.1} parent=1 // pred_check
      _
    $region103: #{tpu_custom_call.1} parent=1 // pred_check_branch
      %4722 = sbr.rel (0) target = $region105
    $region104: #{tpu_custom_call.1} parent=1 // pred_region
      _
    $region105: #{tpu_custom_call.1} parent=1 // pred_fallthru
      _
    // Predicated region
    $region106: #{tpu_custom_call.1} parent=1 // pred_check
      _
    $region107: #{tpu_custom_call.1} parent=1 // pred_check_branch
      %4724 = sbr.rel (0) target = $region109
    $region108: #{tpu_custom_call.1} parent=1 // pred_region
      _
    $region109: #{tpu_custom_call.1} parent=1 // pred_fallthru
      _
    %4725 = vsyncpa [#allocation9], 1
    %4726 = vsyncpa [#allocation11], 1

</llo_original>
